<compile_context>
chip_gen: v6e
topology: v6e:2x2x1
jax: 0.10.0
libtpu: 0.0.40
codegen_flags: <defaults>
</compile_context>

<pallas_src>
import functools
import math

import jax
import jax.numpy as jnp
from jax import lax
from jax.experimental import pallas as pl
from jax.experimental.pallas import tpu as pltpu

NEG_SLOPE = 0.01     # nn.LeakyReLU default
LN_EPS = 1e-5        # nn.LayerNorm default
MASK_NEG = -1e30

# Optional knob: set to jnp.bfloat16 on v6e/v7x for higher MXU throughput
# (accumulation stays f32).  Kept f32 here so the accuracy check vs. the f32
# reference is tight; on v5e keep f32 anyway (no bf16 VPU/EUP datapath).
MXU_DTYPE = jnp.float32


# ----------------------------- in-kernel math ------------------------------

def _leaky(x):
    return jnp.where(x >= 0, x, NEG_SLOPE * x)


def _layernorm(x, g, b):
    mu = jnp.mean(x, axis=-1, keepdims=True)
    var = jnp.mean((x - mu) ** 2, axis=-1, keepdims=True)
    return (x - mu) * lax.rsqrt(var + LN_EPS) * g + b


def _mm(a, b):
    return jnp.dot(a.astype(MXU_DTYPE), b.astype(MXU_DTYPE),
                   preferred_element_type=jnp.float32)


# ------------------------------ fused kernel --------------------------------

def disc_kernel(*refs, num_layers, heads, hidden, bt, n):
    (x_ref, mask_ref, pool_ref, poolt_ref, sel_ref, selt_ref,
     we_ref, be_ref, weca_ref, wecb_ref, bec_ref,
     fc0w_ref, fc0b_ref, lng_ref, lnb_ref,
     wq_ref, bq_ref, wk_ref, bk_ref, wv_ref, bv_ref, wo_ref, bo_ref,
     w1ca_ref, w1cb_ref, b1c_ref, w1a_ref, w1b_ref, b1_ref,
     hfc1w_ref, hfc1b_ref, hfc2w_ref, hfc2b_ref, hlng_ref, hlnb_ref,
     res_ref, head_ref) = refs

    scale = 1.0 / math.sqrt(hidden // heads)

    x = x_ref[...]              # (bt*n, n_dim)   particles, batch stacked into M
    maskf = mask_ref[...]       # (bt*n, 1)       1.0 == padded key
    pool = pool_ref[...]        # (bt, bt*n)      per-sample row-sum matrix
    poolt = poolt_ref[...]      # (bt*n, bt)      per-sample row-broadcast matrix
    sel = sel_ref[...]          # (hidden, heads) head-membership indicator
    selt = selt_ref[...]        # (heads, hidden)

    neg = maskf * MASK_NEG                          # (bt*n, 1)
    msum = _mm(pool, maskf) * (1.0 / 70.0)          # (bt, 1)   mask.sum(1)/70

    # ---- embedding + initial x_cls ----
    xe = _leaky(_mm(x, we_ref[...]) + be_ref[...])                  # (bt*n, l_dim)
    mean = _mm(pool, xe) * (1.0 / n)                                # (bt, l_dim)
    xcls = _leaky(_mm(mean, weca_ref[...]) + msum * wecb_ref[...] + bec_ref[...])

    # ---- encoder: all layers fused, activations stay on-chip ----
    for l in range(num_layers):
        if l > 0:                       # Disc applies act() to x_cls between layers
            xcls = _leaky(xcls)
        res = xcls

        fc0_w = fc0w_ref[l]
        fc0_b = fc0b_ref[l]
        xh = _leaky(_mm(xe, fc0_w) + fc0_b)                          # (bt*n, hidden)
        ch = _leaky(_layernorm(_mm(xcls, fc0_w) + fc0_b,
                               lng_ref[l], lnb_ref[l]))              # (bt, hidden)

        q = _mm(ch, wq_ref[l]) + bq_ref[l]                           # (bt, hidden)
        k = _mm(xh, wk_ref[l]) + bk_ref[l]                           # (bt*n, hidden)
        v = _mm(xh, wv_ref[l]) + bv_ref[l]                           # (bt*n, hidden)

        # all heads at once: scores[bn,h] = scale * sum_{d in head h} q[b,d]*k[bn,d]
        q_rows = _mm(poolt, q)                                       # (bt*n, hidden)
        s = _mm(q_rows * k, sel) * scale + neg                       # (bt*n, heads)
        m = jnp.max(s.reshape(bt, n, heads), axis=1)                 # per-(b,h) max
        s = s - _mm(poolt, m)                                        # broadcast back
        p = jnp.exp(s)
        inv = pl.reciprocal(_mm(pool, p), approx=True)               # (bt, heads)
        p = p * _mm(poolt, inv)                                      # normalized probs

        pfull = _mm(p, selt)                                         # (bt*n, hidden)
        ctx = _mm(pool, pfull * v)                                   # (bt, hidden) = concat(heads)
        attn = _mm(ctx, wo_ref[l]) + bo_ref[l]                       # out_proj

        xcls_new = _leaky(_mm(attn, w1ca_ref[l]) + msum * w1cb_ref[l] + b1c_ref[l])
        # cat((x, x_cls.expand), -1) @ W1  ==  x @ W1a + (x_cls @ W1b) broadcast over N
        cls_rows = _mm(poolt, _mm(xcls_new, w1b_ref[l]))             # (bt*n, l_dim)
        xe = _leaky(_mm(xh, w1a_ref[l]) + cls_rows + b1_ref[l])      # (bt*n, l_dim)
        xcls = xcls_new + res

    res_ref[...] = xcls                   # pre-activation x_cls of the last layer

    # ---- head: act(ln(fc2(act(fc1(act(x_cls)))))) ; 1-wide projection done outside
    h = _leaky(xcls)
    h = _leaky(_mm(h, hfc1w_ref[...]) + hfc1b_ref[...])
    h = _mm(h, hfc2w_ref[...]) + hfc2b_ref[...]
    head_ref[...] = _leaky(_layernorm(h, hlng_ref[...], hlnb_ref[...]))


# ----------------------------- pallas wrapper --------------------------------

def _full_spec(a):
    nd = a.ndim
    return pl.BlockSpec(a.shape, lambda b, _nd=nd: (0,) * _nd)


def disc_forward(x, mask, params, *, hidden, heads):
    """Returns (out, res) matching Disc.forward(x, mask, weight=False)."""
    B, N, n_dim = x.shape
    we, be = params["embbed"]
    l_dim = we.shape[1]
    S = params["layers"]
    num_layers = S["fc0_w"].shape[0]

    # batch tile: pack samples so the particle-path M is ~256 rows per step;
    # remaining grid steps are "parallel" (megacore sharding on v7x).
    bt = min(B, max(1, 256 // N))
    while B % bt:
        bt -= 1
    grid = (B // bt,)

    x_flat = x.astype(jnp.float32).reshape(B * N, n_dim)
    mask_flat = mask.astype(jnp.float32).reshape(B * N, 1)

    # per-sample sum / broadcast matrices and head-membership selector
    rows = jnp.arange(bt)[:, None]
    cols = jnp.arange(bt * N)[None, :]
    pool = (cols // N == rows).astype(jnp.float32)                  # (bt, bt*N)
    poolt = pool.T                                                  # (bt*N, bt)
    hd = hidden // heads
    sel = (jnp.arange(hidden)[:, None] // hd
           == jnp.arange(heads)[None, :]).astype(jnp.float32)       # (hidden, heads)
    selt = sel.T

    weca, wecb, bec = params["embbed_cls"]
    fc1_w, fc1_b = params["fc1"]
    fc2_w, fc2_b = params["fc2"]
    ln_g, ln_b = params["ln"]
    out_w, out_b = params["out"]

    inputs = [x_flat, mask_flat, pool, poolt, sel, selt,
              we, be, weca, wecb, bec,
              S["fc0_w"], S["fc0_b"], S["ln_g"], S["ln_b"],
              S["wq"], S["bq"], S["wk"], S["bk"], S["wv"], S["bv"],
              S["wo"], S["bo"],
              S["w1c_a"], S["w1c_b"], S["b1c"],
              S["w1_a"], S["w1_b"], S["b1"],
              fc1_w, fc1_b, fc2_w, fc2_b, ln_g, ln_b]

    in_specs = ([pl.BlockSpec((bt * N, n_dim), lambda b: (b, 0)),
                 pl.BlockSpec((bt * N, 1), lambda b: (b, 0))]
                + [_full_spec(a) for a in inputs[2:]])
    out_specs = (pl.BlockSpec((bt, l_dim), lambda b: (b, 0)),
                 pl.BlockSpec((bt, l_dim), lambda b: (b, 0)))
    out_shape = (jax.ShapeDtypeStruct((B, l_dim), jnp.float32),
                 jax.ShapeDtypeStruct((B, l_dim), jnp.float32))

    kern = functools.partial(disc_kernel, num_layers=num_layers, heads=heads,
                             hidden=hidden, bt=bt, n=N)
    res2d, head2d = pl.pallas_call(
        kern,
        grid=grid,
        in_specs=in_specs,
        out_specs=out_specs,
        out_shape=out_shape,
        compiler_params=pltpu.CompilerParams(
            dimension_semantics=("parallel",),
            vmem_limit_bytes=32 * 1024 * 1024),
    )(*inputs)

    # Final 1-wide projection outside Pallas (avoids a lane-width-1 store).
    out = (head2d @ out_w + out_b).reshape(B, 1, 1)
    return out, res2d.reshape(B, 1, l_dim)


# --------------------------- parameters (synthetic) -------------------------

def init_params(key, n_dim, l_dim, hidden, num_layers):
    keys = iter(jax.random.split(key, 16 + 12 * num_layers))

    def lin(in_f, out_f):  # weights stored as (in, out) = torch_weight.T
        w = jax.random.normal(next(keys), (in_f, out_f), jnp.float32) / math.sqrt(in_f)
        b = 0.01 * jax.random.normal(next(keys), (1, out_f), jnp.float32)
        return w, b

    params = {}
    params["embbed"] = lin(n_dim, l_dim)
    wec, bec = lin(l_dim + 1, l_dim)
    params["embbed_cls"] = (wec[:l_dim], wec[l_dim:], bec)

    per_layer = []
    for _ in range(num_layers):
        fc0_w, fc0_b = lin(l_dim, hidden)
        wqkv, bqkv = lin(hidden, 3 * hidden)
        wo, bo = lin(hidden, hidden)
        w1c, b1c = lin(hidden + 1, l_dim)
        w1, b1 = lin(hidden + l_dim, l_dim)
        per_layer.append(dict(
            fc0_w=fc0_w, fc0_b=fc0_b,
            ln_g=jnp.ones((1, hidden), jnp.float32),
            ln_b=jnp.zeros((1, hidden), jnp.float32),
            # host-side split of in_proj: no lane slicing inside the kernel
            wq=wqkv[:, :hidden], bq=bqkv[:, :hidden],
            wk=wqkv[:, hidden:2 * hidden], bk=bqkv[:, hidden:2 * hidden],
            wv=wqkv[:, 2 * hidden:], bv=bqkv[:, 2 * hidden:],
            wo=wo, bo=bo,
            w1c_a=w1c[:hidden], w1c_b=w1c[hidden:], b1c=b1c,
            w1_a=w1[:hidden], w1_b=w1[hidden:], b1=b1))
    # stack per-layer weights -> (num_layers, ...) so one kernel holds them all
    params["layers"] = {k: jnp.stack([lp[k] for lp in per_layer])
                        for k in per_layer[0]}

    params["fc1"] = lin(l_dim, hidden)
    params["fc2"] = lin(hidden, l_dim)
    params["ln"] = (jnp.ones((1, l_dim), jnp.float32),
                    jnp.zeros((1, l_dim), jnp.float32))
    params["out"] = lin(l_dim, 1)
    # NOTE: cls_token exists in Disc.__init__ but is never used in forward().
    return params


# ------------------------------ pure-JAX reference --------------------------

def disc_reference(x, mask, params, *, hidden, heads):
    maskf = mask.astype(jnp.float32)                        # (B, N)
    msum = jnp.sum(maskf, axis=1)[:, None, None] / 70.0     # (B, 1, 1)

    we, be = params["embbed"]
    xe = _leaky(x @ we + be)
    weca, wecb, bec = params["embbed_cls"]
    mean = jnp.mean(xe, axis=1, keepdims=True)
    x_cls = _leaky(mean @ weca + msum * wecb + bec)

    S = params["layers"]
    L = S["fc0_w"].shape[0]
    hd = hidden // heads
    scale = 1.0 / math.sqrt(hd)
    for i in range(L):
        if i > 0:
            x_cls = _leaky(x_cls)
        res = x_cls
        xh = _leaky(xe @ S["fc0_w"][i] + S["fc0_b"][i])
        ch = _leaky(_layernorm(x_cls @ S["fc0_w"][i] + S["fc0_b"][i],
                               S["ln_g"][i], S["ln_b"][i]))
        q = ch @ S["wq"][i] + S["bq"][i]
        k = xh @ S["wk"][i] + S["bk"][i]
        v = xh @ S["wv"][i] + S["bv"][i]
        attn = S["bo"][i]
        for h in range(heads):
            sl = slice(h * hd, (h + 1) * hd)
            s = jnp.einsum("bqd,bkd->bqk", q[..., sl], k[..., sl]) * scale
            s = s + maskf[:, None, :] * MASK_NEG
            s = s - jnp.max(s, axis=-1, keepdims=True)
            p = jnp.exp(s)
            p = p / jnp.sum(p, axis=-1, keepdims=True)
            attn = attn + jnp.einsum("bqk,bkd->bqd", p, v[..., sl]) @ S["wo"][i][sl, :]
        xcls_new = _leaky(attn @ S["w1c_a"][i] + msum * S["w1c_b"][i] + S["b1c"][i])
        xe = _leaky(xh @ S["w1_a"][i] + xcls_new @ S["w1_b"][i] + S["b1"][i])
        x_cls = xcls_new + res

    res = x_cls
    h1 = _leaky(_leaky(x_cls) @ params["fc1"][0] + params["fc1"][1])
    h2 = h1 @ params["fc2"][0] + params["fc2"][1]
    h2 = _leaky(_layernorm(h2, params["ln"][0], params["ln"][1]))
    out = h2 @ params["out"][0] + params["out"][1]
    return out, res


# ----------------------------------- main ------------------------------------

if __name__ == "__main__":
    # Small shapes consistent with Disc.forward: x (B, N, n_dim), mask (B, N)
    B, N = 2, 8
    n_dim, l_dim, hidden, num_layers, heads = 4, 16, 32, 2, 2

    key = jax.random.PRNGKey(0)
    kx, kp = jax.random.split(key)
    x = jax.random.normal(kx, (B, N, n_dim), jnp.float32)
    # 1.0 => padded particle (ignored by attention); valid lengths = [8, 5]
    valid = jnp.array([8, 5])
    mask = (jnp.arange(N)[None, :] >= valid[:, None]).astype(jnp.float32)

    params = init_params(kp, n_dim, l_dim, hidden, num_layers)

    out, res = disc_forward(x, mask, params, hidden=hidden, heads=heads)
    jax.block_until_ready((out, res))

    ref_out, ref_res = disc_reference(x, mask, params, hidden=hidden, heads=heads)
    assert out.shape == (B, 1, 1) and res.shape == (B, 1, l_dim)
    # slightly loose tolerance to allow the approx-reciprocal softmax normalizer
    assert jnp.allclose(out, ref_out, atol=2e-3, rtol=2e-3), (out, ref_out)
    assert jnp.allclose(res, ref_res, atol=2e-3, rtol=2e-3)
    assert bool(jnp.all(jnp.isfinite(out))) and bool(jnp.all(jnp.isfinite(res)))

    # TODO(synk): weight=True path (returning per-layer attention maps) not implemented.
    print("KERNEL_OK")
</pallas_src>

<mosaic_0001>
module attributes {stable_mosaic.version = 11 : i64} {
  func.func @disc_kernel(%arg0: i32, %arg1: memref<16x4xf32, #tpu.memory_space<vmem>>, %arg2: memref<16x1xf32, #tpu.memory_space<vmem>>, %arg3: memref<2x16xf32, #tpu.memory_space<vmem>>, %arg4: memref<16x2xf32, #tpu.memory_space<vmem>>, %arg5: memref<32x2xf32, #tpu.memory_space<vmem>>, %arg6: memref<2x32xf32, #tpu.memory_space<vmem>>, %arg7: memref<4x16xf32, #tpu.memory_space<vmem>>, %arg8: memref<1x16xf32, #tpu.memory_space<vmem>>, %arg9: memref<16x16xf32, #tpu.memory_space<vmem>>, %arg10: memref<1x16xf32, #tpu.memory_space<vmem>>, %arg11: memref<1x16xf32, #tpu.memory_space<vmem>>, %arg12: memref<2x16x32xf32, #tpu.memory_space<vmem>>, %arg13: memref<2x1x32xf32, #tpu.memory_space<vmem>>, %arg14: memref<2x1x32xf32, #tpu.memory_space<vmem>>, %arg15: memref<2x1x32xf32, #tpu.memory_space<vmem>>, %arg16: memref<2x32x32xf32, #tpu.memory_space<vmem>>, %arg17: memref<2x1x32xf32, #tpu.memory_space<vmem>>, %arg18: memref<2x32x32xf32, #tpu.memory_space<vmem>>, %arg19: memref<2x1x32xf32, #tpu.memory_space<vmem>>, %arg20: memref<2x32x32xf32, #tpu.memory_space<vmem>>, %arg21: memref<2x1x32xf32, #tpu.memory_space<vmem>>, %arg22: memref<2x32x32xf32, #tpu.memory_space<vmem>>, %arg23: memref<2x1x32xf32, #tpu.memory_space<vmem>>, %arg24: memref<2x32x16xf32, #tpu.memory_space<vmem>>, %arg25: memref<2x1x16xf32, #tpu.memory_space<vmem>>, %arg26: memref<2x1x16xf32, #tpu.memory_space<vmem>>, %arg27: memref<2x32x16xf32, #tpu.memory_space<vmem>>, %arg28: memref<2x16x16xf32, #tpu.memory_space<vmem>>, %arg29: memref<2x1x16xf32, #tpu.memory_space<vmem>>, %arg30: memref<16x32xf32, #tpu.memory_space<vmem>>, %arg31: memref<1x32xf32, #tpu.memory_space<vmem>>, %arg32: memref<32x16xf32, #tpu.memory_space<vmem>>, %arg33: memref<1x16xf32, #tpu.memory_space<vmem>>, %arg34: memref<1x16xf32, #tpu.memory_space<vmem>>, %arg35: memref<1x16xf32, #tpu.memory_space<vmem>>, %arg36: memref<2x16xf32, #tpu.memory_space<vmem>>, %arg37: memref<2x16xf32, #tpu.memory_space<vmem>>) attributes {dimension_semantics = [#tpu.dimension_semantics<parallel>], iteration_bounds = array<i64: 1>, scalar_prefetch = 0 : i64, scratch_operands = 0 : i64, tpu.core_type = #tpu.core_type<tc>, window_params = [{transform_indices = @transform_0, window_bounds = array<i64: 16, 4>}, {transform_indices = @transform_1, window_bounds = array<i64: 16, 1>}, {pipeline_mode = #tpu.pipeline_mode<synchronous>, transform_indices = @transform_2, window_bounds = array<i64: 2, 16>}, {pipeline_mode = #tpu.pipeline_mode<synchronous>, transform_indices = @transform_3, window_bounds = array<i64: 16, 2>}, {pipeline_mode = #tpu.pipeline_mode<synchronous>, transform_indices = @transform_4, window_bounds = array<i64: 32, 2>}, {pipeline_mode = #tpu.pipeline_mode<synchronous>, transform_indices = @transform_5, window_bounds = array<i64: 2, 32>}, {pipeline_mode = #tpu.pipeline_mode<synchronous>, transform_indices = @transform_6, window_bounds = array<i64: 4, 16>}, {pipeline_mode = #tpu.pipeline_mode<synchronous>, transform_indices = @transform_7, window_bounds = array<i64: 1, 16>}, {pipeline_mode = #tpu.pipeline_mode<synchronous>, transform_indices = @transform_8, window_bounds = array<i64: 16, 16>}, {pipeline_mode = #tpu.pipeline_mode<synchronous>, transform_indices = @transform_9, window_bounds = array<i64: 1, 16>}, {pipeline_mode = #tpu.pipeline_mode<synchronous>, transform_indices = @transform_10, window_bounds = array<i64: 1, 16>}, {pipeline_mode = #tpu.pipeline_mode<synchronous>, transform_indices = @transform_11, window_bounds = array<i64: 2, 16, 32>}, {pipeline_mode = #tpu.pipeline_mode<synchronous>, transform_indices = @transform_12, window_bounds = array<i64: 2, 1, 32>}, {pipeline_mode = #tpu.pipeline_mode<synchronous>, transform_indices = @transform_13, window_bounds = array<i64: 2, 1, 32>}, {pipeline_mode = #tpu.pipeline_mode<synchronous>, transform_indices = @transform_14, window_bounds = array<i64: 2, 1, 32>}, {pipeline_mode = #tpu.pipeline_mode<synchronous>, transform_indices = @transform_15, window_bounds = array<i64: 2, 32, 32>}, {pipeline_mode = #tpu.pipeline_mode<synchronous>, transform_indices = @transform_16, window_bounds = array<i64: 2, 1, 32>}, {pipeline_mode = #tpu.pipeline_mode<synchronous>, transform_indices = @transform_17, window_bounds = array<i64: 2, 32, 32>}, {pipeline_mode = #tpu.pipeline_mode<synchronous>, transform_indices = @transform_18, window_bounds = array<i64: 2, 1, 32>}, {pipeline_mode = #tpu.pipeline_mode<synchronous>, transform_indices = @transform_19, window_bounds = array<i64: 2, 32, 32>}, {pipeline_mode = #tpu.pipeline_mode<synchronous>, transform_indices = @transform_20, window_bounds = array<i64: 2, 1, 32>}, {pipeline_mode = #tpu.pipeline_mode<synchronous>, transform_indices = @transform_21, window_bounds = array<i64: 2, 32, 32>}, {pipeline_mode = #tpu.pipeline_mode<synchronous>, transform_indices = @transform_22, window_bounds = array<i64: 2, 1, 32>}, {pipeline_mode = #tpu.pipeline_mode<synchronous>, transform_indices = @transform_23, window_bounds = array<i64: 2, 32, 16>}, {pipeline_mode = #tpu.pipeline_mode<synchronous>, transform_indices = @transform_24, window_bounds = array<i64: 2, 1, 16>}, {pipeline_mode = #tpu.pipeline_mode<synchronous>, transform_indices = @transform_25, window_bounds = array<i64: 2, 1, 16>}, {pipeline_mode = #tpu.pipeline_mode<synchronous>, transform_indices = @transform_26, window_bounds = array<i64: 2, 32, 16>}, {pipeline_mode = #tpu.pipeline_mode<synchronous>, transform_indices = @transform_27, window_bounds = array<i64: 2, 16, 16>}, {pipeline_mode = #tpu.pipeline_mode<synchronous>, transform_indices = @transform_28, window_bounds = array<i64: 2, 1, 16>}, {pipeline_mode = #tpu.pipeline_mode<synchronous>, transform_indices = @transform_29, window_bounds = array<i64: 16, 32>}, {pipeline_mode = #tpu.pipeline_mode<synchronous>, transform_indices = @transform_30, window_bounds = array<i64: 1, 32>}, {pipeline_mode = #tpu.pipeline_mode<synchronous>, transform_indices = @transform_31, window_bounds = array<i64: 32, 16>}, {pipeline_mode = #tpu.pipeline_mode<synchronous>, transform_indices = @transform_32, window_bounds = array<i64: 1, 16>}, {pipeline_mode = #tpu.pipeline_mode<synchronous>, transform_indices = @transform_33, window_bounds = array<i64: 1, 16>}, {pipeline_mode = #tpu.pipeline_mode<synchronous>, transform_indices = @transform_34, window_bounds = array<i64: 1, 16>}, {transform_indices = @transform_35, window_bounds = array<i64: 2, 16>}, {transform_indices = @transform_36, window_bounds = array<i64: 2, 16>}]} {
    %c0 = arith.constant 0 : index
    %c0_0 = arith.constant 0 : index
    %0 = vector.load %arg1[%c0, %c0_0] : memref<16x4xf32, #tpu.memory_space<vmem>>, vector<16x4xf32>
    %c0_1 = arith.constant 0 : index
    %c0_2 = arith.constant 0 : index
    %1 = vector.load %arg2[%c0_1, %c0_2] : memref<16x1xf32, #tpu.memory_space<vmem>>, vector<16x1xf32>
    %c0_3 = arith.constant 0 : index
    %c0_4 = arith.constant 0 : index
    %2 = vector.load %arg3[%c0_3, %c0_4] : memref<2x16xf32, #tpu.memory_space<vmem>>, vector<2x16xf32>
    %c0_5 = arith.constant 0 : index
    %c0_6 = arith.constant 0 : index
    %3 = vector.load %arg4[%c0_5, %c0_6] : memref<16x2xf32, #tpu.memory_space<vmem>>, vector<16x2xf32>
    %c0_7 = arith.constant 0 : index
    %c0_8 = arith.constant 0 : index
    %4 = vector.load %arg5[%c0_7, %c0_8] : memref<32x2xf32, #tpu.memory_space<vmem>>, vector<32x2xf32>
    %c0_9 = arith.constant 0 : index
    %c0_10 = arith.constant 0 : index
    %5 = vector.load %arg6[%c0_9, %c0_10] : memref<2x32xf32, #tpu.memory_space<vmem>>, vector<2x32xf32>
    %cst = arith.constant -1.000000e+30 : f32
    %6 = vector.broadcast %cst : f32 to vector<16x1xf32>
    %7 = arith.mulf %1, %6 : vector<16x1xf32>
    %cst_11 = arith.constant dense<0.000000e+00> : vector<2x1xf32>
    %8 = tpu.matmul %2, %1, %cst_11 {dimension_numbers = #tpu.dot_dimension_numbers<[1], [0], [0], [1], [0, 0, 1, 1], [], []>} : vector<2x16xf32>, vector<16x1xf32>, vector<2x1xf32> -> vector<2x1xf32>
    %cst_12 = arith.constant 0.0142857144 : f32
    %9 = vector.broadcast %cst_12 : f32 to vector<2x1xf32>
    %10 = arith.mulf %8, %9 : vector<2x1xf32>
    %c0_13 = arith.constant 0 : index
    %c0_14 = arith.constant 0 : index
    %11 = vector.load %arg7[%c0_13, %c0_14] : memref<4x16xf32, #tpu.memory_space<vmem>>, vector<4x16xf32>
    %cst_15 = arith.constant dense<0.000000e+00> : vector<16x16xf32>
    %12 = tpu.matmul %0, %11, %cst_15 {dimension_numbers = #tpu.dot_dimension_numbers<[1], [0], [0], [1], [0, 0, 1, 1], [], []>} : vector<16x4xf32>, vector<4x16xf32>, vector<16x16xf32> -> vector<16x16xf32>
    %c0_16 = arith.constant 0 : index
    %c0_17 = arith.constant 0 : index
    %13 = vector.load %arg8[%c0_16, %c0_17] : memref<1x16xf32, #tpu.memory_space<vmem>>, vector<1x16xf32>
    %14 = vector.broadcast %13 : vector<1x16xf32> to vector<16x16xf32>
    %15 = arith.addf %12, %14 : vector<16x16xf32>
    %cst_18 = arith.constant 0.000000e+00 : f32
    %16 = vector.broadcast %cst_18 : f32 to vector<16x16xf32>
    %17 = arith.cmpf oge, %15, %16 : vector<16x16xf32>
    %cst_19 = arith.constant 0.00999999977 : f32
    %18 = vector.broadcast %cst_19 : f32 to vector<16x16xf32>
    %19 = arith.mulf %18, %15 : vector<16x16xf32>
    %20 = arith.select %17, %15, %19 : vector<16x16xi1>, vector<16x16xf32>
    %cst_20 = arith.constant dense<0.000000e+00> : vector<2x16xf32>
    %21 = tpu.matmul %2, %20, %cst_20 {dimension_numbers = #tpu.dot_dimension_numbers<[1], [0], [0], [1], [0, 0, 1, 1], [], []>} : vector<2x16xf32>, vector<16x16xf32>, vector<2x16xf32> -> vector<2x16xf32>
    %cst_21 = arith.constant 1.250000e-01 : f32
    %22 = vector.broadcast %cst_21 : f32 to vector<2x16xf32>
    %23 = arith.mulf %21, %22 : vector<2x16xf32>
    %c0_22 = arith.constant 0 : index
    %c0_23 = arith.constant 0 : index
    %24 = vector.load %arg9[%c0_22, %c0_23] : memref<16x16xf32, #tpu.memory_space<vmem>>, vector<16x16xf32>
    %cst_24 = arith.constant dense<0.000000e+00> : vector<2x16xf32>
    %25 = tpu.matmul %23, %24, %cst_24 {dimension_numbers = #tpu.dot_dimension_numbers<[1], [0], [0], [1], [0, 0, 1, 1], [], []>} : vector<2x16xf32>, vector<16x16xf32>, vector<2x16xf32> -> vector<2x16xf32>
    %c0_25 = arith.constant 0 : index
    %c0_26 = arith.constant 0 : index
    %26 = vector.load %arg10[%c0_25, %c0_26] : memref<1x16xf32, #tpu.memory_space<vmem>>, vector<1x16xf32>
    %27 = vector.broadcast %10 : vector<2x1xf32> to vector<2x16xf32>
    %28 = vector.broadcast %26 : vector<1x16xf32> to vector<2x16xf32>
    %29 = arith.mulf %27, %28 : vector<2x16xf32>
    %30 = arith.addf %25, %29 : vector<2x16xf32>
    %c0_27 = arith.constant 0 : index
    %c0_28 = arith.constant 0 : index
    %31 = vector.load %arg11[%c0_27, %c0_28] : memref<1x16xf32, #tpu.memory_space<vmem>>, vector<1x16xf32>
    %32 = vector.broadcast %31 : vector<1x16xf32> to vector<2x16xf32>
    %33 = arith.addf %30, %32 : vector<2x16xf32>
    %cst_29 = arith.constant 0.000000e+00 : f32
    %34 = vector.broadcast %cst_29 : f32 to vector<2x16xf32>
    %35 = arith.cmpf oge, %33, %34 : vector<2x16xf32>
    %cst_30 = arith.constant 0.00999999977 : f32
    %36 = vector.broadcast %cst_30 : f32 to vector<2x16xf32>
    %37 = arith.mulf %36, %33 : vector<2x16xf32>
    %38 = arith.select %35, %33, %37 : vector<2x16xi1>, vector<2x16xf32>
    %c0_31 = arith.constant 0 : index
    %c0_32 = arith.constant 0 : index
    %c0_33 = arith.constant 0 : index
    %39 = vector.load %arg12[%c0_31, %c0_32, %c0_33] : memref<2x16x32xf32, #tpu.memory_space<vmem>>, vector<1x16x32xf32>
    %40 = vector.shape_cast %39 : vector<1x16x32xf32> to vector<16x32xf32>
    %c0_34 = arith.constant 0 : index
    %c0_35 = arith.constant 0 : index
    %c0_36 = arith.constant 0 : index
    %41 = vector.load %arg13[%c0_34, %c0_35, %c0_36] : memref<2x1x32xf32, #tpu.memory_space<vmem>>, vector<1x1x32xf32>
    %42 = vector.shape_cast %41 : vector<1x1x32xf32> to vector<1x32xf32>
    %cst_37 = arith.constant dense<0.000000e+00> : vector<16x32xf32>
    %43 = tpu.matmul %20, %40, %cst_37 {dimension_numbers = #tpu.dot_dimension_numbers<[1], [0], [0], [1], [0, 0, 1, 1], [], []>} : vector<16x16xf32>, vector<16x32xf32>, vector<16x32xf32> -> vector<16x32xf32>
    %44 = vector.broadcast %42 : vector<1x32xf32> to vector<16x32xf32>
    %45 = arith.addf %43, %44 : vector<16x32xf32>
    %cst_38 = arith.constant 0.000000e+00 : f32
    %46 = vector.broadcast %cst_38 : f32 to vector<16x32xf32>
    %47 = arith.cmpf oge, %45, %46 : vector<16x32xf32>
    %cst_39 = arith.constant 0.00999999977 : f32
    %48 = vector.broadcast %cst_39 : f32 to vector<16x32xf32>
    %49 = arith.mulf %48, %45 : vector<16x32xf32>
    %50 = arith.select %47, %45, %49 : vector<16x32xi1>, vector<16x32xf32>
    %cst_40 = arith.constant dense<0.000000e+00> : vector<2x32xf32>
    %51 = tpu.matmul %38, %40, %cst_40 {dimension_numbers = #tpu.dot_dimension_numbers<[1], [0], [0], [1], [0, 0, 1, 1], [], []>} : vector<2x16xf32>, vector<16x32xf32>, vector<2x32xf32> -> vector<2x32xf32>
    %52 = vector.broadcast %42 : vector<1x32xf32> to vector<2x32xf32>
    %53 = arith.addf %51, %52 : vector<2x32xf32>
    %c0_41 = arith.constant 0 : index
    %c0_42 = arith.constant 0 : index
    %c0_43 = arith.constant 0 : index
    %54 = vector.load %arg14[%c0_41, %c0_42, %c0_43] : memref<2x1x32xf32, #tpu.memory_space<vmem>>, vector<1x1x32xf32>
    %55 = vector.shape_cast %54 : vector<1x1x32xf32> to vector<1x32xf32>
    %c0_44 = arith.constant 0 : index
    %c0_45 = arith.constant 0 : index
    %c0_46 = arith.constant 0 : index
    %56 = vector.load %arg15[%c0_44, %c0_45, %c0_46] : memref<2x1x32xf32, #tpu.memory_space<vmem>>, vector<1x1x32xf32>
    %57 = vector.shape_cast %56 : vector<1x1x32xf32> to vector<1x32xf32>
    %cst_47 = arith.constant dense<0.000000e+00> : vector<2xf32>
    %58 = vector.multi_reduction <add>, %53, %cst_47 [1] : vector<2x32xf32> to vector<2xf32>
    %59 = vector.shape_cast %58 : vector<2xf32> to vector<2x1xf32>
    %cst_48 = arith.constant 3.200000e+01 : f32
    %60 = vector.broadcast %cst_48 : f32 to vector<2x1xf32>
    %61 = arith.divf %59, %60 : vector<2x1xf32>
    %62 = vector.broadcast %61 : vector<2x1xf32> to vector<2x32xf32>
    %63 = arith.subf %53, %62 : vector<2x32xf32>
    %64 = arith.mulf %63, %63 : vector<2x32xf32>
    %cst_49 = arith.constant dense<0.000000e+00> : vector<2xf32>
    %65 = vector.multi_reduction <add>, %64, %cst_49 [1] : vector<2x32xf32> to vector<2xf32>
    %66 = vector.shape_cast %65 : vector<2xf32> to vector<2x1xf32>
    %cst_50 = arith.constant 3.200000e+01 : f32
    %67 = vector.broadcast %cst_50 : f32 to vector<2x1xf32>
    %68 = arith.divf %66, %67 : vector<2x1xf32>
    %69 = vector.broadcast %61 : vector<2x1xf32> to vector<2x32xf32>
    %70 = arith.subf %53, %69 : vector<2x32xf32>
    %cst_51 = arith.constant 9.99999974E-6 : f32
    %71 = vector.broadcast %cst_51 : f32 to vector<2x1xf32>
    %72 = arith.addf %68, %71 : vector<2x1xf32>
    %73 = math.rsqrt %72 : vector<2x1xf32>
    %74 = vector.broadcast %73 : vector<2x1xf32> to vector<2x32xf32>
    %75 = arith.mulf %70, %74 : vector<2x32xf32>
    %76 = vector.broadcast %55 : vector<1x32xf32> to vector<2x32xf32>
    %77 = arith.mulf %75, %76 : vector<2x32xf32>
    %78 = vector.broadcast %57 : vector<1x32xf32> to vector<2x32xf32>
    %79 = arith.addf %77, %78 : vector<2x32xf32>
    %cst_52 = arith.constant 0.000000e+00 : f32
    %80 = vector.broadcast %cst_52 : f32 to vector<2x32xf32>
    %81 = arith.cmpf oge, %79, %80 : vector<2x32xf32>
    %cst_53 = arith.constant 0.00999999977 : f32
    %82 = vector.broadcast %cst_53 : f32 to vector<2x32xf32>
    %83 = arith.mulf %82, %79 : vector<2x32xf32>
    %84 = arith.select %81, %79, %83 : vector<2x32xi1>, vector<2x32xf32>
    %c0_54 = arith.constant 0 : index
    %c0_55 = arith.constant 0 : index
    %c0_56 = arith.constant 0 : index
    %85 = vector.load %arg16[%c0_54, %c0_55, %c0_56] : memref<2x32x32xf32, #tpu.memory_space<vmem>>, vector<1x32x32xf32>
    %86 = vector.shape_cast %85 : vector<1x32x32xf32> to vector<32x32xf32>
    %cst_57 = arith.constant dense<0.000000e+00> : vector<2x32xf32>
    %87 = tpu.matmul %84, %86, %cst_57 {dimension_numbers = #tpu.dot_dimension_numbers<[1], [0], [0], [1], [0, 0, 1, 1], [], []>} : vector<2x32xf32>, vector<32x32xf32>, vector<2x32xf32> -> vector<2x32xf32>
    %c0_58 = arith.constant 0 : index
    %c0_59 = arith.constant 0 : index
    %c0_60 = arith.constant 0 : index
    %88 = vector.load %arg17[%c0_58, %c0_59, %c0_60] : memref<2x1x32xf32, #tpu.memory_space<vmem>>, vector<1x1x32xf32>
    %89 = vector.shape_cast %88 : vector<1x1x32xf32> to vector<1x32xf32>
    %90 = vector.broadcast %89 : vector<1x32xf32> to vector<2x32xf32>
    %91 = arith.addf %87, %90 : vector<2x32xf32>
    %c0_61 = arith.constant 0 : index
    %c0_62 = arith.constant 0 : index
    %c0_63 = arith.constant 0 : index
    %92 = vector.load %arg18[%c0_61, %c0_62, %c0_63] : memref<2x32x32xf32, #tpu.memory_space<vmem>>, vector<1x32x32xf32>
    %93 = vector.shape_cast %92 : vector<1x32x32xf32> to vector<32x32xf32>
    %cst_64 = arith.constant dense<0.000000e+00> : vector<16x32xf32>
    %94 = tpu.matmul %50, %93, %cst_64 {dimension_numbers = #tpu.dot_dimension_numbers<[1], [0], [0], [1], [0, 0, 1, 1], [], []>} : vector<16x32xf32>, vector<32x32xf32>, vector<16x32xf32> -> vector<16x32xf32>
    %c0_65 = arith.constant 0 : index
    %c0_66 = arith.constant 0 : index
    %c0_67 = arith.constant 0 : index
    %95 = vector.load %arg19[%c0_65, %c0_66, %c0_67] : memref<2x1x32xf32, #tpu.memory_space<vmem>>, vector<1x1x32xf32>
    %96 = vector.shape_cast %95 : vector<1x1x32xf32> to vector<1x32xf32>
    %97 = vector.broadcast %96 : vector<1x32xf32> to vector<16x32xf32>
    %98 = arith.addf %94, %97 : vector<16x32xf32>
    %c0_68 = arith.constant 0 : index
    %c0_69 = arith.constant 0 : index
    %c0_70 = arith.constant 0 : index
    %99 = vector.load %arg20[%c0_68, %c0_69, %c0_70] : memref<2x32x32xf32, #tpu.memory_space<vmem>>, vector<1x32x32xf32>
    %100 = vector.shape_cast %99 : vector<1x32x32xf32> to vector<32x32xf32>
    %cst_71 = arith.constant dense<0.000000e+00> : vector<16x32xf32>
    %101 = tpu.matmul %50, %100, %cst_71 {dimension_numbers = #tpu.dot_dimension_numbers<[1], [0], [0], [1], [0, 0, 1, 1], [], []>} : vector<16x32xf32>, vector<32x32xf32>, vector<16x32xf32> -> vector<16x32xf32>
    %c0_72 = arith.constant 0 : index
    %c0_73 = arith.constant 0 : index
    %c0_74 = arith.constant 0 : index
    %102 = vector.load %arg21[%c0_72, %c0_73, %c0_74] : memref<2x1x32xf32, #tpu.memory_space<vmem>>, vector<1x1x32xf32>
    %103 = vector.shape_cast %102 : vector<1x1x32xf32> to vector<1x32xf32>
    %104 = vector.broadcast %103 : vector<1x32xf32> to vector<16x32xf32>
    %105 = arith.addf %101, %104 : vector<16x32xf32>
    %cst_75 = arith.constant dense<0.000000e+00> : vector<16x32xf32>
    %106 = tpu.matmul %3, %91, %cst_75 {dimension_numbers = #tpu.dot_dimension_numbers<[1], [0], [0], [1], [0, 0, 1, 1], [], []>} : vector<16x2xf32>, vector<2x32xf32>, vector<16x32xf32> -> vector<16x32xf32>
    %107 = arith.mulf %106, %98 : vector<16x32xf32>
    %cst_76 = arith.constant dense<0.000000e+00> : vector<16x2xf32>
    %108 = tpu.matmul %107, %4, %cst_76 {dimension_numbers = #tpu.dot_dimension_numbers<[1], [0], [0], [1], [0, 0, 1, 1], [], []>} : vector<16x32xf32>, vector<32x2xf32>, vector<16x2xf32> -> vector<16x2xf32>
    %cst_77 = arith.constant 2.500000e-01 : f32
    %109 = vector.broadcast %cst_77 : f32 to vector<16x2xf32>
    %110 = arith.mulf %108, %109 : vector<16x2xf32>
    %111 = vector.broadcast %7 : vector<16x1xf32> to vector<16x2xf32>
    %112 = arith.addf %110, %111 : vector<16x2xf32>
    %113 = vector.shape_cast %112 : vector<16x2xf32> to vector<2x8x2xf32>
    %cst_78 = arith.constant dense<0xFF800000> : vector<2x2xf32>
    %114 = vector.multi_reduction <maximumf>, %113, %cst_78 [1] : vector<2x8x2xf32> to vector<2x2xf32>
    %cst_79 = arith.constant dense<0.000000e+00> : vector<16x2xf32>
    %115 = tpu.matmul %3, %114, %cst_79 {dimension_numbers = #tpu.dot_dimension_numbers<[1], [0], [0], [1], [0, 0, 1, 1], [], []>} : vector<16x2xf32>, vector<2x2xf32>, vector<16x2xf32> -> vector<16x2xf32>
    %116 = arith.subf %112, %115 : vector<16x2xf32>
    %117 = math.exp %116 : vector<16x2xf32>
    %cst_80 = arith.constant dense<0.000000e+00> : vector<2x2xf32>
    %118 = tpu.matmul %2, %117, %cst_80 {dimension_numbers = #tpu.dot_dimension_numbers<[1], [0], [0], [1], [0, 0, 1, 1], [], []>} : vector<2x16xf32>, vector<16x2xf32>, vector<2x2xf32> -> vector<2x2xf32>
    %119 = tpu.reciprocal %118 {approx = true} : vector<2x2xf32> -> vector<2x2xf32>
    %cst_81 = arith.constant dense<0.000000e+00> : vector<16x2xf32>
    %120 = tpu.matmul %3, %119, %cst_81 {dimension_numbers = #tpu.dot_dimension_numbers<[1], [0], [0], [1], [0, 0, 1, 1], [], []>} : vector<16x2xf32>, vector<2x2xf32>, vector<16x2xf32> -> vector<16x2xf32>
    %121 = arith.mulf %117, %120 : vector<16x2xf32>
    %cst_82 = arith.constant dense<0.000000e+00> : vector<16x32xf32>
    %122 = tpu.matmul %121, %5, %cst_82 {dimension_numbers = #tpu.dot_dimension_numbers<[1], [0], [0], [1], [0, 0, 1, 1], [], []>} : vector<16x2xf32>, vector<2x32xf32>, vector<16x32xf32> -> vector<16x32xf32>
    %123 = arith.mulf %122, %105 : vector<16x32xf32>
    %cst_83 = arith.constant dense<0.000000e+00> : vector<2x32xf32>
    %124 = tpu.matmul %2, %123, %cst_83 {dimension_numbers = #tpu.dot_dimension_numbers<[1], [0], [0], [1], [0, 0, 1, 1], [], []>} : vector<2x16xf32>, vector<16x32xf32>, vector<2x32xf32> -> vector<2x32xf32>
    %c0_84 = arith.constant 0 : index
    %c0_85 = arith.constant 0 : index
    %c0_86 = arith.constant 0 : index
    %125 = vector.load %arg22[%c0_84, %c0_85, %c0_86] : memref<2x32x32xf32, #tpu.memory_space<vmem>>, vector<1x32x32xf32>
    %126 = vector.shape_cast %125 : vector<1x32x32xf32> to vector<32x32xf32>
    %cst_87 = arith.constant dense<0.000000e+00> : vector<2x32xf32>
    %127 = tpu.matmul %124, %126, %cst_87 {dimension_numbers = #tpu.dot_dimension_numbers<[1], [0], [0], [1], [0, 0, 1, 1], [], []>} : vector<2x32xf32>, vector<32x32xf32>, vector<2x32xf32> -> vector<2x32xf32>
    %c0_88 = arith.constant 0 : index
    %c0_89 = arith.constant 0 : index
    %c0_90 = arith.constant 0 : index
    %128 = vector.load %arg23[%c0_88, %c0_89, %c0_90] : memref<2x1x32xf32, #tpu.memory_space<vmem>>, vector<1x1x32xf32>
    %129 = vector.shape_cast %128 : vector<1x1x32xf32> to vector<1x32xf32>
    %130 = vector.broadcast %129 : vector<1x32xf32> to vector<2x32xf32>
    %131 = arith.addf %127, %130 : vector<2x32xf32>
    %c0_91 = arith.constant 0 : index
    %c0_92 = arith.constant 0 : index
    %c0_93 = arith.constant 0 : index
    %132 = vector.load %arg24[%c0_91, %c0_92, %c0_93] : memref<2x32x16xf32, #tpu.memory_space<vmem>>, vector<1x32x16xf32>
    %133 = vector.shape_cast %132 : vector<1x32x16xf32> to vector<32x16xf32>
    %cst_94 = arith.constant dense<0.000000e+00> : vector<2x16xf32>
    %134 = tpu.matmul %131, %133, %cst_94 {dimension_numbers = #tpu.dot_dimension_numbers<[1], [0], [0], [1], [0, 0, 1, 1], [], []>} : vector<2x32xf32>, vector<32x16xf32>, vector<2x16xf32> -> vector<2x16xf32>
    %c0_95 = arith.constant 0 : index
    %c0_96 = arith.constant 0 : index
    %c0_97 = arith.constant 0 : index
    %135 = vector.load %arg25[%c0_95, %c0_96, %c0_97] : memref<2x1x16xf32, #tpu.memory_space<vmem>>, vector<1x1x16xf32>
    %136 = vector.shape_cast %135 : vector<1x1x16xf32> to vector<1x16xf32>
    %137 = vector.broadcast %10 : vector<2x1xf32> to vector<2x16xf32>
    %138 = vector.broadcast %136 : vector<1x16xf32> to vector<2x16xf32>
    %139 = arith.mulf %137, %138 : vector<2x16xf32>
    %140 = arith.addf %134, %139 : vector<2x16xf32>
    %c0_98 = arith.constant 0 : index
    %c0_99 = arith.constant 0 : index
    %c0_100 = arith.constant 0 : index
    %141 = vector.load %arg26[%c0_98, %c0_99, %c0_100] : memref<2x1x16xf32, #tpu.memory_space<vmem>>, vector<1x1x16xf32>
    %142 = vector.shape_cast %141 : vector<1x1x16xf32> to vector<1x16xf32>
    %143 = vector.broadcast %142 : vector<1x16xf32> to vector<2x16xf32>
    %144 = arith.addf %140, %143 : vector<2x16xf32>
    %cst_101 = arith.constant 0.000000e+00 : f32
    %145 = vector.broadcast %cst_101 : f32 to vector<2x16xf32>
    %146 = arith.cmpf oge, %144, %145 : vector<2x16xf32>
    %cst_102 = arith.constant 0.00999999977 : f32
    %147 = vector.broadcast %cst_102 : f32 to vector<2x16xf32>
    %148 = arith.mulf %147, %144 : vector<2x16xf32>
    %149 = arith.select %146, %144, %148 : vector<2x16xi1>, vector<2x16xf32>
    %c0_103 = arith.constant 0 : index
    %c0_104 = arith.constant 0 : index
    %c0_105 = arith.constant 0 : index
    %150 = vector.load %arg28[%c0_103, %c0_104, %c0_105] : memref<2x16x16xf32, #tpu.memory_space<vmem>>, vector<1x16x16xf32>
    %151 = vector.shape_cast %150 : vector<1x16x16xf32> to vector<16x16xf32>
    %cst_106 = arith.constant dense<0.000000e+00> : vector<2x16xf32>
    %152 = tpu.matmul %149, %151, %cst_106 {dimension_numbers = #tpu.dot_dimension_numbers<[1], [0], [0], [1], [0, 0, 1, 1], [], []>} : vector<2x16xf32>, vector<16x16xf32>, vector<2x16xf32> -> vector<2x16xf32>
    %cst_107 = arith.constant dense<0.000000e+00> : vector<16x16xf32>
    %153 = tpu.matmul %3, %152, %cst_107 {dimension_numbers = #tpu.dot_dimension_numbers<[1], [0], [0], [1], [0, 0, 1, 1], [], []>} : vector<16x2xf32>, vector<2x16xf32>, vector<16x16xf32> -> vector<16x16xf32>
    %c0_108 = arith.constant 0 : index
    %c0_109 = arith.constant 0 : index
    %c0_110 = arith.constant 0 : index
    %154 = vector.load %arg27[%c0_108, %c0_109, %c0_110] : memref<2x32x16xf32, #tpu.memory_space<vmem>>, vector<1x32x16xf32>
    %155 = vector.shape_cast %154 : vector<1x32x16xf32> to vector<32x16xf32>
    %cst_111 = arith.constant dense<0.000000e+00> : vector<16x16xf32>
    %156 = tpu.matmul %50, %155, %cst_111 {dimension_numbers = #tpu.dot_dimension_numbers<[1], [0], [0], [1], [0, 0, 1, 1], [], []>} : vector<16x32xf32>, vector<32x16xf32>, vector<16x16xf32> -> vector<16x16xf32>
    %157 = arith.addf %156, %153 : vector<16x16xf32>
    %c0_112 = arith.constant 0 : index
    %c0_113 = arith.constant 0 : index
    %c0_114 = arith.constant 0 : index
    %158 = vector.load %arg29[%c0_112, %c0_113, %c0_114] : memref<2x1x16xf32, #tpu.memory_space<vmem>>, vector<1x1x16xf32>
    %159 = vector.shape_cast %158 : vector<1x1x16xf32> to vector<1x16xf32>
    %160 = vector.broadcast %159 : vector<1x16xf32> to vector<16x16xf32>
    %161 = arith.addf %157, %160 : vector<16x16xf32>
    %cst_115 = arith.constant 0.000000e+00 : f32
    %162 = vector.broadcast %cst_115 : f32 to vector<16x16xf32>
    %163 = arith.cmpf oge, %161, %162 : vector<16x16xf32>
    %cst_116 = arith.constant 0.00999999977 : f32
    %164 = vector.broadcast %cst_116 : f32 to vector<16x16xf32>
    %165 = arith.mulf %164, %161 : vector<16x16xf32>
    %166 = arith.select %163, %161, %165 : vector<16x16xi1>, vector<16x16xf32>
    %167 = arith.addf %149, %38 : vector<2x16xf32>
    %cst_117 = arith.constant 0.000000e+00 : f32
    %168 = vector.broadcast %cst_117 : f32 to vector<2x16xf32>
    %169 = arith.cmpf oge, %167, %168 : vector<2x16xf32>
    %cst_118 = arith.constant 0.00999999977 : f32
    %170 = vector.broadcast %cst_118 : f32 to vector<2x16xf32>
    %171 = arith.mulf %170, %167 : vector<2x16xf32>
    %172 = arith.select %169, %167, %171 : vector<2x16xi1>, vector<2x16xf32>
    %c1 = arith.constant 1 : index
    %c0_119 = arith.constant 0 : index
    %c0_120 = arith.constant 0 : index
    %173 = vector.load %arg12[%c1, %c0_119, %c0_120] : memref<2x16x32xf32, #tpu.memory_space<vmem>>, vector<1x16x32xf32>
    %174 = vector.shape_cast %173 : vector<1x16x32xf32> to vector<16x32xf32>
    %c1_121 = arith.constant 1 : index
    %c0_122 = arith.constant 0 : index
    %c0_123 = arith.constant 0 : index
    %175 = vector.load %arg13[%c1_121, %c0_122, %c0_123] : memref<2x1x32xf32, #tpu.memory_space<vmem>>, vector<1x1x32xf32>
    %176 = vector.shape_cast %175 : vector<1x1x32xf32> to vector<1x32xf32>
    %cst_124 = arith.constant dense<0.000000e+00> : vector<16x32xf32>
    %177 = tpu.matmul %166, %174, %cst_124 {dimension_numbers = #tpu.dot_dimension_numbers<[1], [0], [0], [1], [0, 0, 1, 1], [], []>} : vector<16x16xf32>, vector<16x32xf32>, vector<16x32xf32> -> vector<16x32xf32>
    %178 = vector.broadcast %176 : vector<1x32xf32> to vector<16x32xf32>
    %179 = arith.addf %177, %178 : vector<16x32xf32>
    %cst_125 = arith.constant 0.000000e+00 : f32
    %180 = vector.broadcast %cst_125 : f32 to vector<16x32xf32>
    %181 = arith.cmpf oge, %179, %180 : vector<16x32xf32>
    %cst_126 = arith.constant 0.00999999977 : f32
    %182 = vector.broadcast %cst_126 : f32 to vector<16x32xf32>
    %183 = arith.mulf %182, %179 : vector<16x32xf32>
    %184 = arith.select %181, %179, %183 : vector<16x32xi1>, vector<16x32xf32>
    %cst_127 = arith.constant dense<0.000000e+00> : vector<2x32xf32>
    %185 = tpu.matmul %172, %174, %cst_127 {dimension_numbers = #tpu.dot_dimension_numbers<[1], [0], [0], [1], [0, 0, 1, 1], [], []>} : vector<2x16xf32>, vector<16x32xf32>, vector<2x32xf32> -> vector<2x32xf32>
    %186 = vector.broadcast %176 : vector<1x32xf32> to vector<2x32xf32>
    %187 = arith.addf %185, %186 : vector<2x32xf32>
    %c1_128 = arith.constant 1 : index
    %c0_129 = arith.constant 0 : index
    %c0_130 = arith.constant 0 : index
    %188 = vector.load %arg14[%c1_128, %c0_129, %c0_130] : memref<2x1x32xf32, #tpu.memory_space<vmem>>, vector<1x1x32xf32>
    %189 = vector.shape_cast %188 : vector<1x1x32xf32> to vector<1x32xf32>
    %c1_131 = arith.constant 1 : index
    %c0_132 = arith.constant 0 : index
    %c0_133 = arith.constant 0 : index
    %190 = vector.load %arg15[%c1_131, %c0_132, %c0_133] : memref<2x1x32xf32, #tpu.memory_space<vmem>>, vector<1x1x32xf32>
    %191 = vector.shape_cast %190 : vector<1x1x32xf32> to vector<1x32xf32>
    %cst_134 = arith.constant dense<0.000000e+00> : vector<2xf32>
    %192 = vector.multi_reduction <add>, %187, %cst_134 [1] : vector<2x32xf32> to vector<2xf32>
    %193 = vector.shape_cast %192 : vector<2xf32> to vector<2x1xf32>
    %cst_135 = arith.constant 3.200000e+01 : f32
    %194 = vector.broadcast %cst_135 : f32 to vector<2x1xf32>
    %195 = arith.divf %193, %194 : vector<2x1xf32>
    %196 = vector.broadcast %195 : vector<2x1xf32> to vector<2x32xf32>
    %197 = arith.subf %187, %196 : vector<2x32xf32>
    %198 = arith.mulf %197, %197 : vector<2x32xf32>
    %cst_136 = arith.constant dense<0.000000e+00> : vector<2xf32>
    %199 = vector.multi_reduction <add>, %198, %cst_136 [1] : vector<2x32xf32> to vector<2xf32>
    %200 = vector.shape_cast %199 : vector<2xf32> to vector<2x1xf32>
    %cst_137 = arith.constant 3.200000e+01 : f32
    %201 = vector.broadcast %cst_137 : f32 to vector<2x1xf32>
    %202 = arith.divf %200, %201 : vector<2x1xf32>
    %203 = vector.broadcast %195 : vector<2x1xf32> to vector<2x32xf32>
    %204 = arith.subf %187, %203 : vector<2x32xf32>
    %cst_138 = arith.constant 9.99999974E-6 : f32
    %205 = vector.broadcast %cst_138 : f32 to vector<2x1xf32>
    %206 = arith.addf %202, %205 : vector<2x1xf32>
    %207 = math.rsqrt %206 : vector<2x1xf32>
    %208 = vector.broadcast %207 : vector<2x1xf32> to vector<2x32xf32>
    %209 = arith.mulf %204, %208 : vector<2x32xf32>
    %210 = vector.broadcast %189 : vector<1x32xf32> to vector<2x32xf32>
    %211 = arith.mulf %209, %210 : vector<2x32xf32>
    %212 = vector.broadcast %191 : vector<1x32xf32> to vector<2x32xf32>
    %213 = arith.addf %211, %212 : vector<2x32xf32>
    %cst_139 = arith.constant 0.000000e+00 : f32
    %214 = vector.broadcast %cst_139 : f32 to vector<2x32xf32>
    %215 = arith.cmpf oge, %213, %214 : vector<2x32xf32>
    %cst_140 = arith.constant 0.00999999977 : f32
    %216 = vector.broadcast %cst_140 : f32 to vector<2x32xf32>
    %217 = arith.mulf %216, %213 : vector<2x32xf32>
    %218 = arith.select %215, %213, %217 : vector<2x32xi1>, vector<2x32xf32>
    %c1_141 = arith.constant 1 : index
    %c0_142 = arith.constant 0 : index
    %c0_143 = arith.constant 0 : index
    %219 = vector.load %arg16[%c1_141, %c0_142, %c0_143] : memref<2x32x32xf32, #tpu.memory_space<vmem>>, vector<1x32x32xf32>
    %220 = vector.shape_cast %219 : vector<1x32x32xf32> to vector<32x32xf32>
    %cst_144 = arith.constant dense<0.000000e+00> : vector<2x32xf32>
    %221 = tpu.matmul %218, %220, %cst_144 {dimension_numbers = #tpu.dot_dimension_numbers<[1], [0], [0], [1], [0, 0, 1, 1], [], []>} : vector<2x32xf32>, vector<32x32xf32>, vector<2x32xf32> -> vector<2x32xf32>
    %c1_145 = arith.constant 1 : index
    %c0_146 = arith.constant 0 : index
    %c0_147 = arith.constant 0 : index
    %222 = vector.load %arg17[%c1_145, %c0_146, %c0_147] : memref<2x1x32xf32, #tpu.memory_space<vmem>>, vector<1x1x32xf32>
    %223 = vector.shape_cast %222 : vector<1x1x32xf32> to vector<1x32xf32>
    %224 = vector.broadcast %223 : vector<1x32xf32> to vector<2x32xf32>
    %225 = arith.addf %221, %224 : vector<2x32xf32>
    %c1_148 = arith.constant 1 : index
    %c0_149 = arith.constant 0 : index
    %c0_150 = arith.constant 0 : index
    %226 = vector.load %arg18[%c1_148, %c0_149, %c0_150] : memref<2x32x32xf32, #tpu.memory_space<vmem>>, vector<1x32x32xf32>
    %227 = vector.shape_cast %226 : vector<1x32x32xf32> to vector<32x32xf32>
    %cst_151 = arith.constant dense<0.000000e+00> : vector<16x32xf32>
    %228 = tpu.matmul %184, %227, %cst_151 {dimension_numbers = #tpu.dot_dimension_numbers<[1], [0], [0], [1], [0, 0, 1, 1], [], []>} : vector<16x32xf32>, vector<32x32xf32>, vector<16x32xf32> -> vector<16x32xf32>
    %c1_152 = arith.constant 1 : index
    %c0_153 = arith.constant 0 : index
    %c0_154 = arith.constant 0 : index
    %229 = vector.load %arg19[%c1_152, %c0_153, %c0_154] : memref<2x1x32xf32, #tpu.memory_space<vmem>>, vector<1x1x32xf32>
    %230 = vector.shape_cast %229 : vector<1x1x32xf32> to vector<1x32xf32>
    %231 = vector.broadcast %230 : vector<1x32xf32> to vector<16x32xf32>
    %232 = arith.addf %228, %231 : vector<16x32xf32>
    %c1_155 = arith.constant 1 : index
    %c0_156 = arith.constant 0 : index
    %c0_157 = arith.constant 0 : index
    %233 = vector.load %arg20[%c1_155, %c0_156, %c0_157] : memref<2x32x32xf32, #tpu.memory_space<vmem>>, vector<1x32x32xf32>
    %234 = vector.shape_cast %233 : vector<1x32x32xf32> to vector<32x32xf32>
    %cst_158 = arith.constant dense<0.000000e+00> : vector<16x32xf32>
    %235 = tpu.matmul %184, %234, %cst_158 {dimension_numbers = #tpu.dot_dimension_numbers<[1], [0], [0], [1], [0, 0, 1, 1], [], []>} : vector<16x32xf32>, vector<32x32xf32>, vector<16x32xf32> -> vector<16x32xf32>
    %c1_159 = arith.constant 1 : index
    %c0_160 = arith.constant 0 : index
    %c0_161 = arith.constant 0 : index
    %236 = vector.load %arg21[%c1_159, %c0_160, %c0_161] : memref<2x1x32xf32, #tpu.memory_space<vmem>>, vector<1x1x32xf32>
    %237 = vector.shape_cast %236 : vector<1x1x32xf32> to vector<1x32xf32>
    %238 = vector.broadcast %237 : vector<1x32xf32> to vector<16x32xf32>
    %239 = arith.addf %235, %238 : vector<16x32xf32>
    %cst_162 = arith.constant dense<0.000000e+00> : vector<16x32xf32>
    %240 = tpu.matmul %3, %225, %cst_162 {dimension_numbers = #tpu.dot_dimension_numbers<[1], [0], [0], [1], [0, 0, 1, 1], [], []>} : vector<16x2xf32>, vector<2x32xf32>, vector<16x32xf32> -> vector<16x32xf32>
    %241 = arith.mulf %240, %232 : vector<16x32xf32>
    %cst_163 = arith.constant dense<0.000000e+00> : vector<16x2xf32>
    %242 = tpu.matmul %241, %4, %cst_163 {dimension_numbers = #tpu.dot_dimension_numbers<[1], [0], [0], [1], [0, 0, 1, 1], [], []>} : vector<16x32xf32>, vector<32x2xf32>, vector<16x2xf32> -> vector<16x2xf32>
    %cst_164 = arith.constant 2.500000e-01 : f32
    %243 = vector.broadcast %cst_164 : f32 to vector<16x2xf32>
    %244 = arith.mulf %242, %243 : vector<16x2xf32>
    %245 = vector.broadcast %7 : vector<16x1xf32> to vector<16x2xf32>
    %246 = arith.addf %244, %245 : vector<16x2xf32>
    %247 = vector.shape_cast %246 : vector<16x2xf32> to vector<2x8x2xf32>
    %cst_165 = arith.constant dense<0xFF800000> : vector<2x2xf32>
    %248 = vector.multi_reduction <maximumf>, %247, %cst_165 [1] : vector<2x8x2xf32> to vector<2x2xf32>
    %cst_166 = arith.constant dense<0.000000e+00> : vector<16x2xf32>
    %249 = tpu.matmul %3, %248, %cst_166 {dimension_numbers = #tpu.dot_dimension_numbers<[1], [0], [0], [1], [0, 0, 1, 1], [], []>} : vector<16x2xf32>, vector<2x2xf32>, vector<16x2xf32> -> vector<16x2xf32>
    %250 = arith.subf %246, %249 : vector<16x2xf32>
    %251 = math.exp %250 : vector<16x2xf32>
    %cst_167 = arith.constant dense<0.000000e+00> : vector<2x2xf32>
    %252 = tpu.matmul %2, %251, %cst_167 {dimension_numbers = #tpu.dot_dimension_numbers<[1], [0], [0], [1], [0, 0, 1, 1], [], []>} : vector<2x16xf32>, vector<16x2xf32>, vector<2x2xf32> -> vector<2x2xf32>
    %253 = tpu.reciprocal %252 {approx = true} : vector<2x2xf32> -> vector<2x2xf32>
    %cst_168 = arith.constant dense<0.000000e+00> : vector<16x2xf32>
    %254 = tpu.matmul %3, %253, %cst_168 {dimension_numbers = #tpu.dot_dimension_numbers<[1], [0], [0], [1], [0, 0, 1, 1], [], []>} : vector<16x2xf32>, vector<2x2xf32>, vector<16x2xf32> -> vector<16x2xf32>
    %255 = arith.mulf %251, %254 : vector<16x2xf32>
    %cst_169 = arith.constant dense<0.000000e+00> : vector<16x32xf32>
    %256 = tpu.matmul %255, %5, %cst_169 {dimension_numbers = #tpu.dot_dimension_numbers<[1], [0], [0], [1], [0, 0, 1, 1], [], []>} : vector<16x2xf32>, vector<2x32xf32>, vector<16x32xf32> -> vector<16x32xf32>
    %257 = arith.mulf %256, %239 : vector<16x32xf32>
    %cst_170 = arith.constant dense<0.000000e+00> : vector<2x32xf32>
    %258 = tpu.matmul %2, %257, %cst_170 {dimension_numbers = #tpu.dot_dimension_numbers<[1], [0], [0], [1], [0, 0, 1, 1], [], []>} : vector<2x16xf32>, vector<16x32xf32>, vector<2x32xf32> -> vector<2x32xf32>
    %c1_171 = arith.constant 1 : index
    %c0_172 = arith.constant 0 : index
    %c0_173 = arith.constant 0 : index
    %259 = vector.load %arg22[%c1_171, %c0_172, %c0_173] : memref<2x32x32xf32, #tpu.memory_space<vmem>>, vector<1x32x32xf32>
    %260 = vector.shape_cast %259 : vector<1x32x32xf32> to vector<32x32xf32>
    %cst_174 = arith.constant dense<0.000000e+00> : vector<2x32xf32>
    %261 = tpu.matmul %258, %260, %cst_174 {dimension_numbers = #tpu.dot_dimension_numbers<[1], [0], [0], [1], [0, 0, 1, 1], [], []>} : vector<2x32xf32>, vector<32x32xf32>, vector<2x32xf32> -> vector<2x32xf32>
    %c1_175 = arith.constant 1 : index
    %c0_176 = arith.constant 0 : index
    %c0_177 = arith.constant 0 : index
    %262 = vector.load %arg23[%c1_175, %c0_176, %c0_177] : memref<2x1x32xf32, #tpu.memory_space<vmem>>, vector<1x1x32xf32>
    %263 = vector.shape_cast %262 : vector<1x1x32xf32> to vector<1x32xf32>
    %264 = vector.broadcast %263 : vector<1x32xf32> to vector<2x32xf32>
    %265 = arith.addf %261, %264 : vector<2x32xf32>
    %c1_178 = arith.constant 1 : index
    %c0_179 = arith.constant 0 : index
    %c0_180 = arith.constant 0 : index
    %266 = vector.load %arg24[%c1_178, %c0_179, %c0_180] : memref<2x32x16xf32, #tpu.memory_space<vmem>>, vector<1x32x16xf32>
    %267 = vector.shape_cast %266 : vector<1x32x16xf32> to vector<32x16xf32>
    %cst_181 = arith.constant dense<0.000000e+00> : vector<2x16xf32>
    %268 = tpu.matmul %265, %267, %cst_181 {dimension_numbers = #tpu.dot_dimension_numbers<[1], [0], [0], [1], [0, 0, 1, 1], [], []>} : vector<2x32xf32>, vector<32x16xf32>, vector<2x16xf32> -> vector<2x16xf32>
    %c1_182 = arith.constant 1 : index
    %c0_183 = arith.constant 0 : index
    %c0_184 = arith.constant 0 : index
    %269 = vector.load %arg25[%c1_182, %c0_183, %c0_184] : memref<2x1x16xf32, #tpu.memory_space<vmem>>, vector<1x1x16xf32>
    %270 = vector.shape_cast %269 : vector<1x1x16xf32> to vector<1x16xf32>
    %271 = vector.broadcast %10 : vector<2x1xf32> to vector<2x16xf32>
    %272 = vector.broadcast %270 : vector<1x16xf32> to vector<2x16xf32>
    %273 = arith.mulf %271, %272 : vector<2x16xf32>
    %274 = arith.addf %268, %273 : vector<2x16xf32>
    %c1_185 = arith.constant 1 : index
    %c0_186 = arith.constant 0 : index
    %c0_187 = arith.constant 0 : index
    %275 = vector.load %arg26[%c1_185, %c0_186, %c0_187] : memref<2x1x16xf32, #tpu.memory_space<vmem>>, vector<1x1x16xf32>
    %276 = vector.shape_cast %275 : vector<1x1x16xf32> to vector<1x16xf32>
    %277 = vector.broadcast %276 : vector<1x16xf32> to vector<2x16xf32>
    %278 = arith.addf %274, %277 : vector<2x16xf32>
    %cst_188 = arith.constant 0.000000e+00 : f32
    %279 = vector.broadcast %cst_188 : f32 to vector<2x16xf32>
    %280 = arith.cmpf oge, %278, %279 : vector<2x16xf32>
    %cst_189 = arith.constant 0.00999999977 : f32
    %281 = vector.broadcast %cst_189 : f32 to vector<2x16xf32>
    %282 = arith.mulf %281, %278 : vector<2x16xf32>
    %283 = arith.select %280, %278, %282 : vector<2x16xi1>, vector<2x16xf32>
    %284 = arith.addf %283, %172 : vector<2x16xf32>
    %c0_190 = arith.constant 0 : index
    %c0_191 = arith.constant 0 : index
    %285 = vector.load %arg36[%c0_190, %c0_191] : memref<2x16xf32, #tpu.memory_space<vmem>>, vector<2x16xf32>
    tpu.vector_store %arg36[%c0_190, %c0_191], %284 {strides = array<i32>} : memref<2x16xf32, #tpu.memory_space<vmem>>, vector<2x16xf32>,
    %cst_192 = arith.constant 0.000000e+00 : f32
    %286 = vector.broadcast %cst_192 : f32 to vector<2x16xf32>
    %287 = arith.cmpf oge, %284, %286 : vector<2x16xf32>
    %cst_193 = arith.constant 0.00999999977 : f32
    %288 = vector.broadcast %cst_193 : f32 to vector<2x16xf32>
    %289 = arith.mulf %288, %284 : vector<2x16xf32>
    %290 = arith.select %287, %284, %289 : vector<2x16xi1>, vector<2x16xf32>
    %c0_194 = arith.constant 0 : index
    %c0_195 = arith.constant 0 : index
    %291 = vector.load %arg30[%c0_194, %c0_195] : memref<16x32xf32, #tpu.memory_space<vmem>>, vector<16x32xf32>
    %cst_196 = arith.constant dense<0.000000e+00> : vector<2x32xf32>
    %292 = tpu.matmul %290, %291, %cst_196 {dimension_numbers = #tpu.dot_dimension_numbers<[1], [0], [0], [1], [0, 0, 1, 1], [], []>} : vector<2x16xf32>, vector<16x32xf32>, vector<2x32xf32> -> vector<2x32xf32>
    %c0_197 = arith.constant 0 : index
    %c0_198 = arith.constant 0 : index
    %293 = vector.load %arg31[%c0_197, %c0_198] : memref<1x32xf32, #tpu.memory_space<vmem>>, vector<1x32xf32>
    %294 = vector.broadcast %293 : vector<1x32xf32> to vector<2x32xf32>
    %295 = arith.addf %292, %294 : vector<2x32xf32>
    %cst_199 = arith.constant 0.000000e+00 : f32
    %296 = vector.broadcast %cst_199 : f32 to vector<2x32xf32>
    %297 = arith.cmpf oge, %295, %296 : vector<2x32xf32>
    %cst_200 = arith.constant 0.00999999977 : f32
    %298 = vector.broadcast %cst_200 : f32 to vector<2x32xf32>
    %299 = arith.mulf %298, %295 : vector<2x32xf32>
    %300 = arith.select %297, %295, %299 : vector<2x32xi1>, vector<2x32xf32>
    %c0_201 = arith.constant 0 : index
    %c0_202 = arith.constant 0 : index
    %301 = vector.load %arg32[%c0_201, %c0_202] : memref<32x16xf32, #tpu.memory_space<vmem>>, vector<32x16xf32>
    %cst_203 = arith.constant dense<0.000000e+00> : vector<2x16xf32>
    %302 = tpu.matmul %300, %301, %cst_203 {dimension_numbers = #tpu.dot_dimension_numbers<[1], [0], [0], [1], [0, 0, 1, 1], [], []>} : vector<2x32xf32>, vector<32x16xf32>, vector<2x16xf32> -> vector<2x16xf32>
    %c0_204 = arith.constant 0 : index
    %c0_205 = arith.constant 0 : index
    %303 = vector.load %arg33[%c0_204, %c0_205] : memref<1x16xf32, #tpu.memory_space<vmem>>, vector<1x16xf32>
    %304 = vector.broadcast %303 : vector<1x16xf32> to vector<2x16xf32>
    %305 = arith.addf %302, %304 : vector<2x16xf32>
    %c0_206 = arith.constant 0 : index
    %c0_207 = arith.constant 0 : index
    %306 = vector.load %arg34[%c0_206, %c0_207] : memref<1x16xf32, #tpu.memory_space<vmem>>, vector<1x16xf32>
    %c0_208 = arith.constant 0 : index
    %c0_209 = arith.constant 0 : index
    %307 = vector.load %arg35[%c0_208, %c0_209] : memref<1x16xf32, #tpu.memory_space<vmem>>, vector<1x16xf32>
    %cst_210 = arith.constant dense<0.000000e+00> : vector<2xf32>
    %308 = vector.multi_reduction <add>, %305, %cst_210 [1] : vector<2x16xf32> to vector<2xf32>
    %309 = vector.shape_cast %308 : vector<2xf32> to vector<2x1xf32>
    %cst_211 = arith.constant 1.600000e+01 : f32
    %310 = vector.broadcast %cst_211 : f32 to vector<2x1xf32>
    %311 = arith.divf %309, %310 : vector<2x1xf32>
    %312 = vector.broadcast %311 : vector<2x1xf32> to vector<2x16xf32>
    %313 = arith.subf %305, %312 : vector<2x16xf32>
    %314 = arith.mulf %313, %313 : vector<2x16xf32>
    %cst_212 = arith.constant dense<0.000000e+00> : vector<2xf32>
    %315 = vector.multi_reduction <add>, %314, %cst_212 [1] : vector<2x16xf32> to vector<2xf32>
    %316 = vector.shape_cast %315 : vector<2xf32> to vector<2x1xf32>
    %cst_213 = arith.constant 1.600000e+01 : f32
    %317 = vector.broadcast %cst_213 : f32 to vector<2x1xf32>
    %318 = arith.divf %316, %317 : vector<2x1xf32>
    %319 = vector.broadcast %311 : vector<2x1xf32> to vector<2x16xf32>
    %320 = arith.subf %305, %319 : vector<2x16xf32>
    %cst_214 = arith.constant 9.99999974E-6 : f32
    %321 = vector.broadcast %cst_214 : f32 to vector<2x1xf32>
    %322 = arith.addf %318, %321 : vector<2x1xf32>
    %323 = math.rsqrt %322 : vector<2x1xf32>
    %324 = vector.broadcast %323 : vector<2x1xf32> to vector<2x16xf32>
    %325 = arith.mulf %320, %324 : vector<2x16xf32>
    %326 = vector.broadcast %306 : vector<1x16xf32> to vector<2x16xf32>
    %327 = arith.mulf %325, %326 : vector<2x16xf32>
    %328 = vector.broadcast %307 : vector<1x16xf32> to vector<2x16xf32>
    %329 = arith.addf %327, %328 : vector<2x16xf32>
    %cst_215 = arith.constant 0.000000e+00 : f32
    %330 = vector.broadcast %cst_215 : f32 to vector<2x16xf32>
    %331 = arith.cmpf oge, %329, %330 : vector<2x16xf32>
    %cst_216 = arith.constant 0.00999999977 : f32
    %332 = vector.broadcast %cst_216 : f32 to vector<2x16xf32>
    %333 = arith.mulf %332, %329 : vector<2x16xf32>
    %334 = arith.select %331, %329, %333 : vector<2x16xi1>, vector<2x16xf32>
    %c0_217 = arith.constant 0 : index
    %c0_218 = arith.constant 0 : index
    %335 = vector.load %arg37[%c0_217, %c0_218] : memref<2x16xf32, #tpu.memory_space<vmem>>, vector<2x16xf32>
    tpu.vector_store %arg37[%c0_217, %c0_218], %334 {strides = array<i32>} : memref<2x16xf32, #tpu.memory_space<vmem>>, vector<2x16xf32>,
    return
  }
  func.func @transform_0(%arg0: i32) -> (i32, i32) {
    %c0_i32 = arith.constant 0 : i32
    %c0_i32_0 = arith.constant 0 : i32
    return %arg0, %c0_i32 : i32, i32
  }
  func.func @transform_1(%arg0: i32) -> (i32, i32) {
    %c0_i32 = arith.constant 0 : i32
    %c0_i32_0 = arith.constant 0 : i32
    return %arg0, %c0_i32 : i32, i32
  }
  func.func @transform_2(%arg0: i32) -> (i32, i32) {
    %c0_i32 = arith.constant 0 : i32
    %c0_i32_0 = arith.constant 0 : i32
    %c0_i32_1 = arith.constant 0 : i32
    return %c0_i32, %c0_i32_0 : i32, i32
  }
  func.func @transform_3(%arg0: i32) -> (i32, i32) {
    %c0_i32 = arith.constant 0 : i32
    %c0_i32_0 = arith.constant 0 : i32
    %c0_i32_1 = arith.constant 0 : i32
    return %c0_i32, %c0_i32_0 : i32, i32
  }
  func.func @transform_4(%arg0: i32) -> (i32, i32) {
    %c0_i32 = arith.constant 0 : i32
    %c0_i32_0 = arith.constant 0 : i32
    %c0_i32_1 = arith.constant 0 : i32
    return %c0_i32, %c0_i32_0 : i32, i32
  }
  func.func @transform_5(%arg0: i32) -> (i32, i32) {
    %c0_i32 = arith.constant 0 : i32
    %c0_i32_0 = arith.constant 0 : i32
    %c0_i32_1 = arith.constant 0 : i32
    return %c0_i32, %c0_i32_0 : i32, i32
  }
  func.func @transform_6(%arg0: i32) -> (i32, i32) {
    %c0_i32 = arith.constant 0 : i32
    %c0_i32_0 = arith.constant 0 : i32
    %c0_i32_1 = arith.constant 0 : i32
    return %c0_i32, %c0_i32_0 : i32, i32
  }
  func.func @transform_7(%arg0: i32) -> (i32, i32) {
    %c0_i32 = arith.constant 0 : i32
    %c0_i32_0 = arith.constant 0 : i32
    %c0_i32_1 = arith.constant 0 : i32
    return %c0_i32, %c0_i32_0 : i32, i32
  }
  func.func @transform_8(%arg0: i32) -> (i32, i32) {
    %c0_i32 = arith.constant 0 : i32
    %c0_i32_0 = arith.constant 0 : i32
    %c0_i32_1 = arith.constant 0 : i32
    return %c0_i32, %c0_i32_0 : i32, i32
  }
  func.func @transform_9(%arg0: i32) -> (i32, i32) {
    %c0_i32 = arith.constant 0 : i32
    %c0_i32_0 = arith.constant 0 : i32
    %c0_i32_1 = arith.constant 0 : i32
    return %c0_i32, %c0_i32_0 : i32, i32
  }
  func.func @transform_10(%arg0: i32) -> (i32, i32) {
    %c0_i32 = arith.constant 0 : i32
    %c0_i32_0 = arith.constant 0 : i32
    %c0_i32_1 = arith.constant 0 : i32
    return %c0_i32, %c0_i32_0 : i32, i32
  }
  func.func @transform_11(%arg0: i32) -> (i32, i32, i32) {
    %c0_i32 = arith.constant 0 : i32
    %c0_i32_0 = arith.constant 0 : i32
    %c0_i32_1 = arith.constant 0 : i32
    %c0_i32_2 = arith.constant 0 : i32
    return %c0_i32, %c0_i32_0, %c0_i32_1 : i32, i32, i32
  }
  func.func @transform_12(%arg0: i32) -> (i32, i32, i32) {
    %c0_i32 = arith.constant 0 : i32
    %c0_i32_0 = arith.constant 0 : i32
    %c0_i32_1 = arith.constant 0 : i32
    %c0_i32_2 = arith.constant 0 : i32
    return %c0_i32, %c0_i32_0, %c0_i32_1 : i32, i32, i32
  }
  func.func @transform_13(%arg0: i32) -> (i32, i32, i32) {
    %c0_i32 = arith.constant 0 : i32
    %c0_i32_0 = arith.constant 0 : i32
    %c0_i32_1 = arith.constant 0 : i32
    %c0_i32_2 = arith.constant 0 : i32
    return %c0_i32, %c0_i32_0, %c0_i32_1 : i32, i32, i32
  }
  func.func @transform_14(%arg0: i32) -> (i32, i32, i32) {
    %c0_i32 = arith.constant 0 : i32
    %c0_i32_0 = arith.constant 0 : i32
    %c0_i32_1 = arith.constant 0 : i32
    %c0_i32_2 = arith.constant 0 : i32
    return %c0_i32, %c0_i32_0, %c0_i32_1 : i32, i32, i32
  }
  func.func @transform_15(%arg0: i32) -> (i32, i32, i32) {
    %c0_i32 = arith.constant 0 : i32
    %c0_i32_0 = arith.constant 0 : i32
    %c0_i32_1 = arith.constant 0 : i32
    %c0_i32_2 = arith.constant 0 : i32
    return %c0_i32, %c0_i32_0, %c0_i32_1 : i32, i32, i32
  }
  func.func @transform_16(%arg0: i32) -> (i32, i32, i32) {
    %c0_i32 = arith.constant 0 : i32
    %c0_i32_0 = arith.constant 0 : i32
    %c0_i32_1 = arith.constant 0 : i32
    %c0_i32_2 = arith.constant 0 : i32
    return %c0_i32, %c0_i32_0, %c0_i32_1 : i32, i32, i32
  }
  func.func @transform_17(%arg0: i32) -> (i32, i32, i32) {
    %c0_i32 = arith.constant 0 : i32
    %c0_i32_0 = arith.constant 0 : i32
    %c0_i32_1 = arith.constant 0 : i32
    %c0_i32_2 = arith.constant 0 : i32
    return %c0_i32, %c0_i32_0, %c0_i32_1 : i32, i32, i32
  }
  func.func @transform_18(%arg0: i32) -> (i32, i32, i32) {
    %c0_i32 = arith.constant 0 : i32
    %c0_i32_0 = arith.constant 0 : i32
    %c0_i32_1 = arith.constant 0 : i32
    %c0_i32_2 = arith.constant 0 : i32
    return %c0_i32, %c0_i32_0, %c0_i32_1 : i32, i32, i32
  }
  func.func @transform_19(%arg0: i32) -> (i32, i32, i32) {
    %c0_i32 = arith.constant 0 : i32
    %c0_i32_0 = arith.constant 0 : i32
    %c0_i32_1 = arith.constant 0 : i32
    %c0_i32_2 = arith.constant 0 : i32
    return %c0_i32, %c0_i32_0, %c0_i32_1 : i32, i32, i32
  }
  func.func @transform_20(%arg0: i32) -> (i32, i32, i32) {
    %c0_i32 = arith.constant 0 : i32
    %c0_i32_0 = arith.constant 0 : i32
    %c0_i32_1 = arith.constant 0 : i32
    %c0_i32_2 = arith.constant 0 : i32
    return %c0_i32, %c0_i32_0, %c0_i32_1 : i32, i32, i32
  }
  func.func @transform_21(%arg0: i32) -> (i32, i32, i32) {
    %c0_i32 = arith.constant 0 : i32
    %c0_i32_0 = arith.constant 0 : i32
    %c0_i32_1 = arith.constant 0 : i32
    %c0_i32_2 = arith.constant 0 : i32
    return %c0_i32, %c0_i32_0, %c0_i32_1 : i32, i32, i32
  }
  func.func @transform_22(%arg0: i32) -> (i32, i32, i32) {
    %c0_i32 = arith.constant 0 : i32
    %c0_i32_0 = arith.constant 0 : i32
    %c0_i32_1 = arith.constant 0 : i32
    %c0_i32_2 = arith.constant 0 : i32
    return %c0_i32, %c0_i32_0, %c0_i32_1 : i32, i32, i32
  }
  func.func @transform_23(%arg0: i32) -> (i32, i32, i32) {
    %c0_i32 = arith.constant 0 : i32
    %c0_i32_0 = arith.constant 0 : i32
    %c0_i32_1 = arith.constant 0 : i32
    %c0_i32_2 = arith.constant 0 : i32
    return %c0_i32, %c0_i32_0, %c0_i32_1 : i32, i32, i32
  }
  func.func @transform_24(%arg0: i32) -> (i32, i32, i32) {
    %c0_i32 = arith.constant 0 : i32
    %c0_i32_0 = arith.constant 0 : i32
    %c0_i32_1 = arith.constant 0 : i32
    %c0_i32_2 = arith.constant 0 : i32
    return %c0_i32, %c0_i32_0, %c0_i32_1 : i32, i32, i32
  }
  func.func @transform_25(%arg0: i32) -> (i32, i32, i32) {
    %c0_i32 = arith.constant 0 : i32
    %c0_i32_0 = arith.constant 0 : i32
    %c0_i32_1 = arith.constant 0 : i32
    %c0_i32_2 = arith.constant 0 : i32
    return %c0_i32, %c0_i32_0, %c0_i32_1 : i32, i32, i32
  }
  func.func @transform_26(%arg0: i32) -> (i32, i32, i32) {
    %c0_i32 = arith.constant 0 : i32
    %c0_i32_0 = arith.constant 0 : i32
    %c0_i32_1 = arith.constant 0 : i32
    %c0_i32_2 = arith.constant 0 : i32
    return %c0_i32, %c0_i32_0, %c0_i32_1 : i32, i32, i32
  }
  func.func @transform_27(%arg0: i32) -> (i32, i32, i32) {
    %c0_i32 = arith.constant 0 : i32
    %c0_i32_0 = arith.constant 0 : i32
    %c0_i32_1 = arith.constant 0 : i32
    %c0_i32_2 = arith.constant 0 : i32
    return %c0_i32, %c0_i32_0, %c0_i32_1 : i32, i32, i32
  }
  func.func @transform_28(%arg0: i32) -> (i32, i32, i32) {
    %c0_i32 = arith.constant 0 : i32
    %c0_i32_0 = arith.constant 0 : i32
    %c0_i32_1 = arith.constant 0 : i32
    %c0_i32_2 = arith.constant 0 : i32
    return %c0_i32, %c0_i32_0, %c0_i32_1 : i32, i32, i32
  }
  func.func @transform_29(%arg0: i32) -> (i32, i32) {
    %c0_i32 = arith.constant 0 : i32
    %c0_i32_0 = arith.constant 0 : i32
    %c0_i32_1 = arith.constant 0 : i32
    return %c0_i32, %c0_i32_0 : i32, i32
  }
  func.func @transform_30(%arg0: i32) -> (i32, i32) {
    %c0_i32 = arith.constant 0 : i32
    %c0_i32_0 = arith.constant 0 : i32
    %c0_i32_1 = arith.constant 0 : i32
    return %c0_i32, %c0_i32_0 : i32, i32
  }
  func.func @transform_31(%arg0: i32) -> (i32, i32) {
    %c0_i32 = arith.constant 0 : i32
    %c0_i32_0 = arith.constant 0 : i32
    %c0_i32_1 = arith.constant 0 : i32
    return %c0_i32, %c0_i32_0 : i32, i32
  }
  func.func @transform_32(%arg0: i32) -> (i32, i32) {
    %c0_i32 = arith.constant 0 : i32
    %c0_i32_0 = arith.constant 0 : i32
    %c0_i32_1 = arith.constant 0 : i32
    return %c0_i32, %c0_i32_0 : i32, i32
  }
  func.func @transform_33(%arg0: i32) -> (i32, i32) {
    %c0_i32 = arith.constant 0 : i32
    %c0_i32_0 = arith.constant 0 : i32
    %c0_i32_1 = arith.constant 0 : i32
    return %c0_i32, %c0_i32_0 : i32, i32
  }
  func.func @transform_34(%arg0: i32) -> (i32, i32) {
    %c0_i32 = arith.constant 0 : i32
    %c0_i32_0 = arith.constant 0 : i32
    %c0_i32_1 = arith.constant 0 : i32
    return %c0_i32, %c0_i32_0 : i32, i32
  }
  func.func @transform_35(%arg0: i32) -> (i32, i32) {
    %c0_i32 = arith.constant 0 : i32
    %c0_i32_0 = arith.constant 0 : i32
    return %arg0, %c0_i32 : i32, i32
  }
  func.func @transform_36(%arg0: i32) -> (i32, i32) {
    %c0_i32 = arith.constant 0 : i32
    %c0_i32_0 = arith.constant 0 : i32
    return %arg0, %c0_i32 : i32, i32
  }
}

</mosaic_0001>

<llo_original>
// kernel: tpu_custom_call.1
$region0: #{tpu_custom_call.1}
  #allocation0 [shape = 'u32[]', space=smem, size = 0x4, offset = 0x4, fixed_abs, tag = 'smem constant byte address 0x4 - core index']
  #allocation1 [shape = 'u32[144,128]{1,0:T(1,128)}', space=vmem, size = 0x12000, scoped, tag = 'internal scratch']
  %s0 = inlined_call_operand.smem [shape: u32[37], index: -1, kind: input, shape index: {}]
  %s1 = sld [smem:[%s0]]
  %s2 = scalar_lea.smem %s0, 1
  %s3 = sld [smem:[%s2]]
  %s4 = scalar_lea.smem %s0, 2
  %s5 = sld [smem:[%s4]]
  %s6 = scalar_lea.smem %s0, 3
  %s7 = sld [smem:[%s6]]
  %s8 = scalar_lea.smem %s0, 4
  %s9 = sld [smem:[%s8]]
  %s10 = scalar_lea.smem %s0, 5
  %s11 = sld [smem:[%s10]]
  %s12 = scalar_lea.smem %s0, 6
  %s13 = sld [smem:[%s12]]
  %s14 = scalar_lea.smem %s0, 7
  %s15 = sld [smem:[%s14]]
  %s16 = scalar_lea.smem %s0, 8
  %s17 = sld [smem:[%s16]]
  %s18 = scalar_lea.smem %s0, 9
  %s19 = sld [smem:[%s18]]
  %s20 = scalar_lea.smem %s0, 10
  %s21 = sld [smem:[%s20]]
  %s22 = scalar_lea.smem %s0, 11
  %s23 = sld [smem:[%s22]]
  %s24 = scalar_lea.smem %s0, 12
  %s25 = sld [smem:[%s24]]
  %s26 = scalar_lea.smem %s0, 13
  %s27 = sld [smem:[%s26]]
  %s28 = scalar_lea.smem %s0, 14
  %s29 = sld [smem:[%s28]]
  %s30 = scalar_lea.smem %s0, 15
  %s31 = sld [smem:[%s30]]
  %s32 = scalar_lea.smem %s0, 16
  %s33 = sld [smem:[%s32]]
  %s34 = scalar_lea.smem %s0, 17
  %s35 = sld [smem:[%s34]]
  %s36 = scalar_lea.smem %s0, 18
  %s37 = sld [smem:[%s36]]
  %s38 = scalar_lea.smem %s0, 19
  %s39 = sld [smem:[%s38]]
  %s40 = scalar_lea.smem %s0, 20
  %s41 = sld [smem:[%s40]]
  %s42 = scalar_lea.smem %s0, 21
  %s43 = sld [smem:[%s42]]
  %s44 = scalar_lea.smem %s0, 22
  %s45 = sld [smem:[%s44]]
  %s46 = scalar_lea.smem %s0, 23
  %s47 = sld [smem:[%s46]]
  %s48 = scalar_lea.smem %s0, 24
  %s49 = sld [smem:[%s48]]
  %s50 = scalar_lea.smem %s0, 25
  %s51 = sld [smem:[%s50]]
  %s52 = scalar_lea.smem %s0, 26
  %s53 = sld [smem:[%s52]]
  %s54 = scalar_lea.smem %s0, 27
  %s55 = sld [smem:[%s54]]
  %s56 = scalar_lea.smem %s0, 28
  %s57 = sld [smem:[%s56]]
  %s58 = scalar_lea.smem %s0, 29
  %s59 = sld [smem:[%s58]]
  %s60 = scalar_lea.smem %s0, 30
  %s61 = sld [smem:[%s60]]
  %s62 = scalar_lea.smem %s0, 31
  %s63 = sld [smem:[%s62]]
  %s64 = scalar_lea.smem %s0, 32
  %s65 = sld [smem:[%s64]]
  %s66 = scalar_lea.smem %s0, 33
  %s67 = sld [smem:[%s66]]
  %s68 = scalar_lea.smem %s0, 34
  %s69 = sld [smem:[%s68]]
  %s70 = scalar_lea.smem %s0, 35
  %s71 = sld [smem:[%s70]]
  %s72 = scalar_lea.smem %s0, 36
  %s73 = sld [smem:[%s72]]
  %74 = xla_tuple %s71, %s73
  %s75 = sld [smem:[#allocation0]]
  $region222: #{tpu_custom_call.1} parent=0
    _
  %s77 = ssub.s32 1, %s75
  %s78 = scalar_select 0, %s77, %s75
  $region1: #{tpu_custom_call.1} parent=0
    #allocation2 [shape = 'u8[1024]{0}', space=vmem, size = 0x400, scoped, tag = 'input window, operand 2, single buffered']
    #allocation3 [shape = 's32[1]{0}', space=sflag, size = 0x4, scoped, tag = 'scoped memory for tpu_custom_call.1']
    #allocation4 [shape = 's32[1]{0}', space=sflag, size = 0x4, scoped, tag = 'scoped memory for tpu_custom_call.1']
    #allocation5 [shape = 'u8[1024]{0}', space=vmem, size = 0x400, scoped, tag = 'input window, operand 5, single buffered']
    #allocation6 [shape = 's32[1]{0}', space=sflag, size = 0x4, scoped, tag = 'scoped memory for tpu_custom_call.1']
    #allocation7 [shape = 'u8[2048]{0}', space=vmem, size = 0x800, scoped, tag = 'input window, operand 6, single buffered']
    #allocation8 [shape = 'u8[512]{0}', space=vmem, size = 0x400, scoped, tag = 'input window, operand 7, single buffered']
    #allocation9 [shape = 's32[1]{0}', space=sflag, size = 0x4, scoped, tag = 'scoped memory for tpu_custom_call.1']
    #allocation10 [shape = 'u8[8192]{0}', space=vmem, size = 0x2000, scoped, tag = 'input window, operand 8, single buffered']
    #allocation11 [shape = 'u8[512]{0}', space=vmem, size = 0x400, scoped, tag = 'input window, operand 9, single buffered']
    #allocation12 [shape = 's32[1]{0}', space=sflag, size = 0x4, scoped, tag = 'scoped memory for tpu_custom_call.1']
    #allocation13 [shape = 'u8[512]{0}', space=vmem, size = 0x400, scoped, tag = 'input window, operand 10, single buffered']
    #allocation14 [shape = 'u8[16384]{0}', space=vmem, size = 0x4000, scoped, tag = 'input window, operand 11, single buffered']
    #allocation15 [shape = 's32[1]{0}', space=sflag, size = 0x4, scoped, tag = 'scoped memory for tpu_custom_call.1']
    #allocation16 [shape = 'u8[1024]{0}', space=vmem, size = 0x400, scoped, tag = 'input window, operand 12, single buffered']
    #allocation17 [shape = 'u8[1024]{0}', space=vmem, size = 0x400, scoped, tag = 'input window, operand 13, single buffered']
    #allocation18 [shape = 's32[1]{0}', space=sflag, size = 0x4, scoped, tag = 'scoped memory for tpu_custom_call.1']
    #allocation19 [shape = 'u8[1024]{0}', space=vmem, size = 0x400, scoped, tag = 'input window, operand 14, single buffered']
    #allocation20 [shape = 'u8[1024]{0}', space=vmem, size = 0x400, scoped, tag = 'input window, operand 16, single buffered']
    #allocation21 [shape = 's32[1]{0}', space=sflag, size = 0x4, scoped, tag = 'scoped memory for tpu_custom_call.1']
    #allocation22 [shape = 'u8[1024]{0}', space=vmem, size = 0x400, scoped, tag = 'input window, operand 18, single buffered']
    #allocation23 [shape = 'u8[1024]{0}', space=vmem, size = 0x400, scoped, tag = 'input window, operand 20, single buffered']
    #allocation24 [shape = 's32[1]{0}', space=sflag, size = 0x4, scoped, tag = 'scoped memory for tpu_custom_call.1']
    #allocation25 [shape = 'u8[1024]{0}', space=vmem, size = 0x400, scoped, tag = 'input window, operand 22, single buffered']
    #allocation26 [shape = 'u8[8192]{0}', space=vmem, size = 0x2000, scoped, tag = 'input window, operand 29, single buffered']
    #allocation27 [shape = 's32[1]{0}', space=sflag, size = 0x4, scoped, tag = 'scoped memory for tpu_custom_call.1']
    #allocation28 [shape = 'u8[1024]{0}', space=vmem, size = 0x400, scoped, tag = 'output window, operand 0, single buffered']
    #allocation29 [shape = 'u8[1024]{0}', space=vmem, size = 0x400, scoped, tag = 'output window, operand 1, single buffered']
    #allocation30 [shape = 's32[1]{0}', space=sflag, size = 0x4, scoped, tag = 'scoped memory for tpu_custom_call.1']
    %79 = vsyncpa [#allocation3], 0
    %80 = vsyncpa [#allocation6], 0
    %81 = vsyncpa [#allocation9], 0
    %82 = vsyncpa [#allocation12], 0
    %83 = vsyncpa [#allocation15], 0
    %84 = vsyncpa [#allocation18], 0
    %85 = vsyncpa [#allocation21], 0
    %86 = vsyncpa [#allocation24], 0
    %87 = vsyncpa [#allocation27], 0
    %88 = vsyncpa [#allocation4], 0
    %89 = vsyncpa [#allocation30], 0
    // Predicated region
    $region2: #{tpu_custom_call.1} parent=1 // pred_check
      _
    $region3: #{tpu_custom_call.1} parent=1 // pred_check_branch
      %91 = sbr.rel (0) target = $region5
    $region4: #{tpu_custom_call.1} parent=1 // pred_region
      _
    $region5: #{tpu_custom_call.1} parent=1 // pred_fallthru
      _
    // Predicated region
    $region6: #{tpu_custom_call.1} parent=1 // pred_check
      _
    $region7: #{tpu_custom_call.1} parent=1 // pred_check_branch
      %93 = sbr.rel (0) target = $region9
    $region8: #{tpu_custom_call.1} parent=1 // pred_region
      _
    $region9: #{tpu_custom_call.1} parent=1 // pred_fallthru
      _
    // Predicated region
    $region10: #{tpu_custom_call.1} parent=1 // pred_check
      _
    $region11: #{tpu_custom_call.1} parent=1 // pred_check_branch
      %95 = sbr.rel (0) target = $region13
    $region12: #{tpu_custom_call.1} parent=1 // pred_region
      %s97 = ssub.s32 32, 32
      %98 = vsyncadd [#allocation3], %s97
      %s100 = sshll.u32 [#allocation2], 4
      %s101 = int_to_ptr.vmem [resolvable:$true] %s100
      %103 = dma.hbm_to_vmem [thread:$0]  %s5, 32, %s101, [#allocation3]
    $region13: #{tpu_custom_call.1} parent=1 // pred_fallthru
      _
    // Predicated region
    $region14: #{tpu_custom_call.1} parent=1 // pred_check
      _
    $region15: #{tpu_custom_call.1} parent=1 // pred_check_branch
      %105 = sbr.rel (0) target = $region17
    $region16: #{tpu_custom_call.1} parent=1 // pred_region
      _
    $region17: #{tpu_custom_call.1} parent=1 // pred_fallthru
      _
    // Predicated region
    $region18: #{tpu_custom_call.1} parent=1 // pred_check
      _
    $region19: #{tpu_custom_call.1} parent=1 // pred_check_branch
      %107 = sbr.rel (0) target = $region21
    $region20: #{tpu_custom_call.1} parent=1 // pred_region
      _
    $region21: #{tpu_custom_call.1} parent=1 // pred_fallthru
      _
    // Predicated region
    $region22: #{tpu_custom_call.1} parent=1 // pred_check
      _
    $region23: #{tpu_custom_call.1} parent=1 // pred_check_branch
      %109 = sbr.rel (0) target = $region25
    $region24: #{tpu_custom_call.1} parent=1 // pred_region
      %s111 = ssub.s32 32, 32
      %112 = vsyncadd [#allocation6], %s111
      %s114 = sshll.u32 [#allocation5], 4
      %s115 = int_to_ptr.vmem [resolvable:$true] %s114
      %117 = dma.hbm_to_vmem [thread:$0]  %s11, 32, %s115, [#allocation6]
    $region25: #{tpu_custom_call.1} parent=1 // pred_fallthru
      _
    // Predicated region
    $region26: #{tpu_custom_call.1} parent=1 // pred_check
      _
    $region27: #{tpu_custom_call.1} parent=1 // pred_check_branch
      %119 = sbr.rel (0) target = $region29
    $region28: #{tpu_custom_call.1} parent=1 // pred_region
      %s121 = ssub.s32 64, 64
      %122 = vsyncadd [#allocation6], %s121
      %s124 = sshll.u32 [#allocation7], 4
      %s125 = int_to_ptr.vmem [resolvable:$true] %s124
      %127 = dma.hbm_to_vmem [thread:$0]  %s13, 64, %s125, [#allocation6]
    $region29: #{tpu_custom_call.1} parent=1 // pred_fallthru
      _
    // Predicated region
    $region30: #{tpu_custom_call.1} parent=1 // pred_check
      _
    $region31: #{tpu_custom_call.1} parent=1 // pred_check_branch
      %129 = sbr.rel (0) target = $region33
    $region32: #{tpu_custom_call.1} parent=1 // pred_region
      %s131 = ssub.s32 16, 16
      %132 = vsyncadd [#allocation9], %s131
      %s134 = sshll.u32 [#allocation8], 4
      %s135 = int_to_ptr.vmem [resolvable:$true] %s134
      %137 = dma.hbm_to_vmem [thread:$0]  %s15, 16, %s135, [#allocation9]
    $region33: #{tpu_custom_call.1} parent=1 // pred_fallthru
      _
    // Predicated region
    $region34: #{tpu_custom_call.1} parent=1 // pred_check
      _
    $region35: #{tpu_custom_call.1} parent=1 // pred_check_branch
      %139 = sbr.rel (0) target = $region37
    $region36: #{tpu_custom_call.1} parent=1 // pred_region
      %s141 = ssub.s32 256, 256
      %142 = vsyncadd [#allocation9], %s141
      %s143 = sshll.u32 [#allocation10], 4
      %s144 = int_to_ptr.vmem [resolvable:$true] %s143
      %149 = dma.hbm_to_vmem [thread:$0]  %s17, 256, %s144, [#allocation9], 128, 128, 8
    $region37: #{tpu_custom_call.1} parent=1 // pred_fallthru
      _
    // Predicated region
    $region38: #{tpu_custom_call.1} parent=1 // pred_check
      _
    $region39: #{tpu_custom_call.1} parent=1 // pred_check_branch
      %151 = sbr.rel (0) target = $region41
    $region40: #{tpu_custom_call.1} parent=1 // pred_region
      %s153 = ssub.s32 16, 16
      %154 = vsyncadd [#allocation12], %s153
      %s156 = sshll.u32 [#allocation11], 4
      %s157 = int_to_ptr.vmem [resolvable:$true] %s156
      %159 = dma.hbm_to_vmem [thread:$0]  %s19, 16, %s157, [#allocation12]
    $region41: #{tpu_custom_call.1} parent=1 // pred_fallthru
      _
    // Predicated region
    $region42: #{tpu_custom_call.1} parent=1 // pred_check
      _
    $region43: #{tpu_custom_call.1} parent=1 // pred_check_branch
      %161 = sbr.rel (0) target = $region45
    $region44: #{tpu_custom_call.1} parent=1 // pred_region
      %s163 = ssub.s32 16, 16
      %164 = vsyncadd [#allocation12], %s163
      %s166 = sshll.u32 [#allocation13], 4
      %s167 = int_to_ptr.vmem [resolvable:$true] %s166
      %169 = dma.hbm_to_vmem [thread:$0]  %s21, 16, %s167, [#allocation12]
    $region45: #{tpu_custom_call.1} parent=1 // pred_fallthru
      _
    // Predicated region
    $region46: #{tpu_custom_call.1} parent=1 // pred_check
      _
    $region47: #{tpu_custom_call.1} parent=1 // pred_check_branch
      %171 = sbr.rel (0) target = $region49
    $region48: #{tpu_custom_call.1} parent=1 // pred_region
      %s173 = ssub.s32 512, 512
      %174 = vsyncadd [#allocation15], %s173
      %s175 = sshll.u32 [#allocation14], 4
      %s176 = int_to_ptr.vmem [resolvable:$true] %s175
      %181 = dma.hbm_to_vmem [thread:$0]  %s23, 512, %s176, [#allocation15], 128, 128, 8
    $region49: #{tpu_custom_call.1} parent=1 // pred_fallthru
      _
    // Predicated region
    $region50: #{tpu_custom_call.1} parent=1 // pred_check
      _
    $region51: #{tpu_custom_call.1} parent=1 // pred_check_branch
      %183 = sbr.rel (0) target = $region53
    $region52: #{tpu_custom_call.1} parent=1 // pred_region
      %s185 = ssub.s32 32, 32
      %186 = vsyncadd [#allocation15], %s185
      %s187 = sshll.u32 [#allocation16], 4
      %s188 = int_to_ptr.vmem [resolvable:$true] %s187
      %193 = dma.hbm_to_vmem [thread:$0]  %s25, 32, %s188, [#allocation15], 16, 16, 1
    $region53: #{tpu_custom_call.1} parent=1 // pred_fallthru
      _
    // Predicated region
    $region54: #{tpu_custom_call.1} parent=1 // pred_check
      _
    $region55: #{tpu_custom_call.1} parent=1 // pred_check_branch
      %195 = sbr.rel (0) target = $region57
    $region56: #{tpu_custom_call.1} parent=1 // pred_region
      %s197 = ssub.s32 32, 32
      %198 = vsyncadd [#allocation18], %s197
      %s199 = sshll.u32 [#allocation17], 4
      %s200 = int_to_ptr.vmem [resolvable:$true] %s199
      %205 = dma.hbm_to_vmem [thread:$0]  %s27, 32, %s200, [#allocation18], 16, 16, 1
    $region57: #{tpu_custom_call.1} parent=1 // pred_fallthru
      _
    // Predicated region
    $region58: #{tpu_custom_call.1} parent=1 // pred_check
      _
    $region59: #{tpu_custom_call.1} parent=1 // pred_check_branch
      %207 = sbr.rel (0) target = $region61
    $region60: #{tpu_custom_call.1} parent=1 // pred_region
      %s209 = ssub.s32 32, 32
      %210 = vsyncadd [#allocation18], %s209
      %s211 = sshll.u32 [#allocation19], 4
      %s212 = int_to_ptr.vmem [resolvable:$true] %s211
      %217 = dma.hbm_to_vmem [thread:$0]  %s29, 32, %s212, [#allocation18], 16, 16, 1
    $region61: #{tpu_custom_call.1} parent=1 // pred_fallthru
      _
    // Predicated region
    $region62: #{tpu_custom_call.1} parent=1 // pred_check
      _
    $region63: #{tpu_custom_call.1} parent=1 // pred_check_branch
      %219 = sbr.rel (0) target = $region65
    $region64: #{tpu_custom_call.1} parent=1 // pred_region
      _
    $region65: #{tpu_custom_call.1} parent=1 // pred_fallthru
      _
    // Predicated region
    $region66: #{tpu_custom_call.1} parent=1 // pred_check
      _
    $region67: #{tpu_custom_call.1} parent=1 // pred_check_branch
      %221 = sbr.rel (0) target = $region69
    $region68: #{tpu_custom_call.1} parent=1 // pred_region
      %s223 = ssub.s32 32, 32
      %224 = vsyncadd [#allocation21], %s223
      %s225 = sshll.u32 [#allocation20], 4
      %s226 = int_to_ptr.vmem [resolvable:$true] %s225
      %231 = dma.hbm_to_vmem [thread:$0]  %s33, 32, %s226, [#allocation21], 16, 16, 1
    $region69: #{tpu_custom_call.1} parent=1 // pred_fallthru
      _
    // Predicated region
    $region70: #{tpu_custom_call.1} parent=1 // pred_check
      _
    $region71: #{tpu_custom_call.1} parent=1 // pred_check_branch
      %233 = sbr.rel (0) target = $region73
    $region72: #{tpu_custom_call.1} parent=1 // pred_region
      _
    $region73: #{tpu_custom_call.1} parent=1 // pred_fallthru
      _
    // Predicated region
    $region74: #{tpu_custom_call.1} parent=1 // pred_check
      _
    $region75: #{tpu_custom_call.1} parent=1 // pred_check_branch
      %235 = sbr.rel (0) target = $region77
    $region76: #{tpu_custom_call.1} parent=1 // pred_region
      %s237 = ssub.s32 32, 32
      %238 = vsyncadd [#allocation21], %s237
      %s239 = sshll.u32 [#allocation22], 4
      %s240 = int_to_ptr.vmem [resolvable:$true] %s239
      %245 = dma.hbm_to_vmem [thread:$0]  %s37, 32, %s240, [#allocation21], 16, 16, 1
    $region77: #{tpu_custom_call.1} parent=1 // pred_fallthru
      _
    // Predicated region
    $region78: #{tpu_custom_call.1} parent=1 // pred_check
      _
    $region79: #{tpu_custom_call.1} parent=1 // pred_check_branch
      %247 = sbr.rel (0) target = $region81
    $region80: #{tpu_custom_call.1} parent=1 // pred_region
      _
    $region81: #{tpu_custom_call.1} parent=1 // pred_fallthru
      _
    // Predicated region
    $region82: #{tpu_custom_call.1} parent=1 // pred_check
      _
    $region83: #{tpu_custom_call.1} parent=1 // pred_check_branch
      %249 = sbr.rel (0) target = $region85
    $region84: #{tpu_custom_call.1} parent=1 // pred_region
      %s251 = ssub.s32 32, 32
      %252 = vsyncadd [#allocation24], %s251
      %s253 = sshll.u32 [#allocation23], 4
      %s254 = int_to_ptr.vmem [resolvable:$true] %s253
      %259 = dma.hbm_to_vmem [thread:$0]  %s41, 32, %s254, [#allocation24], 16, 16, 1
    $region85: #{tpu_custom_call.1} parent=1 // pred_fallthru
      _
    // Predicated region
    $region86: #{tpu_custom_call.1} parent=1 // pred_check
      _
    $region87: #{tpu_custom_call.1} parent=1 // pred_check_branch
      %261 = sbr.rel (0) target = $region89
    $region88: #{tpu_custom_call.1} parent=1 // pred_region
      _
    $region89: #{tpu_custom_call.1} parent=1 // pred_fallthru
      _
    // Predicated region
    $region90: #{tpu_custom_call.1} parent=1 // pred_check
      _
    $region91: #{tpu_custom_call.1} parent=1 // pred_check_branch
      %263 = sbr.rel (0) target = $region93
    $region92: #{tpu_custom_call.1} parent=1 // pred_region
      %s265 = ssub.s32 32, 32
      %266 = vsyncadd [#allocation24], %s265
      %s267 = sshll.u32 [#allocation25], 4
      %s268 = int_to_ptr.vmem [resolvable:$true] %s267
      %273 = dma.hbm_to_vmem [thread:$0]  %s45, 32, %s268, [#allocation24], 16, 16, 1
    $region93: #{tpu_custom_call.1} parent=1 // pred_fallthru
      _
    // Predicated region
    $region94: #{tpu_custom_call.1} parent=1 // pred_check
      _
    $region95: #{tpu_custom_call.1} parent=1 // pred_check_branch
      %275 = sbr.rel (0) target = $region97
    $region96: #{tpu_custom_call.1} parent=1 // pred_region
      _
    $region97: #{tpu_custom_call.1} parent=1 // pred_fallthru
      _
    // Predicated region
    $region98: #{tpu_custom_call.1} parent=1 // pred_check
      _
    $region99: #{tpu_custom_call.1} parent=1 // pred_check_branch
      %277 = sbr.rel (0) target = $region101
    $region100: #{tpu_custom_call.1} parent=1 // pred_region
      _
    $region101: #{tpu_custom_call.1} parent=1 // pred_fallthru
      _
    // Predicated region
    $region102: #{tpu_custom_call.1} parent=1 // pred_check
      _
    $region103: #{tpu_custom_call.1} parent=1 // pred_check_branch
      %279 = sbr.rel (0) target = $region105
    $region104: #{tpu_custom_call.1} parent=1 // pred_region
      _
    $region105: #{tpu_custom_call.1} parent=1 // pred_fallthru
      _
    // Predicated region
    $region106: #{tpu_custom_call.1} parent=1 // pred_check
      _
    $region107: #{tpu_custom_call.1} parent=1 // pred_check_branch
      %281 = sbr.rel (0) target = $region109
    $region108: #{tpu_custom_call.1} parent=1 // pred_region
      _
    $region109: #{tpu_custom_call.1} parent=1 // pred_fallthru
      _
    // Predicated region
    $region110: #{tpu_custom_call.1} parent=1 // pred_check
      _
    $region111: #{tpu_custom_call.1} parent=1 // pred_check_branch
      %283 = sbr.rel (0) target = $region113
    $region112: #{tpu_custom_call.1} parent=1 // pred_region
      _
    $region113: #{tpu_custom_call.1} parent=1 // pred_fallthru
      _
    // Predicated region
    $region114: #{tpu_custom_call.1} parent=1 // pred_check
      _
    $region115: #{tpu_custom_call.1} parent=1 // pred_check_branch
      %285 = sbr.rel (0) target = $region117
    $region116: #{tpu_custom_call.1} parent=1 // pred_region
      _
    $region117: #{tpu_custom_call.1} parent=1 // pred_fallthru
      _
    // Predicated region
    $region118: #{tpu_custom_call.1} parent=1 // pred_check
      _
    $region119: #{tpu_custom_call.1} parent=1 // pred_check_branch
      %287 = sbr.rel (0) target = $region121
    $region120: #{tpu_custom_call.1} parent=1 // pred_region
      %s289 = ssub.s32 256, 256
      %290 = vsyncadd [#allocation27], %s289
      %s291 = sshll.u32 [#allocation26], 4
      %s292 = int_to_ptr.vmem [resolvable:$true] %s291
      %297 = dma.hbm_to_vmem [thread:$0]  %s59, 256, %s292, [#allocation27], 128, 128, 8
    $region121: #{tpu_custom_call.1} parent=1 // pred_fallthru
      _
    // Predicated region
    $region122: #{tpu_custom_call.1} parent=1 // pred_check
      _
    $region123: #{tpu_custom_call.1} parent=1 // pred_check_branch
      %299 = sbr.rel (0) target = $region125
    $region124: #{tpu_custom_call.1} parent=1 // pred_region
      _
    $region125: #{tpu_custom_call.1} parent=1 // pred_fallthru
      _
    // Predicated region
    $region126: #{tpu_custom_call.1} parent=1 // pred_check
      _
    $region127: #{tpu_custom_call.1} parent=1 // pred_check_branch
      %301 = sbr.rel (0) target = $region129
    $region128: #{tpu_custom_call.1} parent=1 // pred_region
      _
    $region129: #{tpu_custom_call.1} parent=1 // pred_fallthru
      _
    // Predicated region
    $region130: #{tpu_custom_call.1} parent=1 // pred_check
      _
    $region131: #{tpu_custom_call.1} parent=1 // pred_check_branch
      %303 = sbr.rel (0) target = $region133
    $region132: #{tpu_custom_call.1} parent=1 // pred_region
      _
    $region133: #{tpu_custom_call.1} parent=1 // pred_fallthru
      _
    // Predicated region
    $region134: #{tpu_custom_call.1} parent=1 // pred_check
      _
    $region135: #{tpu_custom_call.1} parent=1 // pred_check_branch
      %305 = sbr.rel (0) target = $region137
    $region136: #{tpu_custom_call.1} parent=1 // pred_region
      _
    $region137: #{tpu_custom_call.1} parent=1 // pred_fallthru
      _
    // Predicated region
    $region138: #{tpu_custom_call.1} parent=1 // pred_check
      _
    $region139: #{tpu_custom_call.1} parent=1 // pred_check_branch
      %307 = sbr.rel (0) target = $region141
    $region140: #{tpu_custom_call.1} parent=1 // pred_region
      _
    $region141: #{tpu_custom_call.1} parent=1 // pred_fallthru
      _
    // Predicated region
    $region142: #{tpu_custom_call.1} parent=1 // pred_check
      _
    $region143: #{tpu_custom_call.1} parent=1 // pred_check_branch
      %309 = sbr.rel (0) target = $region145
    $region144: #{tpu_custom_call.1} parent=1 // pred_region
      %310 = dma.done [#allocation3], 32
    $region145: #{tpu_custom_call.1} parent=1 // pred_fallthru
      _
    // Predicated region
    $region146: #{tpu_custom_call.1} parent=1 // pred_check
      _
    $region147: #{tpu_custom_call.1} parent=1 // pred_check_branch
      %312 = sbr.rel (0) target = $region149
    $region148: #{tpu_custom_call.1} parent=1 // pred_region
      %313 = dma.done [#allocation6], 32
    $region149: #{tpu_custom_call.1} parent=1 // pred_fallthru
      _
    // Predicated region
    $region150: #{tpu_custom_call.1} parent=1 // pred_check
      _
    $region151: #{tpu_custom_call.1} parent=1 // pred_check_branch
      %315 = sbr.rel (0) target = $region153
    $region152: #{tpu_custom_call.1} parent=1 // pred_region
      %316 = dma.done [#allocation6], 64
    $region153: #{tpu_custom_call.1} parent=1 // pred_fallthru
      _
    // Predicated region
    $region154: #{tpu_custom_call.1} parent=1 // pred_check
      _
    $region155: #{tpu_custom_call.1} parent=1 // pred_check_branch
      %318 = sbr.rel (0) target = $region157
    $region156: #{tpu_custom_call.1} parent=1 // pred_region
      %319 = dma.done [#allocation9], 16
    $region157: #{tpu_custom_call.1} parent=1 // pred_fallthru
      _
    // Predicated region
    $region158: #{tpu_custom_call.1} parent=1 // pred_check
      _
    $region159: #{tpu_custom_call.1} parent=1 // pred_check_branch
      %321 = sbr.rel (0) target = $region161
    $region160: #{tpu_custom_call.1} parent=1 // pred_region
      %322 = dma.done [#allocation9], 256
    $region161: #{tpu_custom_call.1} parent=1 // pred_fallthru
      _
    // Predicated region
    $region162: #{tpu_custom_call.1} parent=1 // pred_check
      _
    $region163: #{tpu_custom_call.1} parent=1 // pred_check_branch
      %324 = sbr.rel (0) target = $region165
    $region164: #{tpu_custom_call.1} parent=1 // pred_region
      %325 = dma.done [#allocation12], 16
    $region165: #{tpu_custom_call.1} parent=1 // pred_fallthru
      _
    // Predicated region
    $region166: #{tpu_custom_call.1} parent=1 // pred_check
      _
    $region167: #{tpu_custom_call.1} parent=1 // pred_check_branch
      %327 = sbr.rel (0) target = $region169
    $region168: #{tpu_custom_call.1} parent=1 // pred_region
      %328 = dma.done [#allocation12], 16
    $region169: #{tpu_custom_call.1} parent=1 // pred_fallthru
      _
    // Predicated region
    $region170: #{tpu_custom_call.1} parent=1 // pred_check
      _
    $region171: #{tpu_custom_call.1} parent=1 // pred_check_branch
      %330 = sbr.rel (0) target = $region173
    $region172: #{tpu_custom_call.1} parent=1 // pred_region
      %331 = dma.done [#allocation15], 512
    $region173: #{tpu_custom_call.1} parent=1 // pred_fallthru
      _
    // Predicated region
    $region174: #{tpu_custom_call.1} parent=1 // pred_check
      _
    $region175: #{tpu_custom_call.1} parent=1 // pred_check_branch
      %333 = sbr.rel (0) target = $region177
    $region176: #{tpu_custom_call.1} parent=1 // pred_region
      %334 = dma.done [#allocation15], 32
    $region177: #{tpu_custom_call.1} parent=1 // pred_fallthru
      _
    // Predicated region
    $region178: #{tpu_custom_call.1} parent=1 // pred_check
      _
    $region179: #{tpu_custom_call.1} parent=1 // pred_check_branch
      %336 = sbr.rel (0) target = $region181
    $region180: #{tpu_custom_call.1} parent=1 // pred_region
      %337 = dma.done [#allocation18], 32
    $region181: #{tpu_custom_call.1} parent=1 // pred_fallthru
      _
    // Predicated region
    $region182: #{tpu_custom_call.1} parent=1 // pred_check
      _
    $region183: #{tpu_custom_call.1} parent=1 // pred_check_branch
      %339 = sbr.rel (0) target = $region185
    $region184: #{tpu_custom_call.1} parent=1 // pred_region
      %340 = dma.done [#allocation18], 32
    $region185: #{tpu_custom_call.1} parent=1 // pred_fallthru
      _
    // Predicated region
    $region186: #{tpu_custom_call.1} parent=1 // pred_check
      _
    $region187: #{tpu_custom_call.1} parent=1 // pred_check_branch
      %342 = sbr.rel (0) target = $region189
    $region188: #{tpu_custom_call.1} parent=1 // pred_region
      %343 = dma.done [#allocation21], 32
    $region189: #{tpu_custom_call.1} parent=1 // pred_fallthru
      _
    // Predicated region
    $region190: #{tpu_custom_call.1} parent=1 // pred_check
      _
    $region191: #{tpu_custom_call.1} parent=1 // pred_check_branch
      %345 = sbr.rel (0) target = $region193
    $region192: #{tpu_custom_call.1} parent=1 // pred_region
      %346 = dma.done [#allocation21], 32
    $region193: #{tpu_custom_call.1} parent=1 // pred_fallthru
      _
    // Predicated region
    $region194: #{tpu_custom_call.1} parent=1 // pred_check
      _
    $region195: #{tpu_custom_call.1} parent=1 // pred_check_branch
      %348 = sbr.rel (0) target = $region197
    $region196: #{tpu_custom_call.1} parent=1 // pred_region
      %349 = dma.done [#allocation24], 32
    $region197: #{tpu_custom_call.1} parent=1 // pred_fallthru
      _
    // Predicated region
    $region198: #{tpu_custom_call.1} parent=1 // pred_check
      _
    $region199: #{tpu_custom_call.1} parent=1 // pred_check_branch
      %351 = sbr.rel (0) target = $region201
    $region200: #{tpu_custom_call.1} parent=1 // pred_region
      %352 = dma.done [#allocation24], 32
    $region201: #{tpu_custom_call.1} parent=1 // pred_fallthru
      _
    // Predicated region
    $region202: #{tpu_custom_call.1} parent=1 // pred_check
      _
    $region203: #{tpu_custom_call.1} parent=1 // pred_check_branch
      %354 = sbr.rel (0) target = $region205
    $region204: #{tpu_custom_call.1} parent=1 // pred_region
      %355 = dma.done [#allocation27], 256
    $region205: #{tpu_custom_call.1} parent=1 // pred_fallthru
      _
    %v356 = vld [vmem:[%s1] sm:$0xff]
    %v357 = vld [vmem:[%s1 + $0x8] sm:$0xff]
    %v358 = vld [vmem:[%s3] sm:$0xff]
    %v359 = vld [vmem:[%s3 + $0x8] sm:$0xff]
    %v360 = vld [vmem:[#allocation2] sm:$0x3]
    %v361 = vld [vmem:[%s7] sm:$0xff]
    %v362 = vld [vmem:[%s7 + $0x8] sm:$0xff]
    %v363 = vld [vmem:[%s9] sm:$0xff]
    %v364 = vld [vmem:[%s9 + $0x8] sm:$0xff]
    %v365 = vld [vmem:[%s9 + $0x10] sm:$0xff]
    %v366 = vld [vmem:[%s9 + $0x18] sm:$0xff]
    %v367 = vld [vmem:[#allocation5] sm:$0x3]
    %v368 = vmul.f32 %v358, -1e+30
    %v369 = vmul.f32 %v359, -1e+30
    %vm370 = vcmask 130048
    %v372 = vsel %vm370, %v360, 0
    %374 = vmatprep.subr.mxu0 0.0
    %375 = vmatpush1.msra.mxu0 0.0
    %376 = vmatprep.subr.mxu0 0.0
    %377 = vmatpush1.msra.mxu0 0.0
    %378 = vmatprep.subr.mxu0 0.0
    %379 = vmatpush1.msra.mxu0 0.0
    %380 = vmatprep.subr.mxu0 0.0
    %381 = vmatpush1.msra.mxu0 0.0
    %382 = vmatprep.subr.mxu0 0.0
    %383 = vmatpush1.msra.mxu0 0.0
    %384 = vmatprep.subr.mxu0 0.0
    %385 = vmatpush1.msra.mxu0 0.0
    %386 = vmatprep.subr.mxu0 0.0
    %387 = vmatpush1.msra.mxu0 0.0
    %388 = vmatprep.subr.mxu0 0.0
    %389 = vmatpush1.msra.mxu0 0.0
    %390 = vmatprep.subr.mxu0 0.0
    %391 = vmatpush1.msra.mxu0 0.0
    %392 = vmatprep.subr.mxu0 0.0
    %393 = vmatpush1.msra.mxu0 0.0
    %394 = vmatprep.subr.mxu0 0.0
    %395 = vmatpush1.msra.mxu0 0.0
    %396 = vmatprep.subr.mxu0 0.0
    %397 = vmatpush1.msra.mxu0 0.0
    %398 = vmatprep.subr.mxu0 0.0
    %399 = vmatpush1.msra.mxu0 0.0
    %400 = vmatprep.subr.mxu0 0.0
    %401 = vmatpush1.msra.mxu0 0.0
    %402 = vmatprep.subr.mxu0 0.0
    %403 = vmatpush1.msra.mxu0 %v359
    %404 = vmatprep.subr.mxu0 0.0
    %405 = vmatpush1.msra.mxu0 %v358
    %406 = vmatprep.subr.mxu0 0.0
    %407 = vmatpush2.msra.mxu0 0.0
    %408 = vmatprep.subr.mxu0 0.0
    %409 = vmatpush2.msra.mxu0 0.0
    %410 = vmatprep.subr.mxu0 0.0
    %411 = vmatpush2.msra.mxu0 0.0
    %412 = vmatprep.subr.mxu0 0.0
    %413 = vmatpush2.msra.mxu0 0.0
    %414 = vmatprep.subr.mxu0 0.0
    %415 = vmatpush2.msra.mxu0 0.0
    %416 = vmatprep.subr.mxu0 0.0
    %417 = vmatpush2.msra.mxu0 0.0
    %418 = vmatprep.subr.mxu0 0.0
    %419 = vmatpush2.msra.mxu0 0.0
    %420 = vmatprep.subr.mxu0 0.0
    %421 = vmatpush2.msra.mxu0 0.0
    %422 = vmatprep.subr.mxu0 0.0
    %423 = vmatpush2.msra.mxu0 0.0
    %424 = vmatprep.subr.mxu0 0.0
    %425 = vmatpush2.msra.mxu0 0.0
    %426 = vmatprep.subr.mxu0 0.0
    %427 = vmatpush2.msra.mxu0 0.0
    %428 = vmatprep.subr.mxu0 0.0
    %429 = vmatpush2.msra.mxu0 0.0
    %430 = vmatprep.subr.mxu0 0.0
    %431 = vmatpush2.msra.mxu0 0.0
    %432 = vmatprep.subr.mxu0 0.0
    %433 = vmatpush2.msra.mxu0 0.0
    %434 = vmatprep.subr.mxu0 0.0
    %435 = vmatpush2.msra.mxu0 0.0
    %436 = vmatprep.subr.mxu0 0.0
    %437 = vmatpush2.msra.mxu0 0.0
    %438 = vmatprep.mubr.f32.mxu0 0.0
    %439 = vmatmul.mubr.f32.gmra.mxu0 %v372
    %v440 = vpop.f32.mrf.mxu0
    %v441 = vadd.f32 0.0, %v440
    %v442 = vpop.f32.mrf.mxu0
    %443 = vdwg.mxu0
    %v444 = vmul.f32 %v441, 0.014285714
    %v445 = vld [vmem:[#allocation7] sm:$0xf]
    %v446 = vld [vmem:[#allocation8] sm:$0x1]
    %v448 = vlaneseq
    %v449 = vshrl.u32 %v448, 7
    %v450 = vsub.s32 0, %v449
    %v451 = vrot.slane %v446, %v450
    %vm453 = vcmask 31744
    %v455 = vsel %vm453, %v356, 0
    %v458 = vsel %vm453, %v357, 0
    %vm460 = vcmask 1043456
    %v462 = vsel %vm460, %v445, 0
    %464 = vmatprep.subr.mxu0 0.0
    %465 = vmatpush1.msra.mxu0 0.0
    %466 = vmatprep.subr.mxu0 0.0
    %467 = vmatpush1.msra.mxu0 0.0
    %468 = vmatprep.subr.mxu0 0.0
    %469 = vmatpush1.msra.mxu0 0.0
    %470 = vmatprep.subr.mxu0 0.0
    %471 = vmatpush1.msra.mxu0 0.0
    %472 = vmatprep.subr.mxu0 0.0
    %473 = vmatpush1.msra.mxu0 0.0
    %474 = vmatprep.subr.mxu0 0.0
    %475 = vmatpush1.msra.mxu0 0.0
    %476 = vmatprep.subr.mxu0 0.0
    %477 = vmatpush1.msra.mxu0 0.0
    %478 = vmatprep.subr.mxu0 0.0
    %479 = vmatpush1.msra.mxu0 0.0
    %480 = vmatprep.subr.mxu0 0.0
    %481 = vmatpush1.msra.mxu0 0.0
    %482 = vmatprep.subr.mxu0 0.0
    %483 = vmatpush1.msra.mxu0 0.0
    %484 = vmatprep.subr.mxu0 0.0
    %485 = vmatpush1.msra.mxu0 0.0
    %486 = vmatprep.subr.mxu0 0.0
    %487 = vmatpush1.msra.mxu0 0.0
    %488 = vmatprep.subr.mxu0 0.0
    %489 = vmatpush1.msra.mxu0 0.0
    %490 = vmatprep.subr.mxu0 0.0
    %491 = vmatpush1.msra.mxu0 0.0
    %492 = vmatprep.subr.mxu0 0.0
    %493 = vmatpush1.msra.mxu0 0.0
    %494 = vmatprep.subr.mxu0 0.0
    %495 = vmatpush1.msra.mxu0 %v462
    %496 = vmatprep.subr.mxu0 0.0
    %497 = vmatpush2.msra.mxu0 0.0
    %498 = vmatprep.subr.mxu0 0.0
    %499 = vmatpush2.msra.mxu0 0.0
    %500 = vmatprep.subr.mxu0 0.0
    %501 = vmatpush2.msra.mxu0 0.0
    %502 = vmatprep.subr.mxu0 0.0
    %503 = vmatpush2.msra.mxu0 0.0
    %504 = vmatprep.subr.mxu0 0.0
    %505 = vmatpush2.msra.mxu0 0.0
    %506 = vmatprep.subr.mxu0 0.0
    %507 = vmatpush2.msra.mxu0 0.0
    %508 = vmatprep.subr.mxu0 0.0
    %509 = vmatpush2.msra.mxu0 0.0
    %510 = vmatprep.subr.mxu0 0.0
    %511 = vmatpush2.msra.mxu0 0.0
    %512 = vmatprep.subr.mxu0 0.0
    %513 = vmatpush2.msra.mxu0 0.0
    %514 = vmatprep.subr.mxu0 0.0
    %515 = vmatpush2.msra.mxu0 0.0
    %516 = vmatprep.subr.mxu0 0.0
    %517 = vmatpush2.msra.mxu0 0.0
    %518 = vmatprep.subr.mxu0 0.0
    %519 = vmatpush2.msra.mxu0 0.0
    %520 = vmatprep.subr.mxu0 0.0
    %521 = vmatpush2.msra.mxu0 0.0
    %522 = vmatprep.subr.mxu0 0.0
    %523 = vmatpush2.msra.mxu0 0.0
    %524 = vmatprep.subr.mxu0 0.0
    %525 = vmatpush2.msra.mxu0 0.0
    %526 = vmatprep.subr.mxu0 0.0
    %527 = vmatpush2.msra.mxu0 0.0
    %528 = vmatprep.mubr.f32.mxu0 0.0
    %529 = vmatmul.mubr.f32.gmra.mxu0 %v455
    %v530 = vpop.f32.mrf.mxu0
    %v531 = vadd.f32 %v451, %v530
    %v532 = vpop.f32.mrf.mxu0
    %533 = vmatprep.mubr.f32.mxu0 0.0
    %534 = vmatmul.mubr.f32.gmra.mxu0 %v458
    %v535 = vpop.f32.mrf.mxu0
    %v536 = vadd.f32 %v451, %v535
    %v537 = vpop.f32.mrf.mxu0
    %538 = vdwg.mxu0
    %vm539 = vcmp.ge.f32.partialorder %v531, 0.0
    %vm540 = vcmp.ge.f32.partialorder %v536, 0.0
    %v541 = vmul.f32 %v531, 0.01
    %v542 = vmul.f32 %v536, 0.01
    %v543 = vsel %vm539, %v531, %v541
    %v544 = vsel %vm540, %v536, %v542
    %545 = vmatprep.subr.mxu0 0.0
    %546 = vmatpush1.msra.mxu0 0.0
    %547 = vmatprep.subr.mxu0 0.0
    %548 = vmatpush1.msra.mxu0 0.0
    %549 = vmatprep.subr.mxu0 0.0
    %550 = vmatpush1.msra.mxu0 0.0
    %551 = vmatprep.subr.mxu0 0.0
    %552 = vmatpush1.msra.mxu0 0.0
    %553 = vmatprep.subr.mxu0 0.0
    %554 = vmatpush1.msra.mxu0 0.0
    %555 = vmatprep.subr.mxu0 0.0
    %556 = vmatpush1.msra.mxu0 0.0
    %557 = vmatprep.subr.mxu0 0.0
    %558 = vmatpush1.msra.mxu0 0.0
    %559 = vmatprep.subr.mxu0 0.0
    %560 = vmatpush1.msra.mxu0 0.0
    %561 = vmatprep.subr.mxu0 0.0
    %562 = vmatpush1.msra.mxu0 0.0
    %563 = vmatprep.subr.mxu0 0.0
    %564 = vmatpush1.msra.mxu0 0.0
    %565 = vmatprep.subr.mxu0 0.0
    %566 = vmatpush1.msra.mxu0 0.0
    %567 = vmatprep.subr.mxu0 0.0
    %568 = vmatpush1.msra.mxu0 0.0
    %569 = vmatprep.subr.mxu0 0.0
    %570 = vmatpush1.msra.mxu0 0.0
    %571 = vmatprep.subr.mxu0 0.0
    %572 = vmatpush1.msra.mxu0 0.0
    %573 = vmatprep.subr.mxu0 0.0
    %574 = vmatpush1.msra.mxu0 %v544
    %575 = vmatprep.subr.mxu0 0.0
    %576 = vmatpush1.msra.mxu0 %v543
    %577 = vmatprep.subr.mxu0 0.0
    %578 = vmatpush2.msra.mxu0 0.0
    %579 = vmatprep.subr.mxu0 0.0
    %580 = vmatpush2.msra.mxu0 0.0
    %581 = vmatprep.subr.mxu0 0.0
    %582 = vmatpush2.msra.mxu0 0.0
    %583 = vmatprep.subr.mxu0 0.0
    %584 = vmatpush2.msra.mxu0 0.0
    %585 = vmatprep.subr.mxu0 0.0
    %586 = vmatpush2.msra.mxu0 0.0
    %587 = vmatprep.subr.mxu0 0.0
    %588 = vmatpush2.msra.mxu0 0.0
    %589 = vmatprep.subr.mxu0 0.0
    %590 = vmatpush2.msra.mxu0 0.0
    %591 = vmatprep.subr.mxu0 0.0
    %592 = vmatpush2.msra.mxu0 0.0
    %593 = vmatprep.subr.mxu0 0.0
    %594 = vmatpush2.msra.mxu0 0.0
    %595 = vmatprep.subr.mxu0 0.0
    %596 = vmatpush2.msra.mxu0 0.0
    %597 = vmatprep.subr.mxu0 0.0
    %598 = vmatpush2.msra.mxu0 0.0
    %599 = vmatprep.subr.mxu0 0.0
    %600 = vmatpush2.msra.mxu0 0.0
    %601 = vmatprep.subr.mxu0 0.0
    %602 = vmatpush2.msra.mxu0 0.0
    %603 = vmatprep.subr.mxu0 0.0
    %604 = vmatpush2.msra.mxu0 0.0
    %605 = vmatprep.subr.mxu0 0.0
    %606 = vmatpush2.msra.mxu0 0.0
    %607 = vmatprep.subr.mxu0 0.0
    %608 = vmatpush2.msra.mxu0 0.0
    %609 = vmatprep.mubr.f32.mxu0 0.0
    %610 = vmatmul.mubr.f32.gmra.mxu0 %v372
    %v611 = vpop.f32.mrf.mxu0
    %v612 = vadd.f32 0.0, %v611
    %v613 = vpop.f32.mrf.mxu0
    %614 = vdwg.mxu0
    %v615 = vmul.f32 %v612, 0.125
    %v616 = vld [vmem:[#allocation10] sm:$0xff]
    %v617 = vld [vmem:[#allocation10 + $0x8] sm:$0xff]
    %v618 = vld [vmem:[#allocation11] sm:$0x1]
    %620 = vset.pattern.permute.xlu0 0
    %621 = vperm.xlu0 %620, %v444
    %v622 = vpop.permute.xlu0 %621
    %v625 = vlaneseq
    %v626 = vshrl.u32 %v625, 7
    %v627 = vsub.s32 0, %v626
    %v628 = vrot.slane %v618, %v627
    %v630 = vmul.f32 %v622, %v628
    %v632 = vsel %vm370, %v615, 0
    %634 = vmatprep.subr.mxu0 0.0
    %635 = vmatpush1.msra.mxu0 0.0
    %636 = vmatprep.subr.mxu0 0.0
    %637 = vmatpush1.msra.mxu0 0.0
    %638 = vmatprep.subr.mxu0 0.0
    %639 = vmatpush1.msra.mxu0 0.0
    %640 = vmatprep.subr.mxu0 0.0
    %641 = vmatpush1.msra.mxu0 0.0
    %642 = vmatprep.subr.mxu0 0.0
    %643 = vmatpush1.msra.mxu0 0.0
    %644 = vmatprep.subr.mxu0 0.0
    %645 = vmatpush1.msra.mxu0 0.0
    %646 = vmatprep.subr.mxu0 0.0
    %647 = vmatpush1.msra.mxu0 0.0
    %648 = vmatprep.subr.mxu0 0.0
    %649 = vmatpush1.msra.mxu0 0.0
    %650 = vmatprep.subr.mxu0 0.0
    %651 = vmatpush1.msra.mxu0 0.0
    %652 = vmatprep.subr.mxu0 0.0
    %653 = vmatpush1.msra.mxu0 0.0
    %654 = vmatprep.subr.mxu0 0.0
    %655 = vmatpush1.msra.mxu0 0.0
    %656 = vmatprep.subr.mxu0 0.0
    %657 = vmatpush1.msra.mxu0 0.0
    %658 = vmatprep.subr.mxu0 0.0
    %659 = vmatpush1.msra.mxu0 0.0
    %660 = vmatprep.subr.mxu0 0.0
    %661 = vmatpush1.msra.mxu0 0.0
    %662 = vmatprep.subr.mxu0 0.0
    %663 = vmatpush1.msra.mxu0 %v617
    %664 = vmatprep.subr.mxu0 0.0
    %665 = vmatpush1.msra.mxu0 %v616
    %666 = vmatprep.subr.mxu0 0.0
    %667 = vmatpush2.msra.mxu0 0.0
    %668 = vmatprep.subr.mxu0 0.0
    %669 = vmatpush2.msra.mxu0 0.0
    %670 = vmatprep.subr.mxu0 0.0
    %671 = vmatpush2.msra.mxu0 0.0
    %672 = vmatprep.subr.mxu0 0.0
    %673 = vmatpush2.msra.mxu0 0.0
    %674 = vmatprep.subr.mxu0 0.0
    %675 = vmatpush2.msra.mxu0 0.0
    %676 = vmatprep.subr.mxu0 0.0
    %677 = vmatpush2.msra.mxu0 0.0
    %678 = vmatprep.subr.mxu0 0.0
    %679 = vmatpush2.msra.mxu0 0.0
    %680 = vmatprep.subr.mxu0 0.0
    %681 = vmatpush2.msra.mxu0 0.0
    %682 = vmatprep.subr.mxu0 0.0
    %683 = vmatpush2.msra.mxu0 0.0
    %684 = vmatprep.subr.mxu0 0.0
    %685 = vmatpush2.msra.mxu0 0.0
    %686 = vmatprep.subr.mxu0 0.0
    %687 = vmatpush2.msra.mxu0 0.0
    %688 = vmatprep.subr.mxu0 0.0
    %689 = vmatpush2.msra.mxu0 0.0
    %690 = vmatprep.subr.mxu0 0.0
    %691 = vmatpush2.msra.mxu0 0.0
    %692 = vmatprep.subr.mxu0 0.0
    %693 = vmatpush2.msra.mxu0 0.0
    %694 = vmatprep.subr.mxu0 0.0
    %695 = vmatpush2.msra.mxu0 0.0
    %696 = vmatprep.subr.mxu0 0.0
    %697 = vmatpush2.msra.mxu0 0.0
    %698 = vmatprep.mubr.f32.mxu0 0.0
    %699 = vmatmul.mubr.f32.gmra.mxu0 %v632
    %v700 = vpop.f32.mrf.mxu0
    %v701 = vadd.f32 %v630, %v700
    %v702 = vpop.f32.mrf.mxu0
    %703 = vdwg.mxu0
    %v704 = vld [vmem:[#allocation13] sm:$0x1]
    %v706 = vlaneseq
    %v707 = vshrl.u32 %v706, 7
    %v708 = vsub.s32 0, %v707
    %v709 = vrot.slane %v704, %v708
    %v711 = vadd.f32 %v701, %v709
    %vm712 = vcmp.ge.f32.partialorder %v711, 0.0
    %v713 = vmul.f32 %v711, 0.01
    %v714 = vsel %vm712, %v711, %v713
    %v715 = vld [vmem:[#allocation14] sm:$0xff]
    %v716 = vld [vmem:[#allocation14 + $0x8] sm:$0xff]
    %v717 = vld [vmem:[#allocation16] sm:$0x1]
    %v719 = vlaneseq
    %v720 = vshrl.u32 %v719, 7
    %v721 = vsub.s32 0, %v720
    %v722 = vrot.slane %v717, %v721
    %v725 = vsel %vm370, %v543, 0
    %v728 = vsel %vm370, %v544, 0
    %730 = vmatprep.subr.mxu0 0.0
    %731 = vmatpush1.msra.mxu0 0.0
    %732 = vmatprep.subr.mxu0 0.0
    %733 = vmatpush1.msra.mxu0 0.0
    %734 = vmatprep.subr.mxu0 0.0
    %735 = vmatpush1.msra.mxu0 0.0
    %736 = vmatprep.subr.mxu0 0.0
    %737 = vmatpush1.msra.mxu0 0.0
    %738 = vmatprep.subr.mxu0 0.0
    %739 = vmatpush1.msra.mxu0 0.0
    %740 = vmatprep.subr.mxu0 0.0
    %741 = vmatpush1.msra.mxu0 0.0
    %742 = vmatprep.subr.mxu0 0.0
    %743 = vmatpush1.msra.mxu0 0.0
    %744 = vmatprep.subr.mxu0 0.0
    %745 = vmatpush1.msra.mxu0 0.0
    %746 = vmatprep.subr.mxu0 0.0
    %747 = vmatpush1.msra.mxu0 0.0
    %748 = vmatprep.subr.mxu0 0.0
    %749 = vmatpush1.msra.mxu0 0.0
    %750 = vmatprep.subr.mxu0 0.0
    %751 = vmatpush1.msra.mxu0 0.0
    %752 = vmatprep.subr.mxu0 0.0
    %753 = vmatpush1.msra.mxu0 0.0
    %754 = vmatprep.subr.mxu0 0.0
    %755 = vmatpush1.msra.mxu0 0.0
    %756 = vmatprep.subr.mxu0 0.0
    %757 = vmatpush1.msra.mxu0 0.0
    %758 = vmatprep.subr.mxu0 0.0
    %759 = vmatpush1.msra.mxu0 %v716
    %760 = vmatprep.subr.mxu0 0.0
    %761 = vmatpush1.msra.mxu0 %v715
    %762 = vmatprep.subr.mxu0 0.0
    %763 = vmatpush2.msra.mxu0 0.0
    %764 = vmatprep.subr.mxu0 0.0
    %765 = vmatpush2.msra.mxu0 0.0
    %766 = vmatprep.subr.mxu0 0.0
    %767 = vmatpush2.msra.mxu0 0.0
    %768 = vmatprep.subr.mxu0 0.0
    %769 = vmatpush2.msra.mxu0 0.0
    %770 = vmatprep.subr.mxu0 0.0
    %771 = vmatpush2.msra.mxu0 0.0
    %772 = vmatprep.subr.mxu0 0.0
    %773 = vmatpush2.msra.mxu0 0.0
    %774 = vmatprep.subr.mxu0 0.0
    %775 = vmatpush2.msra.mxu0 0.0
    %776 = vmatprep.subr.mxu0 0.0
    %777 = vmatpush2.msra.mxu0 0.0
    %778 = vmatprep.subr.mxu0 0.0
    %779 = vmatpush2.msra.mxu0 0.0
    %780 = vmatprep.subr.mxu0 0.0
    %781 = vmatpush2.msra.mxu0 0.0
    %782 = vmatprep.subr.mxu0 0.0
    %783 = vmatpush2.msra.mxu0 0.0
    %784 = vmatprep.subr.mxu0 0.0
    %785 = vmatpush2.msra.mxu0 0.0
    %786 = vmatprep.subr.mxu0 0.0
    %787 = vmatpush2.msra.mxu0 0.0
    %788 = vmatprep.subr.mxu0 0.0
    %789 = vmatpush2.msra.mxu0 0.0
    %790 = vmatprep.subr.mxu0 0.0
    %791 = vmatpush2.msra.mxu0 0.0
    %792 = vmatprep.subr.mxu0 0.0
    %793 = vmatpush2.msra.mxu0 0.0
    %794 = vmatprep.mubr.f32.mxu0 0.0
    %795 = vmatmul.mubr.f32.gmra.mxu0 %v725
    %v796 = vpop.f32.mrf.mxu0
    %v797 = vadd.f32 %v722, %v796
    %v798 = vpop.f32.mrf.mxu0
    %799 = vmatprep.mubr.f32.mxu0 0.0
    %800 = vmatmul.mubr.f32.gmra.mxu0 %v728
    %v801 = vpop.f32.mrf.mxu0
    %v802 = vadd.f32 %v722, %v801
    %v803 = vpop.f32.mrf.mxu0
    %804 = vdwg.mxu0
    %vm805 = vcmp.ge.f32.partialorder %v797, 0.0
    %vm806 = vcmp.ge.f32.partialorder %v802, 0.0
    %v807 = vmul.f32 %v797, 0.01
    %v808 = vmul.f32 %v802, 0.01
    %v809 = vsel %vm805, %v797, %v807
    %v810 = vsel %vm806, %v802, %v808
    %v812 = vsel %vm370, %v714, 0
    %814 = vmatprep.subr.mxu0 0.0
    %815 = vmatpush1.msra.mxu0 0.0
    %816 = vmatprep.subr.mxu0 0.0
    %817 = vmatpush1.msra.mxu0 0.0
    %818 = vmatprep.subr.mxu0 0.0
    %819 = vmatpush1.msra.mxu0 0.0
    %820 = vmatprep.subr.mxu0 0.0
    %821 = vmatpush1.msra.mxu0 0.0
    %822 = vmatprep.subr.mxu0 0.0
    %823 = vmatpush1.msra.mxu0 0.0
    %824 = vmatprep.subr.mxu0 0.0
    %825 = vmatpush1.msra.mxu0 0.0
    %826 = vmatprep.subr.mxu0 0.0
    %827 = vmatpush1.msra.mxu0 0.0
    %828 = vmatprep.subr.mxu0 0.0
    %829 = vmatpush1.msra.mxu0 0.0
    %830 = vmatprep.subr.mxu0 0.0
    %831 = vmatpush1.msra.mxu0 0.0
    %832 = vmatprep.subr.mxu0 0.0
    %833 = vmatpush1.msra.mxu0 0.0
    %834 = vmatprep.subr.mxu0 0.0
    %835 = vmatpush1.msra.mxu0 0.0
    %836 = vmatprep.subr.mxu0 0.0
    %837 = vmatpush1.msra.mxu0 0.0
    %838 = vmatprep.subr.mxu0 0.0
    %839 = vmatpush1.msra.mxu0 0.0
    %840 = vmatprep.subr.mxu0 0.0
    %841 = vmatpush1.msra.mxu0 0.0
    %842 = vmatprep.subr.mxu0 0.0
    %843 = vmatpush1.msra.mxu0 %v716
    %844 = vmatprep.subr.mxu0 0.0
    %845 = vmatpush1.msra.mxu0 %v715
    %846 = vmatprep.subr.mxu0 0.0
    %847 = vmatpush2.msra.mxu0 0.0
    %848 = vmatprep.subr.mxu0 0.0
    %849 = vmatpush2.msra.mxu0 0.0
    %850 = vmatprep.subr.mxu0 0.0
    %851 = vmatpush2.msra.mxu0 0.0
    %852 = vmatprep.subr.mxu0 0.0
    %853 = vmatpush2.msra.mxu0 0.0
    %854 = vmatprep.subr.mxu0 0.0
    %855 = vmatpush2.msra.mxu0 0.0
    %856 = vmatprep.subr.mxu0 0.0
    %857 = vmatpush2.msra.mxu0 0.0
    %858 = vmatprep.subr.mxu0 0.0
    %859 = vmatpush2.msra.mxu0 0.0
    %860 = vmatprep.subr.mxu0 0.0
    %861 = vmatpush2.msra.mxu0 0.0
    %862 = vmatprep.subr.mxu0 0.0
    %863 = vmatpush2.msra.mxu0 0.0
    %864 = vmatprep.subr.mxu0 0.0
    %865 = vmatpush2.msra.mxu0 0.0
    %866 = vmatprep.subr.mxu0 0.0
    %867 = vmatpush2.msra.mxu0 0.0
    %868 = vmatprep.subr.mxu0 0.0
    %869 = vmatpush2.msra.mxu0 0.0
    %870 = vmatprep.subr.mxu0 0.0
    %871 = vmatpush2.msra.mxu0 0.0
    %872 = vmatprep.subr.mxu0 0.0
    %873 = vmatpush2.msra.mxu0 0.0
    %874 = vmatprep.subr.mxu0 0.0
    %875 = vmatpush2.msra.mxu0 0.0
    %876 = vmatprep.subr.mxu0 0.0
    %877 = vmatpush2.msra.mxu0 0.0
    %878 = vmatprep.mubr.f32.mxu0 0.0
    %879 = vmatmul.mubr.f32.gmra.mxu0 %v812
    %v880 = vpop.f32.mrf.mxu0
    %v881 = vadd.f32 %v722, %v880
    %v882 = vpop.f32.mrf.mxu0
    %883 = vdwg.mxu0
    %v884 = vld [vmem:[#allocation17] sm:$0x1]
    %v885 = vld [vmem:[#allocation19] sm:$0x1]
    %vm886 = vcmask 254976
    %v887 = vsel %vm886, %v881, 0.0
    %888 = vadd.xlane.f32.xlu0 %v887
    %v889 = vpop.xlane.xlu0 %888
    %v890 = vrcp.pop 32.0
    %v891 = vmul.f32 %v889, %v890
    %v892 = vsub.f32 %v881, %v891
    %v893 = vmul.f32 %v892, %v892
    %v894 = vsel %vm886, %v893, 0.0
    %895 = vadd.xlane.f32.xlu0 %v894
    %v896 = vpop.xlane.xlu0 %895
    %v897 = vmul.f32 %v896, %v890
    %v898 = vadd.f32 %v897, 1e-05
    %v899 = vrsqrt.pop %v898
    %v900 = vmul.f32 %v892, %v899
    %v902 = vlaneseq
    %v903 = vshrl.u32 %v902, 7
    %v904 = vsub.s32 0, %v903
    %v905 = vrot.slane %v884, %v904
    %v907 = vmul.f32 %v900, %v905
    %v909 = vlaneseq
    %v910 = vshrl.u32 %v909, 7
    %v911 = vsub.s32 0, %v910
    %v912 = vrot.slane %v885, %v911
    %v914 = vadd.f32 %v907, %v912
    %vm915 = vcmp.ge.f32.partialorder %v914, 0.0
    %v916 = vmul.f32 %v914, 0.01
    %v917 = vsel %vm915, %v914, %v916
    %v918 = vld [vmem:[%s31] sm:$0xff]
    %v919 = vld [vmem:[%s31 + $0x8] sm:$0xff]
    %v920 = vld [vmem:[%s31 + $0x10] sm:$0xff]
    %v921 = vld [vmem:[%s31 + $0x18] sm:$0xff]
    %v922 = vld [vmem:[#allocation20] sm:$0x1]
    %v924 = vlaneseq
    %v925 = vshrl.u32 %v924, 7
    %v926 = vsub.s32 0, %v925
    %v927 = vrot.slane %v922, %v926
    %vm929 = vcmask 261120
    %v931 = vsel %vm929, %v917, 0
    %933 = vmatprep.subr.mxu0 0.0
    %934 = vmatpush1.msra.mxu0 0.0
    %935 = vmatprep.subr.mxu0 0.0
    %936 = vmatpush1.msra.mxu0 0.0
    %937 = vmatprep.subr.mxu0 0.0
    %938 = vmatpush1.msra.mxu0 0.0
    %939 = vmatprep.subr.mxu0 0.0
    %940 = vmatpush1.msra.mxu0 0.0
    %941 = vmatprep.subr.mxu0 0.0
    %942 = vmatpush1.msra.mxu0 0.0
    %943 = vmatprep.subr.mxu0 0.0
    %944 = vmatpush1.msra.mxu0 0.0
    %945 = vmatprep.subr.mxu0 0.0
    %946 = vmatpush1.msra.mxu0 0.0
    %947 = vmatprep.subr.mxu0 0.0
    %948 = vmatpush1.msra.mxu0 0.0
    %949 = vmatprep.subr.mxu0 0.0
    %950 = vmatpush1.msra.mxu0 0.0
    %951 = vmatprep.subr.mxu0 0.0
    %952 = vmatpush1.msra.mxu0 0.0
    %953 = vmatprep.subr.mxu0 0.0
    %954 = vmatpush1.msra.mxu0 0.0
    %955 = vmatprep.subr.mxu0 0.0
    %956 = vmatpush1.msra.mxu0 0.0
    %957 = vmatprep.subr.mxu0 0.0
    %958 = vmatpush1.msra.mxu0 %v921
    %959 = vmatprep.subr.mxu0 0.0
    %960 = vmatpush1.msra.mxu0 %v920
    %961 = vmatprep.subr.mxu0 0.0
    %962 = vmatpush1.msra.mxu0 %v919
    %963 = vmatprep.subr.mxu0 0.0
    %964 = vmatpush1.msra.mxu0 %v918
    %965 = vmatprep.subr.mxu0 0.0
    %966 = vmatpush2.msra.mxu0 0.0
    %967 = vmatprep.subr.mxu0 0.0
    %968 = vmatpush2.msra.mxu0 0.0
    %969 = vmatprep.subr.mxu0 0.0
    %970 = vmatpush2.msra.mxu0 0.0
    %971 = vmatprep.subr.mxu0 0.0
    %972 = vmatpush2.msra.mxu0 0.0
    %973 = vmatprep.subr.mxu0 0.0
    %974 = vmatpush2.msra.mxu0 0.0
    %975 = vmatprep.subr.mxu0 0.0
    %976 = vmatpush2.msra.mxu0 0.0
    %977 = vmatprep.subr.mxu0 0.0
    %978 = vmatpush2.msra.mxu0 0.0
    %979 = vmatprep.subr.mxu0 0.0
    %980 = vmatpush2.msra.mxu0 0.0
    %981 = vmatprep.subr.mxu0 0.0
    %982 = vmatpush2.msra.mxu0 0.0
    %983 = vmatprep.subr.mxu0 0.0
    %984 = vmatpush2.msra.mxu0 0.0
    %985 = vmatprep.subr.mxu0 0.0
    %986 = vmatpush2.msra.mxu0 0.0
    %987 = vmatprep.subr.mxu0 0.0
    %988 = vmatpush2.msra.mxu0 0.0
    %989 = vmatprep.subr.mxu0 0.0
    %990 = vmatpush2.msra.mxu0 0.0
    %991 = vmatprep.subr.mxu0 0.0
    %992 = vmatpush2.msra.mxu0 0.0
    %993 = vmatprep.subr.mxu0 0.0
    %994 = vmatpush2.msra.mxu0 0.0
    %995 = vmatprep.subr.mxu0 0.0
    %996 = vmatpush2.msra.mxu0 0.0
    %997 = vmatprep.mubr.f32.mxu0 0.0
    %998 = vmatmul.mubr.f32.gmra.mxu0 %v931
    %v999 = vpop.f32.mrf.mxu0
    %v1000 = vadd.f32 %v927, %v999
    %v1001 = vpop.f32.mrf.mxu0
    %1002 = vdwg.mxu0
    %v1003 = vld [vmem:[%s35] sm:$0xff]
    %v1004 = vld [vmem:[%s35 + $0x8] sm:$0xff]
    %v1005 = vld [vmem:[%s35 + $0x10] sm:$0xff]
    %v1006 = vld [vmem:[%s35 + $0x18] sm:$0xff]
    %v1007 = vld [vmem:[#allocation22] sm:$0x1]
    %v1009 = vlaneseq
    %v1010 = vshrl.u32 %v1009, 7
    %v1011 = vsub.s32 0, %v1010
    %v1012 = vrot.slane %v1007, %v1011
    %v1015 = vsel %vm929, %v809, 0
    %v1018 = vsel %vm929, %v810, 0
    %1020 = vmatprep.subr.mxu0 0.0
    %1021 = vmatpush1.msra.mxu0 0.0
    %1022 = vmatprep.subr.mxu0 0.0
    %1023 = vmatpush1.msra.mxu0 0.0
    %1024 = vmatprep.subr.mxu0 0.0
    %1025 = vmatpush1.msra.mxu0 0.0
    %1026 = vmatprep.subr.mxu0 0.0
    %1027 = vmatpush1.msra.mxu0 0.0
    %1028 = vmatprep.subr.mxu0 0.0
    %1029 = vmatpush1.msra.mxu0 0.0
    %1030 = vmatprep.subr.mxu0 0.0
    %1031 = vmatpush1.msra.mxu0 0.0
    %1032 = vmatprep.subr.mxu0 0.0
    %1033 = vmatpush1.msra.mxu0 0.0
    %1034 = vmatprep.subr.mxu0 0.0
    %1035 = vmatpush1.msra.mxu0 0.0
    %1036 = vmatprep.subr.mxu0 0.0
    %1037 = vmatpush1.msra.mxu0 0.0
    %1038 = vmatprep.subr.mxu0 0.0
    %1039 = vmatpush1.msra.mxu0 0.0
    %1040 = vmatprep.subr.mxu0 0.0
    %1041 = vmatpush1.msra.mxu0 0.0
    %1042 = vmatprep.subr.mxu0 0.0
    %1043 = vmatpush1.msra.mxu0 0.0
    %1044 = vmatprep.subr.mxu0 0.0
    %1045 = vmatpush1.msra.mxu0 %v1006
    %1046 = vmatprep.subr.mxu0 0.0
    %1047 = vmatpush1.msra.mxu0 %v1005
    %1048 = vmatprep.subr.mxu0 0.0
    %1049 = vmatpush1.msra.mxu0 %v1004
    %1050 = vmatprep.subr.mxu0 0.0
    %1051 = vmatpush1.msra.mxu0 %v1003
    %1052 = vmatprep.subr.mxu0 0.0
    %1053 = vmatpush2.msra.mxu0 0.0
    %1054 = vmatprep.subr.mxu0 0.0
    %1055 = vmatpush2.msra.mxu0 0.0
    %1056 = vmatprep.subr.mxu0 0.0
    %1057 = vmatpush2.msra.mxu0 0.0
    %1058 = vmatprep.subr.mxu0 0.0
    %1059 = vmatpush2.msra.mxu0 0.0
    %1060 = vmatprep.subr.mxu0 0.0
    %1061 = vmatpush2.msra.mxu0 0.0
    %1062 = vmatprep.subr.mxu0 0.0
    %1063 = vmatpush2.msra.mxu0 0.0
    %1064 = vmatprep.subr.mxu0 0.0
    %1065 = vmatpush2.msra.mxu0 0.0
    %1066 = vmatprep.subr.mxu0 0.0
    %1067 = vmatpush2.msra.mxu0 0.0
    %1068 = vmatprep.subr.mxu0 0.0
    %1069 = vmatpush2.msra.mxu0 0.0
    %1070 = vmatprep.subr.mxu0 0.0
    %1071 = vmatpush2.msra.mxu0 0.0
    %1072 = vmatprep.subr.mxu0 0.0
    %1073 = vmatpush2.msra.mxu0 0.0
    %1074 = vmatprep.subr.mxu0 0.0
    %1075 = vmatpush2.msra.mxu0 0.0
    %1076 = vmatprep.subr.mxu0 0.0
    %1077 = vmatpush2.msra.mxu0 0.0
    %1078 = vmatprep.subr.mxu0 0.0
    %1079 = vmatpush2.msra.mxu0 0.0
    %1080 = vmatprep.subr.mxu0 0.0
    %1081 = vmatpush2.msra.mxu0 0.0
    %1082 = vmatprep.subr.mxu0 0.0
    %1083 = vmatpush2.msra.mxu0 0.0
    %1084 = vmatprep.mubr.f32.mxu0 0.0
    %1085 = vmatmul.mubr.f32.gmra.mxu0 %v1015
    %v1086 = vpop.f32.mrf.mxu0
    %v1087 = vadd.f32 %v1012, %v1086
    %v1088 = vpop.f32.mrf.mxu0
    %1089 = vmatprep.mubr.f32.mxu0 0.0
    %1090 = vmatmul.mubr.f32.gmra.mxu0 %v1018
    %v1091 = vpop.f32.mrf.mxu0
    %v1092 = vadd.f32 %v1012, %v1091
    %v1093 = vpop.f32.mrf.mxu0
    %1094 = vdwg.mxu0
    %v1095 = vld [vmem:[%s39] sm:$0xff]
    %v1096 = vld [vmem:[%s39 + $0x8] sm:$0xff]
    %v1097 = vld [vmem:[%s39 + $0x10] sm:$0xff]
    %v1098 = vld [vmem:[%s39 + $0x18] sm:$0xff]
    %v1099 = vld [vmem:[#allocation23] sm:$0x1]
    %v1101 = vlaneseq
    %v1102 = vshrl.u32 %v1101, 7
    %v1103 = vsub.s32 0, %v1102
    %v1104 = vrot.slane %v1099, %v1103
    %1106 = vmatprep.subr.mxu0 0.0
    %1107 = vmatpush1.msra.mxu0 0.0
    %1108 = vmatprep.subr.mxu0 0.0
    %1109 = vmatpush1.msra.mxu0 0.0
    %1110 = vmatprep.subr.mxu0 0.0
    %1111 = vmatpush1.msra.mxu0 0.0
    %1112 = vmatprep.subr.mxu0 0.0
    %1113 = vmatpush1.msra.mxu0 0.0
    %1114 = vmatprep.subr.mxu0 0.0
    %1115 = vmatpush1.msra.mxu0 0.0
    %1116 = vmatprep.subr.mxu0 0.0
    %1117 = vmatpush1.msra.mxu0 0.0
    %1118 = vmatprep.subr.mxu0 0.0
    %1119 = vmatpush1.msra.mxu0 0.0
    %1120 = vmatprep.subr.mxu0 0.0
    %1121 = vmatpush1.msra.mxu0 0.0
    %1122 = vmatprep.subr.mxu0 0.0
    %1123 = vmatpush1.msra.mxu0 0.0
    %1124 = vmatprep.subr.mxu0 0.0
    %1125 = vmatpush1.msra.mxu0 0.0
    %1126 = vmatprep.subr.mxu0 0.0
    %1127 = vmatpush1.msra.mxu0 0.0
    %1128 = vmatprep.subr.mxu0 0.0
    %1129 = vmatpush1.msra.mxu0 0.0
    %1130 = vmatprep.subr.mxu0 0.0
    %1131 = vmatpush1.msra.mxu0 %v1098
    %1132 = vmatprep.subr.mxu0 0.0
    %1133 = vmatpush1.msra.mxu0 %v1097
    %1134 = vmatprep.subr.mxu0 0.0
    %1135 = vmatpush1.msra.mxu0 %v1096
    %1136 = vmatprep.subr.mxu0 0.0
    %1137 = vmatpush1.msra.mxu0 %v1095
    %1138 = vmatprep.subr.mxu0 0.0
    %1139 = vmatpush2.msra.mxu0 0.0
    %1140 = vmatprep.subr.mxu0 0.0
    %1141 = vmatpush2.msra.mxu0 0.0
    %1142 = vmatprep.subr.mxu0 0.0
    %1143 = vmatpush2.msra.mxu0 0.0
    %1144 = vmatprep.subr.mxu0 0.0
    %1145 = vmatpush2.msra.mxu0 0.0
    %1146 = vmatprep.subr.mxu0 0.0
    %1147 = vmatpush2.msra.mxu0 0.0
    %1148 = vmatprep.subr.mxu0 0.0
    %1149 = vmatpush2.msra.mxu0 0.0
    %1150 = vmatprep.subr.mxu0 0.0
    %1151 = vmatpush2.msra.mxu0 0.0
    %1152 = vmatprep.subr.mxu0 0.0
    %1153 = vmatpush2.msra.mxu0 0.0
    %1154 = vmatprep.subr.mxu0 0.0
    %1155 = vmatpush2.msra.mxu0 0.0
    %1156 = vmatprep.subr.mxu0 0.0
    %1157 = vmatpush2.msra.mxu0 0.0
    %1158 = vmatprep.subr.mxu0 0.0
    %1159 = vmatpush2.msra.mxu0 0.0
    %1160 = vmatprep.subr.mxu0 0.0
    %1161 = vmatpush2.msra.mxu0 0.0
    %1162 = vmatprep.subr.mxu0 0.0
    %1163 = vmatpush2.msra.mxu0 0.0
    %1164 = vmatprep.subr.mxu0 0.0
    %1165 = vmatpush2.msra.mxu0 0.0
    %1166 = vmatprep.subr.mxu0 0.0
    %1167 = vmatpush2.msra.mxu0 0.0
    %1168 = vmatprep.subr.mxu0 0.0
    %1169 = vmatpush2.msra.mxu0 0.0
    %1170 = vmatprep.mubr.f32.mxu0 0.0
    %1171 = vmatmul.mubr.f32.gmra.mxu0 %v1015
    %v1172 = vpop.f32.mrf.mxu0
    %v1173 = vadd.f32 %v1104, %v1172
    %v1174 = vpop.f32.mrf.mxu0
    %1175 = vmatprep.mubr.f32.mxu0 0.0
    %1176 = vmatmul.mubr.f32.gmra.mxu0 %v1018
    %v1177 = vpop.f32.mrf.mxu0
    %v1178 = vadd.f32 %v1104, %v1177
    %v1179 = vpop.f32.mrf.mxu0
    %1180 = vdwg.mxu0
    %vm1181 = vcmask 15360
    %v1183 = vsel %vm1181, %v361, 0
    %v1186 = vsel %vm1181, %v362, 0
    %vm1188 = vcmask 1041408
    %v1190 = vsel %vm1188, %v1000, 0
    %1192 = vmatprep.subr.mxu0 0.0
    %1193 = vmatpush1.msra.mxu0 0.0
    %1194 = vmatprep.subr.mxu0 0.0
    %1195 = vmatpush1.msra.mxu0 0.0
    %1196 = vmatprep.subr.mxu0 0.0
    %1197 = vmatpush1.msra.mxu0 0.0
    %1198 = vmatprep.subr.mxu0 0.0
    %1199 = vmatpush1.msra.mxu0 0.0
    %1200 = vmatprep.subr.mxu0 0.0
    %1201 = vmatpush1.msra.mxu0 0.0
    %1202 = vmatprep.subr.mxu0 0.0
    %1203 = vmatpush1.msra.mxu0 0.0
    %1204 = vmatprep.subr.mxu0 0.0
    %1205 = vmatpush1.msra.mxu0 0.0
    %1206 = vmatprep.subr.mxu0 0.0
    %1207 = vmatpush1.msra.mxu0 0.0
    %1208 = vmatprep.subr.mxu0 0.0
    %1209 = vmatpush1.msra.mxu0 0.0
    %1210 = vmatprep.subr.mxu0 0.0
    %1211 = vmatpush1.msra.mxu0 0.0
    %1212 = vmatprep.subr.mxu0 0.0
    %1213 = vmatpush1.msra.mxu0 0.0
    %1214 = vmatprep.subr.mxu0 0.0
    %1215 = vmatpush1.msra.mxu0 0.0
    %1216 = vmatprep.subr.mxu0 0.0
    %1217 = vmatpush1.msra.mxu0 0.0
    %1218 = vmatprep.subr.mxu0 0.0
    %1219 = vmatpush1.msra.mxu0 0.0
    %1220 = vmatprep.subr.mxu0 0.0
    %1221 = vmatpush1.msra.mxu0 0.0
    %1222 = vmatprep.subr.mxu0 0.0
    %1223 = vmatpush1.msra.mxu0 %v1190
    %1224 = vmatprep.subr.mxu0 0.0
    %1225 = vmatpush2.msra.mxu0 0.0
    %1226 = vmatprep.subr.mxu0 0.0
    %1227 = vmatpush2.msra.mxu0 0.0
    %1228 = vmatprep.subr.mxu0 0.0
    %1229 = vmatpush2.msra.mxu0 0.0
    %1230 = vmatprep.subr.mxu0 0.0
    %1231 = vmatpush2.msra.mxu0 0.0
    %1232 = vmatprep.subr.mxu0 0.0
    %1233 = vmatpush2.msra.mxu0 0.0
    %1234 = vmatprep.subr.mxu0 0.0
    %1235 = vmatpush2.msra.mxu0 0.0
    %1236 = vmatprep.subr.mxu0 0.0
    %1237 = vmatpush2.msra.mxu0 0.0
    %1238 = vmatprep.subr.mxu0 0.0
    %1239 = vmatpush2.msra.mxu0 0.0
    %1240 = vmatprep.subr.mxu0 0.0
    %1241 = vmatpush2.msra.mxu0 0.0
    %1242 = vmatprep.subr.mxu0 0.0
    %1243 = vmatpush2.msra.mxu0 0.0
    %1244 = vmatprep.subr.mxu0 0.0
    %1245 = vmatpush2.msra.mxu0 0.0
    %1246 = vmatprep.subr.mxu0 0.0
    %1247 = vmatpush2.msra.mxu0 0.0
    %1248 = vmatprep.subr.mxu0 0.0
    %1249 = vmatpush2.msra.mxu0 0.0
    %1250 = vmatprep.subr.mxu0 0.0
    %1251 = vmatpush2.msra.mxu0 0.0
    %1252 = vmatprep.subr.mxu0 0.0
    %1253 = vmatpush2.msra.mxu0 0.0
    %1254 = vmatprep.subr.mxu0 0.0
    %1255 = vmatpush2.msra.mxu0 0.0
    %1256 = vmatprep.mubr.f32.mxu0 0.0
    %1257 = vmatmul.mubr.f32.gmra.mxu0 %v1183
    %v1258 = vpop.f32.mrf.mxu0
    %v1259 = vadd.f32 0.0, %v1258
    %v1260 = vpop.f32.mrf.mxu0
    %1261 = vmatprep.mubr.f32.mxu0 0.0
    %1262 = vmatmul.mubr.f32.gmra.mxu0 %v1186
    %v1263 = vpop.f32.mrf.mxu0
    %v1264 = vadd.f32 0.0, %v1263
    %v1265 = vpop.f32.mrf.mxu0
    %1266 = vdwg.mxu0
    %v1267 = vmul.f32 %v1259, %v1087
    %v1268 = vmul.f32 %v1264, %v1092
    %v1270 = vsel %vm929, %v1267, 0
    %v1273 = vsel %vm929, %v1268, 0
    %1275 = vmatprep.subr.mxu0 0.0
    %1276 = vmatpush1.msra.mxu0 0.0
    %1277 = vmatprep.subr.mxu0 0.0
    %1278 = vmatpush1.msra.mxu0 0.0
    %1279 = vmatprep.subr.mxu0 0.0
    %1280 = vmatpush1.msra.mxu0 0.0
    %1281 = vmatprep.subr.mxu0 0.0
    %1282 = vmatpush1.msra.mxu0 0.0
    %1283 = vmatprep.subr.mxu0 0.0
    %1284 = vmatpush1.msra.mxu0 0.0
    %1285 = vmatprep.subr.mxu0 0.0
    %1286 = vmatpush1.msra.mxu0 0.0
    %1287 = vmatprep.subr.mxu0 0.0
    %1288 = vmatpush1.msra.mxu0 0.0
    %1289 = vmatprep.subr.mxu0 0.0
    %1290 = vmatpush1.msra.mxu0 0.0
    %1291 = vmatprep.subr.mxu0 0.0
    %1292 = vmatpush1.msra.mxu0 0.0
    %1293 = vmatprep.subr.mxu0 0.0
    %1294 = vmatpush1.msra.mxu0 0.0
    %1295 = vmatprep.subr.mxu0 0.0
    %1296 = vmatpush1.msra.mxu0 0.0
    %1297 = vmatprep.subr.mxu0 0.0
    %1298 = vmatpush1.msra.mxu0 0.0
    %1299 = vmatprep.subr.mxu0 0.0
    %1300 = vmatpush1.msra.mxu0 %v366
    %1301 = vmatprep.subr.mxu0 0.0
    %1302 = vmatpush1.msra.mxu0 %v365
    %1303 = vmatprep.subr.mxu0 0.0
    %1304 = vmatpush1.msra.mxu0 %v364
    %1305 = vmatprep.subr.mxu0 0.0
    %1306 = vmatpush1.msra.mxu0 %v363
    %1307 = vmatprep.subr.mxu0 0.0
    %1308 = vmatpush2.msra.mxu0 0.0
    %1309 = vmatprep.subr.mxu0 0.0
    %1310 = vmatpush2.msra.mxu0 0.0
    %1311 = vmatprep.subr.mxu0 0.0
    %1312 = vmatpush2.msra.mxu0 0.0
    %1313 = vmatprep.subr.mxu0 0.0
    %1314 = vmatpush2.msra.mxu0 0.0
    %1315 = vmatprep.subr.mxu0 0.0
    %1316 = vmatpush2.msra.mxu0 0.0
    %1317 = vmatprep.subr.mxu0 0.0
    %1318 = vmatpush2.msra.mxu0 0.0
    %1319 = vmatprep.subr.mxu0 0.0
    %1320 = vmatpush2.msra.mxu0 0.0
    %1321 = vmatprep.subr.mxu0 0.0
    %1322 = vmatpush2.msra.mxu0 0.0
    %1323 = vmatprep.subr.mxu0 0.0
    %1324 = vmatpush2.msra.mxu0 0.0
    %1325 = vmatprep.subr.mxu0 0.0
    %1326 = vmatpush2.msra.mxu0 0.0
    %1327 = vmatprep.subr.mxu0 0.0
    %1328 = vmatpush2.msra.mxu0 0.0
    %1329 = vmatprep.subr.mxu0 0.0
    %1330 = vmatpush2.msra.mxu0 0.0
    %1331 = vmatprep.subr.mxu0 0.0
    %1332 = vmatpush2.msra.mxu0 0.0
    %1333 = vmatprep.subr.mxu0 0.0
    %1334 = vmatpush2.msra.mxu0 0.0
    %1335 = vmatprep.subr.mxu0 0.0
    %1336 = vmatpush2.msra.mxu0 0.0
    %1337 = vmatprep.subr.mxu0 0.0
    %1338 = vmatpush2.msra.mxu0 0.0
    %1339 = vmatprep.mubr.f32.mxu0 0.0
    %1340 = vmatmul.mubr.f32.gmra.mxu0 %v1270
    %v1341 = vpop.f32.mrf.mxu0
    %v1342 = vadd.f32 0.0, %v1341
    %v1343 = vpop.f32.mrf.mxu0
    %1344 = vmatprep.mubr.f32.mxu0 0.0
    %1345 = vmatmul.mubr.f32.gmra.mxu0 %v1273
    %v1346 = vpop.f32.mrf.mxu0
    %v1347 = vadd.f32 0.0, %v1346
    %v1348 = vpop.f32.mrf.mxu0
    %1349 = vdwg.mxu0
    %v1350 = vmul.f32 %v1342, 0.25
    %v1351 = vmul.f32 %v1347, 0.25
    %1353 = vset.pattern.permute.xlu0 0
    %1354 = vperm.xlu0 %1353, %v368
    %v1355 = vpop.permute.xlu0 %1354
    %1358 = vset.pattern.permute.xlu0 0
    %1359 = vperm.xlu0 %1358, %v369
    %v1360 = vpop.permute.xlu0 %1359
    %v1362 = vadd.f32 %v1350, %v1355
    %v1363 = vadd.f32 %v1351, %v1360
    %v1364 = vsel %vm1181, %v1362, -inf
    %v1365 = vrot.slane %v1364, 4
    %v1366 = vmax.f32 %v1364, %v1365
    %v1367 = vrot.slane %v1366, 2
    %v1368 = vmax.f32 %v1366, %v1367
    %v1369 = vrot.slane %v1368, 1
    %v1370 = vmax.f32 %v1368, %v1369
    %v1371 = vsel %vm1181, %v1363, -inf
    %v1372 = vrot.slane %v1371, 4
    %v1373 = vmax.f32 %v1371, %v1372
    %v1374 = vrot.slane %v1373, 2
    %v1375 = vmax.f32 %v1373, %v1374
    %v1376 = vrot.slane %v1375, 1
    %v1377 = vmax.f32 %v1375, %v1376
    %vm1380 = vcmask 1041409
    %v1381 = vsel %vm1380, %v1377, %v1370
    %v1382 = vsel %vm1188, %v1381, 0
    %1384 = vmatprep.subr.mxu0 0.0
    %1385 = vmatpush1.msra.mxu0 0.0
    %1386 = vmatprep.subr.mxu0 0.0
    %1387 = vmatpush1.msra.mxu0 0.0
    %1388 = vmatprep.subr.mxu0 0.0
    %1389 = vmatpush1.msra.mxu0 0.0
    %1390 = vmatprep.subr.mxu0 0.0
    %1391 = vmatpush1.msra.mxu0 0.0
    %1392 = vmatprep.subr.mxu0 0.0
    %1393 = vmatpush1.msra.mxu0 0.0
    %1394 = vmatprep.subr.mxu0 0.0
    %1395 = vmatpush1.msra.mxu0 0.0
    %1396 = vmatprep.subr.mxu0 0.0
    %1397 = vmatpush1.msra.mxu0 0.0
    %1398 = vmatprep.subr.mxu0 0.0
    %1399 = vmatpush1.msra.mxu0 0.0
    %1400 = vmatprep.subr.mxu0 0.0
    %1401 = vmatpush1.msra.mxu0 0.0
    %1402 = vmatprep.subr.mxu0 0.0
    %1403 = vmatpush1.msra.mxu0 0.0
    %1404 = vmatprep.subr.mxu0 0.0
    %1405 = vmatpush1.msra.mxu0 0.0
    %1406 = vmatprep.subr.mxu0 0.0
    %1407 = vmatpush1.msra.mxu0 0.0
    %1408 = vmatprep.subr.mxu0 0.0
    %1409 = vmatpush1.msra.mxu0 0.0
    %1410 = vmatprep.subr.mxu0 0.0
    %1411 = vmatpush1.msra.mxu0 0.0
    %1412 = vmatprep.subr.mxu0 0.0
    %1413 = vmatpush1.msra.mxu0 0.0
    %1414 = vmatprep.subr.mxu0 0.0
    %1415 = vmatpush1.msra.mxu0 %v1382
    %1416 = vmatprep.subr.mxu0 0.0
    %1417 = vmatpush2.msra.mxu0 0.0
    %1418 = vmatprep.subr.mxu0 0.0
    %1419 = vmatpush2.msra.mxu0 0.0
    %1420 = vmatprep.subr.mxu0 0.0
    %1421 = vmatpush2.msra.mxu0 0.0
    %1422 = vmatprep.subr.mxu0 0.0
    %1423 = vmatpush2.msra.mxu0 0.0
    %1424 = vmatprep.subr.mxu0 0.0
    %1425 = vmatpush2.msra.mxu0 0.0
    %1426 = vmatprep.subr.mxu0 0.0
    %1427 = vmatpush2.msra.mxu0 0.0
    %1428 = vmatprep.subr.mxu0 0.0
    %1429 = vmatpush2.msra.mxu0 0.0
    %1430 = vmatprep.subr.mxu0 0.0
    %1431 = vmatpush2.msra.mxu0 0.0
    %1432 = vmatprep.subr.mxu0 0.0
    %1433 = vmatpush2.msra.mxu0 0.0
    %1434 = vmatprep.subr.mxu0 0.0
    %1435 = vmatpush2.msra.mxu0 0.0
    %1436 = vmatprep.subr.mxu0 0.0
    %1437 = vmatpush2.msra.mxu0 0.0
    %1438 = vmatprep.subr.mxu0 0.0
    %1439 = vmatpush2.msra.mxu0 0.0
    %1440 = vmatprep.subr.mxu0 0.0
    %1441 = vmatpush2.msra.mxu0 0.0
    %1442 = vmatprep.subr.mxu0 0.0
    %1443 = vmatpush2.msra.mxu0 0.0
    %1444 = vmatprep.subr.mxu0 0.0
    %1445 = vmatpush2.msra.mxu0 0.0
    %1446 = vmatprep.subr.mxu0 0.0
    %1447 = vmatpush2.msra.mxu0 0.0
    %1448 = vmatprep.mubr.f32.mxu0 0.0
    %1449 = vmatmul.mubr.f32.gmra.mxu0 %v1183
    %v1450 = vpop.f32.mrf.mxu0
    %v1451 = vadd.f32 0.0, %v1450
    %v1452 = vpop.f32.mrf.mxu0
    %1453 = vmatprep.mubr.f32.mxu0 0.0
    %1454 = vmatmul.mubr.f32.gmra.mxu0 %v1186
    %v1455 = vpop.f32.mrf.mxu0
    %v1456 = vadd.f32 0.0, %v1455
    %v1457 = vpop.f32.mrf.mxu0
    %1458 = vdwg.mxu0
    %v1459 = vsub.f32 %v1362, %v1451
    %v1460 = vsub.f32 %v1363, %v1456
    %v1461 = vmul.f32 %v1459, 1.442695
    %v1462 = vpow.pop %v1461
    %v1463 = vmul.f32 %v1460, 1.442695
    %v1464 = vpow.pop %v1463
    %1465 = vmatprep.subr.mxu0 0.0
    %1466 = vmatpush1.msra.mxu0 0.0
    %1467 = vmatprep.subr.mxu0 0.0
    %1468 = vmatpush1.msra.mxu0 0.0
    %1469 = vmatprep.subr.mxu0 0.0
    %1470 = vmatpush1.msra.mxu0 0.0
    %1471 = vmatprep.subr.mxu0 0.0
    %1472 = vmatpush1.msra.mxu0 0.0
    %1473 = vmatprep.subr.mxu0 0.0
    %1474 = vmatpush1.msra.mxu0 0.0
    %1475 = vmatprep.subr.mxu0 0.0
    %1476 = vmatpush1.msra.mxu0 0.0
    %1477 = vmatprep.subr.mxu0 0.0
    %1478 = vmatpush1.msra.mxu0 0.0
    %1479 = vmatprep.subr.mxu0 0.0
    %1480 = vmatpush1.msra.mxu0 0.0
    %1481 = vmatprep.subr.mxu0 0.0
    %1482 = vmatpush1.msra.mxu0 0.0
    %1483 = vmatprep.subr.mxu0 0.0
    %1484 = vmatpush1.msra.mxu0 0.0
    %1485 = vmatprep.subr.mxu0 0.0
    %1486 = vmatpush1.msra.mxu0 0.0
    %1487 = vmatprep.subr.mxu0 0.0
    %1488 = vmatpush1.msra.mxu0 0.0
    %1489 = vmatprep.subr.mxu0 0.0
    %1490 = vmatpush1.msra.mxu0 0.0
    %1491 = vmatprep.subr.mxu0 0.0
    %1492 = vmatpush1.msra.mxu0 0.0
    %1493 = vmatprep.subr.mxu0 0.0
    %1494 = vmatpush1.msra.mxu0 %v1464
    %1495 = vmatprep.subr.mxu0 0.0
    %1496 = vmatpush1.msra.mxu0 %v1462
    %1497 = vmatprep.subr.mxu0 0.0
    %1498 = vmatpush2.msra.mxu0 0.0
    %1499 = vmatprep.subr.mxu0 0.0
    %1500 = vmatpush2.msra.mxu0 0.0
    %1501 = vmatprep.subr.mxu0 0.0
    %1502 = vmatpush2.msra.mxu0 0.0
    %1503 = vmatprep.subr.mxu0 0.0
    %1504 = vmatpush2.msra.mxu0 0.0
    %1505 = vmatprep.subr.mxu0 0.0
    %1506 = vmatpush2.msra.mxu0 0.0
    %1507 = vmatprep.subr.mxu0 0.0
    %1508 = vmatpush2.msra.mxu0 0.0
    %1509 = vmatprep.subr.mxu0 0.0
    %1510 = vmatpush2.msra.mxu0 0.0
    %1511 = vmatprep.subr.mxu0 0.0
    %1512 = vmatpush2.msra.mxu0 0.0
    %1513 = vmatprep.subr.mxu0 0.0
    %1514 = vmatpush2.msra.mxu0 0.0
    %1515 = vmatprep.subr.mxu0 0.0
    %1516 = vmatpush2.msra.mxu0 0.0
    %1517 = vmatprep.subr.mxu0 0.0
    %1518 = vmatpush2.msra.mxu0 0.0
    %1519 = vmatprep.subr.mxu0 0.0
    %1520 = vmatpush2.msra.mxu0 0.0
    %1521 = vmatprep.subr.mxu0 0.0
    %1522 = vmatpush2.msra.mxu0 0.0
    %1523 = vmatprep.subr.mxu0 0.0
    %1524 = vmatpush2.msra.mxu0 0.0
    %1525 = vmatprep.subr.mxu0 0.0
    %1526 = vmatpush2.msra.mxu0 0.0
    %1527 = vmatprep.subr.mxu0 0.0
    %1528 = vmatpush2.msra.mxu0 0.0
    %1529 = vmatprep.mubr.f32.mxu0 0.0
    %1530 = vmatmul.mubr.f32.gmra.mxu0 %v372
    %v1531 = vpop.f32.mrf.mxu0
    %v1532 = vadd.f32 0.0, %v1531
    %v1533 = vpop.f32.mrf.mxu0
    %1534 = vdwg.mxu0
    %v1535 = vrcp.pop %v1532
    %v1537 = vsel %vm1188, %v1535, 0
    %1539 = vmatprep.subr.mxu0 0.0
    %1540 = vmatpush1.msra.mxu0 0.0
    %1541 = vmatprep.subr.mxu0 0.0
    %1542 = vmatpush1.msra.mxu0 0.0
    %1543 = vmatprep.subr.mxu0 0.0
    %1544 = vmatpush1.msra.mxu0 0.0
    %1545 = vmatprep.subr.mxu0 0.0
    %1546 = vmatpush1.msra.mxu0 0.0
    %1547 = vmatprep.subr.mxu0 0.0
    %1548 = vmatpush1.msra.mxu0 0.0
    %1549 = vmatprep.subr.mxu0 0.0
    %1550 = vmatpush1.msra.mxu0 0.0
    %1551 = vmatprep.subr.mxu0 0.0
    %1552 = vmatpush1.msra.mxu0 0.0
    %1553 = vmatprep.subr.mxu0 0.0
    %1554 = vmatpush1.msra.mxu0 0.0
    %1555 = vmatprep.subr.mxu0 0.0
    %1556 = vmatpush1.msra.mxu0 0.0
    %1557 = vmatprep.subr.mxu0 0.0
    %1558 = vmatpush1.msra.mxu0 0.0
    %1559 = vmatprep.subr.mxu0 0.0
    %1560 = vmatpush1.msra.mxu0 0.0
    %1561 = vmatprep.subr.mxu0 0.0
    %1562 = vmatpush1.msra.mxu0 0.0
    %1563 = vmatprep.subr.mxu0 0.0
    %1564 = vmatpush1.msra.mxu0 0.0
    %1565 = vmatprep.subr.mxu0 0.0
    %1566 = vmatpush1.msra.mxu0 0.0
    %1567 = vmatprep.subr.mxu0 0.0
    %1568 = vmatpush1.msra.mxu0 0.0
    %1569 = vmatprep.subr.mxu0 0.0
    %1570 = vmatpush1.msra.mxu0 %v1537
    %1571 = vmatprep.subr.mxu0 0.0
    %1572 = vmatpush2.msra.mxu0 0.0
    %1573 = vmatprep.subr.mxu0 0.0
    %1574 = vmatpush2.msra.mxu0 0.0
    %1575 = vmatprep.subr.mxu0 0.0
    %1576 = vmatpush2.msra.mxu0 0.0
    %1577 = vmatprep.subr.mxu0 0.0
    %1578 = vmatpush2.msra.mxu0 0.0
    %1579 = vmatprep.subr.mxu0 0.0
    %1580 = vmatpush2.msra.mxu0 0.0
    %1581 = vmatprep.subr.mxu0 0.0
    %1582 = vmatpush2.msra.mxu0 0.0
    %1583 = vmatprep.subr.mxu0 0.0
    %1584 = vmatpush2.msra.mxu0 0.0
    %1585 = vmatprep.subr.mxu0 0.0
    %1586 = vmatpush2.msra.mxu0 0.0
    %1587 = vmatprep.subr.mxu0 0.0
    %1588 = vmatpush2.msra.mxu0 0.0
    %1589 = vmatprep.subr.mxu0 0.0
    %1590 = vmatpush2.msra.mxu0 0.0
    %1591 = vmatprep.subr.mxu0 0.0
    %1592 = vmatpush2.msra.mxu0 0.0
    %1593 = vmatprep.subr.mxu0 0.0
    %1594 = vmatpush2.msra.mxu0 0.0
    %1595 = vmatprep.subr.mxu0 0.0
    %1596 = vmatpush2.msra.mxu0 0.0
    %1597 = vmatprep.subr.mxu0 0.0
    %1598 = vmatpush2.msra.mxu0 0.0
    %1599 = vmatprep.subr.mxu0 0.0
    %1600 = vmatpush2.msra.mxu0 0.0
    %1601 = vmatprep.subr.mxu0 0.0
    %1602 = vmatpush2.msra.mxu0 0.0
    %1603 = vmatprep.mubr.f32.mxu0 0.0
    %1604 = vmatmul.mubr.f32.gmra.mxu0 %v1183
    %v1605 = vpop.f32.mrf.mxu0
    %v1606 = vadd.f32 0.0, %v1605
    %v1607 = vpop.f32.mrf.mxu0
    %1608 = vmatprep.mubr.f32.mxu0 0.0
    %1609 = vmatmul.mubr.f32.gmra.mxu0 %v1186
    %v1610 = vpop.f32.mrf.mxu0
    %v1611 = vadd.f32 0.0, %v1610
    %v1612 = vpop.f32.mrf.mxu0
    %1613 = vdwg.mxu0
    %v1614 = vmul.f32 %v1462, %v1606
    %v1615 = vmul.f32 %v1464, %v1611
    %v1617 = vsel %vm1181, %v1614, 0
    %v1620 = vsel %vm1181, %v1615, 0
    %v1623 = vsel %vm1188, %v367, 0
    %1625 = vmatprep.subr.mxu0 0.0
    %1626 = vmatpush1.msra.mxu0 0.0
    %1627 = vmatprep.subr.mxu0 0.0
    %1628 = vmatpush1.msra.mxu0 0.0
    %1629 = vmatprep.subr.mxu0 0.0
    %1630 = vmatpush1.msra.mxu0 0.0
    %1631 = vmatprep.subr.mxu0 0.0
    %1632 = vmatpush1.msra.mxu0 0.0
    %1633 = vmatprep.subr.mxu0 0.0
    %1634 = vmatpush1.msra.mxu0 0.0
    %1635 = vmatprep.subr.mxu0 0.0
    %1636 = vmatpush1.msra.mxu0 0.0
    %1637 = vmatprep.subr.mxu0 0.0
    %1638 = vmatpush1.msra.mxu0 0.0
    %1639 = vmatprep.subr.mxu0 0.0
    %1640 = vmatpush1.msra.mxu0 0.0
    %1641 = vmatprep.subr.mxu0 0.0
    %1642 = vmatpush1.msra.mxu0 0.0
    %1643 = vmatprep.subr.mxu0 0.0
    %1644 = vmatpush1.msra.mxu0 0.0
    %1645 = vmatprep.subr.mxu0 0.0
    %1646 = vmatpush1.msra.mxu0 0.0
    %1647 = vmatprep.subr.mxu0 0.0
    %1648 = vmatpush1.msra.mxu0 0.0
    %1649 = vmatprep.subr.mxu0 0.0
    %1650 = vmatpush1.msra.mxu0 0.0
    %1651 = vmatprep.subr.mxu0 0.0
    %1652 = vmatpush1.msra.mxu0 0.0
    %1653 = vmatprep.subr.mxu0 0.0
    %1654 = vmatpush1.msra.mxu0 0.0
    %1655 = vmatprep.subr.mxu0 0.0
    %1656 = vmatpush1.msra.mxu0 %v1623
    %1657 = vmatprep.subr.mxu0 0.0
    %1658 = vmatpush2.msra.mxu0 0.0
    %1659 = vmatprep.subr.mxu0 0.0
    %1660 = vmatpush2.msra.mxu0 0.0
    %1661 = vmatprep.subr.mxu0 0.0
    %1662 = vmatpush2.msra.mxu0 0.0
    %1663 = vmatprep.subr.mxu0 0.0
    %1664 = vmatpush2.msra.mxu0 0.0
    %1665 = vmatprep.subr.mxu0 0.0
    %1666 = vmatpush2.msra.mxu0 0.0
    %1667 = vmatprep.subr.mxu0 0.0
    %1668 = vmatpush2.msra.mxu0 0.0
    %1669 = vmatprep.subr.mxu0 0.0
    %1670 = vmatpush2.msra.mxu0 0.0
    %1671 = vmatprep.subr.mxu0 0.0
    %1672 = vmatpush2.msra.mxu0 0.0
    %1673 = vmatprep.subr.mxu0 0.0
    %1674 = vmatpush2.msra.mxu0 0.0
    %1675 = vmatprep.subr.mxu0 0.0
    %1676 = vmatpush2.msra.mxu0 0.0
    %1677 = vmatprep.subr.mxu0 0.0
    %1678 = vmatpush2.msra.mxu0 0.0
    %1679 = vmatprep.subr.mxu0 0.0
    %1680 = vmatpush2.msra.mxu0 0.0
    %1681 = vmatprep.subr.mxu0 0.0
    %1682 = vmatpush2.msra.mxu0 0.0
    %1683 = vmatprep.subr.mxu0 0.0
    %1684 = vmatpush2.msra.mxu0 0.0
    %1685 = vmatprep.subr.mxu0 0.0
    %1686 = vmatpush2.msra.mxu0 0.0
    %1687 = vmatprep.subr.mxu0 0.0
    %1688 = vmatpush2.msra.mxu0 0.0
    %1689 = vmatprep.mubr.f32.mxu0 0.0
    %1690 = vmatmul.mubr.f32.gmra.mxu0 %v1617
    %v1691 = vpop.f32.mrf.mxu0
    %v1692 = vadd.f32 0.0, %v1691
    %v1693 = vpop.f32.mrf.mxu0
    %1694 = vmatprep.mubr.f32.mxu0 0.0
    %1695 = vmatmul.mubr.f32.gmra.mxu0 %v1620
    %v1696 = vpop.f32.mrf.mxu0
    %v1697 = vadd.f32 0.0, %v1696
    %v1698 = vpop.f32.mrf.mxu0
    %1699 = vdwg.mxu0
    %v1700 = vmul.f32 %v1692, %v1173
    %v1701 = vmul.f32 %v1697, %v1178
    %1702 = vmatprep.subr.mxu0 0.0
    %1703 = vmatpush1.msra.mxu0 0.0
    %1704 = vmatprep.subr.mxu0 0.0
    %1705 = vmatpush1.msra.mxu0 0.0
    %1706 = vmatprep.subr.mxu0 0.0
    %1707 = vmatpush1.msra.mxu0 0.0
    %1708 = vmatprep.subr.mxu0 0.0
    %1709 = vmatpush1.msra.mxu0 0.0
    %1710 = vmatprep.subr.mxu0 0.0
    %1711 = vmatpush1.msra.mxu0 0.0
    %1712 = vmatprep.subr.mxu0 0.0
    %1713 = vmatpush1.msra.mxu0 0.0
    %1714 = vmatprep.subr.mxu0 0.0
    %1715 = vmatpush1.msra.mxu0 0.0
    %1716 = vmatprep.subr.mxu0 0.0
    %1717 = vmatpush1.msra.mxu0 0.0
    %1718 = vmatprep.subr.mxu0 0.0
    %1719 = vmatpush1.msra.mxu0 0.0
    %1720 = vmatprep.subr.mxu0 0.0
    %1721 = vmatpush1.msra.mxu0 0.0
    %1722 = vmatprep.subr.mxu0 0.0
    %1723 = vmatpush1.msra.mxu0 0.0
    %1724 = vmatprep.subr.mxu0 0.0
    %1725 = vmatpush1.msra.mxu0 0.0
    %1726 = vmatprep.subr.mxu0 0.0
    %1727 = vmatpush1.msra.mxu0 0.0
    %1728 = vmatprep.subr.mxu0 0.0
    %1729 = vmatpush1.msra.mxu0 0.0
    %1730 = vmatprep.subr.mxu0 0.0
    %1731 = vmatpush1.msra.mxu0 %v1701
    %1732 = vmatprep.subr.mxu0 0.0
    %1733 = vmatpush1.msra.mxu0 %v1700
    %1734 = vmatprep.subr.mxu0 0.0
    %1735 = vmatpush2.msra.mxu0 0.0
    %1736 = vmatprep.subr.mxu0 0.0
    %1737 = vmatpush2.msra.mxu0 0.0
    %1738 = vmatprep.subr.mxu0 0.0
    %1739 = vmatpush2.msra.mxu0 0.0
    %1740 = vmatprep.subr.mxu0 0.0
    %1741 = vmatpush2.msra.mxu0 0.0
    %1742 = vmatprep.subr.mxu0 0.0
    %1743 = vmatpush2.msra.mxu0 0.0
    %1744 = vmatprep.subr.mxu0 0.0
    %1745 = vmatpush2.msra.mxu0 0.0
    %1746 = vmatprep.subr.mxu0 0.0
    %1747 = vmatpush2.msra.mxu0 0.0
    %1748 = vmatprep.subr.mxu0 0.0
    %1749 = vmatpush2.msra.mxu0 0.0
    %1750 = vmatprep.subr.mxu0 0.0
    %1751 = vmatpush2.msra.mxu0 0.0
    %1752 = vmatprep.subr.mxu0 0.0
    %1753 = vmatpush2.msra.mxu0 0.0
    %1754 = vmatprep.subr.mxu0 0.0
    %1755 = vmatpush2.msra.mxu0 0.0
    %1756 = vmatprep.subr.mxu0 0.0
    %1757 = vmatpush2.msra.mxu0 0.0
    %1758 = vmatprep.subr.mxu0 0.0
    %1759 = vmatpush2.msra.mxu0 0.0
    %1760 = vmatprep.subr.mxu0 0.0
    %1761 = vmatpush2.msra.mxu0 0.0
    %1762 = vmatprep.subr.mxu0 0.0
    %1763 = vmatpush2.msra.mxu0 0.0
    %1764 = vmatprep.subr.mxu0 0.0
    %1765 = vmatpush2.msra.mxu0 0.0
    %1766 = vmatprep.mubr.f32.mxu0 0.0
    %1767 = vmatmul.mubr.f32.gmra.mxu0 %v372
    %v1768 = vpop.f32.mrf.mxu0
    %v1769 = vadd.f32 0.0, %v1768
    %v1770 = vpop.f32.mrf.mxu0
    %1771 = vdwg.mxu0
    %v1772 = vld [vmem:[%s43] sm:$0xff]
    %v1773 = vld [vmem:[%s43 + $0x8] sm:$0xff]
    %v1774 = vld [vmem:[%s43 + $0x10] sm:$0xff]
    %v1775 = vld [vmem:[%s43 + $0x18] sm:$0xff]
    %v1776 = vld [vmem:[#allocation25] sm:$0x1]
    %v1778 = vlaneseq
    %v1779 = vshrl.u32 %v1778, 7
    %v1780 = vsub.s32 0, %v1779
    %v1781 = vrot.slane %v1776, %v1780
    %v1784 = vsel %vm929, %v1769, 0
    %1786 = vmatprep.subr.mxu0 0.0
    %1787 = vmatpush1.msra.mxu0 0.0
    %1788 = vmatprep.subr.mxu0 0.0
    %1789 = vmatpush1.msra.mxu0 0.0
    %1790 = vmatprep.subr.mxu0 0.0
    %1791 = vmatpush1.msra.mxu0 0.0
    %1792 = vmatprep.subr.mxu0 0.0
    %1793 = vmatpush1.msra.mxu0 0.0
    %1794 = vmatprep.subr.mxu0 0.0
    %1795 = vmatpush1.msra.mxu0 0.0
    %1796 = vmatprep.subr.mxu0 0.0
    %1797 = vmatpush1.msra.mxu0 0.0
    %1798 = vmatprep.subr.mxu0 0.0
    %1799 = vmatpush1.msra.mxu0 0.0
    %1800 = vmatprep.subr.mxu0 0.0
    %1801 = vmatpush1.msra.mxu0 0.0
    %1802 = vmatprep.subr.mxu0 0.0
    %1803 = vmatpush1.msra.mxu0 0.0
    %1804 = vmatprep.subr.mxu0 0.0
    %1805 = vmatpush1.msra.mxu0 0.0
    %1806 = vmatprep.subr.mxu0 0.0
    %1807 = vmatpush1.msra.mxu0 0.0
    %1808 = vmatprep.subr.mxu0 0.0
    %1809 = vmatpush1.msra.mxu0 0.0
    %1810 = vmatprep.subr.mxu0 0.0
    %1811 = vmatpush1.msra.mxu0 %v1775
    %1812 = vmatprep.subr.mxu0 0.0
    %1813 = vmatpush1.msra.mxu0 %v1774
    %1814 = vmatprep.subr.mxu0 0.0
    %1815 = vmatpush1.msra.mxu0 %v1773
    %1816 = vmatprep.subr.mxu0 0.0
    %1817 = vmatpush1.msra.mxu0 %v1772
    %1818 = vmatprep.subr.mxu0 0.0
    %1819 = vmatpush2.msra.mxu0 0.0
    %1820 = vmatprep.subr.mxu0 0.0
    %1821 = vmatpush2.msra.mxu0 0.0
    %1822 = vmatprep.subr.mxu0 0.0
    %1823 = vmatpush2.msra.mxu0 0.0
    %1824 = vmatprep.subr.mxu0 0.0
    %1825 = vmatpush2.msra.mxu0 0.0
    %1826 = vmatprep.subr.mxu0 0.0
    %1827 = vmatpush2.msra.mxu0 0.0
    %1828 = vmatprep.subr.mxu0 0.0
    %1829 = vmatpush2.msra.mxu0 0.0
    %1830 = vmatprep.subr.mxu0 0.0
    %1831 = vmatpush2.msra.mxu0 0.0
    %1832 = vmatprep.subr.mxu0 0.0
    %1833 = vmatpush2.msra.mxu0 0.0
    %1834 = vmatprep.subr.mxu0 0.0
    %1835 = vmatpush2.msra.mxu0 0.0
    %1836 = vmatprep.subr.mxu0 0.0
    %1837 = vmatpush2.msra.mxu0 0.0
    %1838 = vmatprep.subr.mxu0 0.0
    %1839 = vmatpush2.msra.mxu0 0.0
    %1840 = vmatprep.subr.mxu0 0.0
    %1841 = vmatpush2.msra.mxu0 0.0
    %1842 = vmatprep.subr.mxu0 0.0
    %1843 = vmatpush2.msra.mxu0 0.0
    %1844 = vmatprep.subr.mxu0 0.0
    %1845 = vmatpush2.msra.mxu0 0.0
    %1846 = vmatprep.subr.mxu0 0.0
    %1847 = vmatpush2.msra.mxu0 0.0
    %1848 = vmatprep.subr.mxu0 0.0
    %1849 = vmatpush2.msra.mxu0 0.0
    %1850 = vmatprep.mubr.f32.mxu0 0.0
    %1851 = vmatmul.mubr.f32.gmra.mxu0 %v1784
    %v1852 = vpop.f32.mrf.mxu0
    %v1853 = vadd.f32 %v1781, %v1852
    %v1854 = vpop.f32.mrf.mxu0
    %1855 = vdwg.mxu0
    %v1856 = vld [vmem:[%s47] sm:$0xff]
    %v1857 = vld [vmem:[%s47 + $0x8] sm:$0xff]
    %v1858 = vld [vmem:[%s47 + $0x10] sm:$0xff]
    %v1859 = vld [vmem:[%s47 + $0x18] sm:$0xff]
    %v1860 = vld [vmem:[%s49] sm:$0x1]
    %v1862 = vlaneseq
    %v1863 = vshrl.u32 %v1862, 7
    %v1864 = vsub.s32 0, %v1863
    %v1865 = vrot.slane %v1860, %v1864
    %v1867 = vmul.f32 %v622, %v1865
    %v1869 = vsel %vm929, %v1853, 0
    %1871 = vmatprep.subr.mxu0 0.0
    %1872 = vmatpush1.msra.mxu0 0.0
    %1873 = vmatprep.subr.mxu0 0.0
    %1874 = vmatpush1.msra.mxu0 0.0
    %1875 = vmatprep.subr.mxu0 0.0
    %1876 = vmatpush1.msra.mxu0 0.0
    %1877 = vmatprep.subr.mxu0 0.0
    %1878 = vmatpush1.msra.mxu0 0.0
    %1879 = vmatprep.subr.mxu0 0.0
    %1880 = vmatpush1.msra.mxu0 0.0
    %1881 = vmatprep.subr.mxu0 0.0
    %1882 = vmatpush1.msra.mxu0 0.0
    %1883 = vmatprep.subr.mxu0 0.0
    %1884 = vmatpush1.msra.mxu0 0.0
    %1885 = vmatprep.subr.mxu0 0.0
    %1886 = vmatpush1.msra.mxu0 0.0
    %1887 = vmatprep.subr.mxu0 0.0
    %1888 = vmatpush1.msra.mxu0 0.0
    %1889 = vmatprep.subr.mxu0 0.0
    %1890 = vmatpush1.msra.mxu0 0.0
    %1891 = vmatprep.subr.mxu0 0.0
    %1892 = vmatpush1.msra.mxu0 0.0
    %1893 = vmatprep.subr.mxu0 0.0
    %1894 = vmatpush1.msra.mxu0 0.0
    %1895 = vmatprep.subr.mxu0 0.0
    %1896 = vmatpush1.msra.mxu0 %v1859
    %1897 = vmatprep.subr.mxu0 0.0
    %1898 = vmatpush1.msra.mxu0 %v1858
    %1899 = vmatprep.subr.mxu0 0.0
    %1900 = vmatpush1.msra.mxu0 %v1857
    %1901 = vmatprep.subr.mxu0 0.0
    %1902 = vmatpush1.msra.mxu0 %v1856
    %1903 = vmatprep.subr.mxu0 0.0
    %1904 = vmatpush2.msra.mxu0 0.0
    %1905 = vmatprep.subr.mxu0 0.0
    %1906 = vmatpush2.msra.mxu0 0.0
    %1907 = vmatprep.subr.mxu0 0.0
    %1908 = vmatpush2.msra.mxu0 0.0
    %1909 = vmatprep.subr.mxu0 0.0
    %1910 = vmatpush2.msra.mxu0 0.0
    %1911 = vmatprep.subr.mxu0 0.0
    %1912 = vmatpush2.msra.mxu0 0.0
    %1913 = vmatprep.subr.mxu0 0.0
    %1914 = vmatpush2.msra.mxu0 0.0
    %1915 = vmatprep.subr.mxu0 0.0
    %1916 = vmatpush2.msra.mxu0 0.0
    %1917 = vmatprep.subr.mxu0 0.0
    %1918 = vmatpush2.msra.mxu0 0.0
    %1919 = vmatprep.subr.mxu0 0.0
    %1920 = vmatpush2.msra.mxu0 0.0
    %1921 = vmatprep.subr.mxu0 0.0
    %1922 = vmatpush2.msra.mxu0 0.0
    %1923 = vmatprep.subr.mxu0 0.0
    %1924 = vmatpush2.msra.mxu0 0.0
    %1925 = vmatprep.subr.mxu0 0.0
    %1926 = vmatpush2.msra.mxu0 0.0
    %1927 = vmatprep.subr.mxu0 0.0
    %1928 = vmatpush2.msra.mxu0 0.0
    %1929 = vmatprep.subr.mxu0 0.0
    %1930 = vmatpush2.msra.mxu0 0.0
    %1931 = vmatprep.subr.mxu0 0.0
    %1932 = vmatpush2.msra.mxu0 0.0
    %1933 = vmatprep.subr.mxu0 0.0
    %1934 = vmatpush2.msra.mxu0 0.0
    %1935 = vmatprep.mubr.f32.mxu0 0.0
    %1936 = vmatmul.mubr.f32.gmra.mxu0 %v1869
    %v1937 = vpop.f32.mrf.mxu0
    %v1938 = vadd.f32 %v1867, %v1937
    %v1939 = vpop.f32.mrf.mxu0
    %1940 = vdwg.mxu0
    %v1941 = vld [vmem:[%s51] sm:$0x1]
    %v1943 = vlaneseq
    %v1944 = vshrl.u32 %v1943, 7
    %v1945 = vsub.s32 0, %v1944
    %v1946 = vrot.slane %v1941, %v1945
    %v1948 = vadd.f32 %v1938, %v1946
    %vm1949 = vcmp.ge.f32.partialorder %v1948, 0.0
    %v1950 = vmul.f32 %v1948, 0.01
    %v1951 = vsel %vm1949, %v1948, %v1950
    %v1952 = vld [vmem:[%s55] sm:$0xff]
    %v1953 = vld [vmem:[%s55 + $0x8] sm:$0xff]
    %v1955 = vsel %vm370, %v1951, 0
    %1957 = vmatprep.subr.mxu0 0.0
    %1958 = vmatpush1.msra.mxu0 0.0
    %1959 = vmatprep.subr.mxu0 0.0
    %1960 = vmatpush1.msra.mxu0 0.0
    %1961 = vmatprep.subr.mxu0 0.0
    %1962 = vmatpush1.msra.mxu0 0.0
    %1963 = vmatprep.subr.mxu0 0.0
    %1964 = vmatpush1.msra.mxu0 0.0
    %1965 = vmatprep.subr.mxu0 0.0
    %1966 = vmatpush1.msra.mxu0 0.0
    %1967 = vmatprep.subr.mxu0 0.0
    %1968 = vmatpush1.msra.mxu0 0.0
    %1969 = vmatprep.subr.mxu0 0.0
    %1970 = vmatpush1.msra.mxu0 0.0
    %1971 = vmatprep.subr.mxu0 0.0
    %1972 = vmatpush1.msra.mxu0 0.0
    %1973 = vmatprep.subr.mxu0 0.0
    %1974 = vmatpush1.msra.mxu0 0.0
    %1975 = vmatprep.subr.mxu0 0.0
    %1976 = vmatpush1.msra.mxu0 0.0
    %1977 = vmatprep.subr.mxu0 0.0
    %1978 = vmatpush1.msra.mxu0 0.0
    %1979 = vmatprep.subr.mxu0 0.0
    %1980 = vmatpush1.msra.mxu0 0.0
    %1981 = vmatprep.subr.mxu0 0.0
    %1982 = vmatpush1.msra.mxu0 0.0
    %1983 = vmatprep.subr.mxu0 0.0
    %1984 = vmatpush1.msra.mxu0 0.0
    %1985 = vmatprep.subr.mxu0 0.0
    %1986 = vmatpush1.msra.mxu0 %v1953
    %1987 = vmatprep.subr.mxu0 0.0
    %1988 = vmatpush1.msra.mxu0 %v1952
    %1989 = vmatprep.subr.mxu0 0.0
    %1990 = vmatpush2.msra.mxu0 0.0
    %1991 = vmatprep.subr.mxu0 0.0
    %1992 = vmatpush2.msra.mxu0 0.0
    %1993 = vmatprep.subr.mxu0 0.0
    %1994 = vmatpush2.msra.mxu0 0.0
    %1995 = vmatprep.subr.mxu0 0.0
    %1996 = vmatpush2.msra.mxu0 0.0
    %1997 = vmatprep.subr.mxu0 0.0
    %1998 = vmatpush2.msra.mxu0 0.0
    %1999 = vmatprep.subr.mxu0 0.0
    %2000 = vmatpush2.msra.mxu0 0.0
    %2001 = vmatprep.subr.mxu0 0.0
    %2002 = vmatpush2.msra.mxu0 0.0
    %2003 = vmatprep.subr.mxu0 0.0
    %2004 = vmatpush2.msra.mxu0 0.0
    %2005 = vmatprep.subr.mxu0 0.0
    %2006 = vmatpush2.msra.mxu0 0.0
    %2007 = vmatprep.subr.mxu0 0.0
    %2008 = vmatpush2.msra.mxu0 0.0
    %2009 = vmatprep.subr.mxu0 0.0
    %2010 = vmatpush2.msra.mxu0 0.0
    %2011 = vmatprep.subr.mxu0 0.0
    %2012 = vmatpush2.msra.mxu0 0.0
    %2013 = vmatprep.subr.mxu0 0.0
    %2014 = vmatpush2.msra.mxu0 0.0
    %2015 = vmatprep.subr.mxu0 0.0
    %2016 = vmatpush2.msra.mxu0 0.0
    %2017 = vmatprep.subr.mxu0 0.0
    %2018 = vmatpush2.msra.mxu0 0.0
    %2019 = vmatprep.subr.mxu0 0.0
    %2020 = vmatpush2.msra.mxu0 0.0
    %2021 = vmatprep.mubr.f32.mxu0 0.0
    %2022 = vmatmul.mubr.f32.gmra.mxu0 %v1955
    %v2023 = vpop.f32.mrf.mxu0
    %v2024 = vadd.f32 0.0, %v2023
    %v2025 = vpop.f32.mrf.mxu0
    %2026 = vdwg.mxu0
    %v2028 = vsel %vm1188, %v2024, 0
    %2030 = vmatprep.subr.mxu0 0.0
    %2031 = vmatpush1.msra.mxu0 0.0
    %2032 = vmatprep.subr.mxu0 0.0
    %2033 = vmatpush1.msra.mxu0 0.0
    %2034 = vmatprep.subr.mxu0 0.0
    %2035 = vmatpush1.msra.mxu0 0.0
    %2036 = vmatprep.subr.mxu0 0.0
    %2037 = vmatpush1.msra.mxu0 0.0
    %2038 = vmatprep.subr.mxu0 0.0
    %2039 = vmatpush1.msra.mxu0 0.0
    %2040 = vmatprep.subr.mxu0 0.0
    %2041 = vmatpush1.msra.mxu0 0.0
    %2042 = vmatprep.subr.mxu0 0.0
    %2043 = vmatpush1.msra.mxu0 0.0
    %2044 = vmatprep.subr.mxu0 0.0
    %2045 = vmatpush1.msra.mxu0 0.0
    %2046 = vmatprep.subr.mxu0 0.0
    %2047 = vmatpush1.msra.mxu0 0.0
    %2048 = vmatprep.subr.mxu0 0.0
    %2049 = vmatpush1.msra.mxu0 0.0
    %2050 = vmatprep.subr.mxu0 0.0
    %2051 = vmatpush1.msra.mxu0 0.0
    %2052 = vmatprep.subr.mxu0 0.0
    %2053 = vmatpush1.msra.mxu0 0.0
    %2054 = vmatprep.subr.mxu0 0.0
    %2055 = vmatpush1.msra.mxu0 0.0
    %2056 = vmatprep.subr.mxu0 0.0
    %2057 = vmatpush1.msra.mxu0 0.0
    %2058 = vmatprep.subr.mxu0 0.0
    %2059 = vmatpush1.msra.mxu0 0.0
    %2060 = vmatprep.subr.mxu0 0.0
    %2061 = vmatpush1.msra.mxu0 %v2028
    %2062 = vmatprep.subr.mxu0 0.0
    %2063 = vmatpush2.msra.mxu0 0.0
    %2064 = vmatprep.subr.mxu0 0.0
    %2065 = vmatpush2.msra.mxu0 0.0
    %2066 = vmatprep.subr.mxu0 0.0
    %2067 = vmatpush2.msra.mxu0 0.0
    %2068 = vmatprep.subr.mxu0 0.0
    %2069 = vmatpush2.msra.mxu0 0.0
    %2070 = vmatprep.subr.mxu0 0.0
    %2071 = vmatpush2.msra.mxu0 0.0
    %2072 = vmatprep.subr.mxu0 0.0
    %2073 = vmatpush2.msra.mxu0 0.0
    %2074 = vmatprep.subr.mxu0 0.0
    %2075 = vmatpush2.msra.mxu0 0.0
    %2076 = vmatprep.subr.mxu0 0.0
    %2077 = vmatpush2.msra.mxu0 0.0
    %2078 = vmatprep.subr.mxu0 0.0
    %2079 = vmatpush2.msra.mxu0 0.0
    %2080 = vmatprep.subr.mxu0 0.0
    %2081 = vmatpush2.msra.mxu0 0.0
    %2082 = vmatprep.subr.mxu0 0.0
    %2083 = vmatpush2.msra.mxu0 0.0
    %2084 = vmatprep.subr.mxu0 0.0
    %2085 = vmatpush2.msra.mxu0 0.0
    %2086 = vmatprep.subr.mxu0 0.0
    %2087 = vmatpush2.msra.mxu0 0.0
    %2088 = vmatprep.subr.mxu0 0.0
    %2089 = vmatpush2.msra.mxu0 0.0
    %2090 = vmatprep.subr.mxu0 0.0
    %2091 = vmatpush2.msra.mxu0 0.0
    %2092 = vmatprep.subr.mxu0 0.0
    %2093 = vmatpush2.msra.mxu0 0.0
    %2094 = vmatprep.mubr.f32.mxu0 0.0
    %2095 = vmatmul.mubr.f32.gmra.mxu0 %v1183
    %v2096 = vpop.f32.mrf.mxu0
    %v2097 = vadd.f32 0.0, %v2096
    %v2098 = vpop.f32.mrf.mxu0
    %2099 = vmatprep.mubr.f32.mxu0 0.0
    %2100 = vmatmul.mubr.f32.gmra.mxu0 %v1186
    %v2101 = vpop.f32.mrf.mxu0
    %v2102 = vadd.f32 0.0, %v2101
    %v2103 = vpop.f32.mrf.mxu0
    %2104 = vdwg.mxu0
    %v2105 = vld [vmem:[%s53] sm:$0xff]
    %v2106 = vld [vmem:[%s53 + $0x8] sm:$0xff]
    %v2107 = vld [vmem:[%s53 + $0x10] sm:$0xff]
    %v2108 = vld [vmem:[%s53 + $0x18] sm:$0xff]
    %2109 = vmatprep.subr.mxu0 0.0
    %2110 = vmatpush1.msra.mxu0 0.0
    %2111 = vmatprep.subr.mxu0 0.0
    %2112 = vmatpush1.msra.mxu0 0.0
    %2113 = vmatprep.subr.mxu0 0.0
    %2114 = vmatpush1.msra.mxu0 0.0
    %2115 = vmatprep.subr.mxu0 0.0
    %2116 = vmatpush1.msra.mxu0 0.0
    %2117 = vmatprep.subr.mxu0 0.0
    %2118 = vmatpush1.msra.mxu0 0.0
    %2119 = vmatprep.subr.mxu0 0.0
    %2120 = vmatpush1.msra.mxu0 0.0
    %2121 = vmatprep.subr.mxu0 0.0
    %2122 = vmatpush1.msra.mxu0 0.0
    %2123 = vmatprep.subr.mxu0 0.0
    %2124 = vmatpush1.msra.mxu0 0.0
    %2125 = vmatprep.subr.mxu0 0.0
    %2126 = vmatpush1.msra.mxu0 0.0
    %2127 = vmatprep.subr.mxu0 0.0
    %2128 = vmatpush1.msra.mxu0 0.0
    %2129 = vmatprep.subr.mxu0 0.0
    %2130 = vmatpush1.msra.mxu0 0.0
    %2131 = vmatprep.subr.mxu0 0.0
    %2132 = vmatpush1.msra.mxu0 0.0
    %2133 = vmatprep.subr.mxu0 0.0
    %2134 = vmatpush1.msra.mxu0 %v2108
    %2135 = vmatprep.subr.mxu0 0.0
    %2136 = vmatpush1.msra.mxu0 %v2107
    %2137 = vmatprep.subr.mxu0 0.0
    %2138 = vmatpush1.msra.mxu0 %v2106
    %2139 = vmatprep.subr.mxu0 0.0
    %2140 = vmatpush1.msra.mxu0 %v2105
    %2141 = vmatprep.subr.mxu0 0.0
    %2142 = vmatpush2.msra.mxu0 0.0
    %2143 = vmatprep.subr.mxu0 0.0
    %2144 = vmatpush2.msra.mxu0 0.0
    %2145 = vmatprep.subr.mxu0 0.0
    %2146 = vmatpush2.msra.mxu0 0.0
    %2147 = vmatprep.subr.mxu0 0.0
    %2148 = vmatpush2.msra.mxu0 0.0
    %2149 = vmatprep.subr.mxu0 0.0
    %2150 = vmatpush2.msra.mxu0 0.0
    %2151 = vmatprep.subr.mxu0 0.0
    %2152 = vmatpush2.msra.mxu0 0.0
    %2153 = vmatprep.subr.mxu0 0.0
    %2154 = vmatpush2.msra.mxu0 0.0
    %2155 = vmatprep.subr.mxu0 0.0
    %2156 = vmatpush2.msra.mxu0 0.0
    %2157 = vmatprep.subr.mxu0 0.0
    %2158 = vmatpush2.msra.mxu0 0.0
    %2159 = vmatprep.subr.mxu0 0.0
    %2160 = vmatpush2.msra.mxu0 0.0
    %2161 = vmatprep.subr.mxu0 0.0
    %2162 = vmatpush2.msra.mxu0 0.0
    %2163 = vmatprep.subr.mxu0 0.0
    %2164 = vmatpush2.msra.mxu0 0.0
    %2165 = vmatprep.subr.mxu0 0.0
    %2166 = vmatpush2.msra.mxu0 0.0
    %2167 = vmatprep.subr.mxu0 0.0
    %2168 = vmatpush2.msra.mxu0 0.0
    %2169 = vmatprep.subr.mxu0 0.0
    %2170 = vmatpush2.msra.mxu0 0.0
    %2171 = vmatprep.subr.mxu0 0.0
    %2172 = vmatpush2.msra.mxu0 0.0
    %2173 = vmatprep.mubr.f32.mxu0 0.0
    %2174 = vmatmul.mubr.f32.gmra.mxu0 %v1015
    %v2175 = vpop.f32.mrf.mxu0
    %v2176 = vadd.f32 %v2097, %v2175
    %v2177 = vpop.f32.mrf.mxu0
    %2178 = vmatprep.mubr.f32.mxu0 0.0
    %2179 = vmatmul.mubr.f32.gmra.mxu0 %v1018
    %v2180 = vpop.f32.mrf.mxu0
    %v2181 = vadd.f32 %v2102, %v2180
    %v2182 = vpop.f32.mrf.mxu0
    %2183 = vdwg.mxu0
    %v2184 = vld [vmem:[%s57] sm:$0x1]
    %v2186 = vlaneseq
    %v2187 = vshrl.u32 %v2186, 7
    %v2188 = vsub.s32 0, %v2187
    %v2189 = vrot.slane %v2184, %v2188
    %v2191 = vadd.f32 %v2176, %v2189
    %v2192 = vadd.f32 %v2181, %v2189
    %vm2193 = vcmp.ge.f32.partialorder %v2191, 0.0
    %vm2194 = vcmp.ge.f32.partialorder %v2192, 0.0
    %v2195 = vmul.f32 %v2191, 0.01
    %v2196 = vmul.f32 %v2192, 0.01
    %v2197 = vsel %vm2193, %v2191, %v2195
    %v2198 = vsel %vm2194, %v2192, %v2196
    %v2199 = vadd.f32 %v1951, %v714
    %vm2200 = vcmp.ge.f32.partialorder %v2199, 0.0
    %v2201 = vmul.f32 %v2199, 0.01
    %v2202 = vsel %vm2200, %v2199, %v2201
    %s2203 = scalar_lea.vmem [#allocation14], 16
    %v2204 = vld [vmem:[%s2203] sm:$0xff]
    %v2205 = vld [vmem:[%s2203 + $0x8] sm:$0xff]
    %s2206 = scalar_lea.vmem [#allocation16], 1
    %v2207 = vld [vmem:[%s2206] sm:$0x1]
    %v2209 = vlaneseq
    %v2210 = vshrl.u32 %v2209, 7
    %v2211 = vsub.s32 0, %v2210
    %v2212 = vrot.slane %v2207, %v2211
    %v2215 = vsel %vm370, %v2197, 0
    %v2218 = vsel %vm370, %v2198, 0
    %2220 = vmatprep.subr.mxu0 0.0
    %2221 = vmatpush1.msra.mxu0 0.0
    %2222 = vmatprep.subr.mxu0 0.0
    %2223 = vmatpush1.msra.mxu0 0.0
    %2224 = vmatprep.subr.mxu0 0.0
    %2225 = vmatpush1.msra.mxu0 0.0
    %2226 = vmatprep.subr.mxu0 0.0
    %2227 = vmatpush1.msra.mxu0 0.0
    %2228 = vmatprep.subr.mxu0 0.0
    %2229 = vmatpush1.msra.mxu0 0.0
    %2230 = vmatprep.subr.mxu0 0.0
    %2231 = vmatpush1.msra.mxu0 0.0
    %2232 = vmatprep.subr.mxu0 0.0
    %2233 = vmatpush1.msra.mxu0 0.0
    %2234 = vmatprep.subr.mxu0 0.0
    %2235 = vmatpush1.msra.mxu0 0.0
    %2236 = vmatprep.subr.mxu0 0.0
    %2237 = vmatpush1.msra.mxu0 0.0
    %2238 = vmatprep.subr.mxu0 0.0
    %2239 = vmatpush1.msra.mxu0 0.0
    %2240 = vmatprep.subr.mxu0 0.0
    %2241 = vmatpush1.msra.mxu0 0.0
    %2242 = vmatprep.subr.mxu0 0.0
    %2243 = vmatpush1.msra.mxu0 0.0
    %2244 = vmatprep.subr.mxu0 0.0
    %2245 = vmatpush1.msra.mxu0 0.0
    %2246 = vmatprep.subr.mxu0 0.0
    %2247 = vmatpush1.msra.mxu0 0.0
    %2248 = vmatprep.subr.mxu0 0.0
    %2249 = vmatpush1.msra.mxu0 %v2205
    %2250 = vmatprep.subr.mxu0 0.0
    %2251 = vmatpush1.msra.mxu0 %v2204
    %2252 = vmatprep.subr.mxu0 0.0
    %2253 = vmatpush2.msra.mxu0 0.0
    %2254 = vmatprep.subr.mxu0 0.0
    %2255 = vmatpush2.msra.mxu0 0.0
    %2256 = vmatprep.subr.mxu0 0.0
    %2257 = vmatpush2.msra.mxu0 0.0
    %2258 = vmatprep.subr.mxu0 0.0
    %2259 = vmatpush2.msra.mxu0 0.0
    %2260 = vmatprep.subr.mxu0 0.0
    %2261 = vmatpush2.msra.mxu0 0.0
    %2262 = vmatprep.subr.mxu0 0.0
    %2263 = vmatpush2.msra.mxu0 0.0
    %2264 = vmatprep.subr.mxu0 0.0
    %2265 = vmatpush2.msra.mxu0 0.0
    %2266 = vmatprep.subr.mxu0 0.0
    %2267 = vmatpush2.msra.mxu0 0.0
    %2268 = vmatprep.subr.mxu0 0.0
    %2269 = vmatpush2.msra.mxu0 0.0
    %2270 = vmatprep.subr.mxu0 0.0
    %2271 = vmatpush2.msra.mxu0 0.0
    %2272 = vmatprep.subr.mxu0 0.0
    %2273 = vmatpush2.msra.mxu0 0.0
    %2274 = vmatprep.subr.mxu0 0.0
    %2275 = vmatpush2.msra.mxu0 0.0
    %2276 = vmatprep.subr.mxu0 0.0
    %2277 = vmatpush2.msra.mxu0 0.0
    %2278 = vmatprep.subr.mxu0 0.0
    %2279 = vmatpush2.msra.mxu0 0.0
    %2280 = vmatprep.subr.mxu0 0.0
    %2281 = vmatpush2.msra.mxu0 0.0
    %2282 = vmatprep.subr.mxu0 0.0
    %2283 = vmatpush2.msra.mxu0 0.0
    %2284 = vmatprep.mubr.f32.mxu0 0.0
    %2285 = vmatmul.mubr.f32.gmra.mxu0 %v2215
    %v2286 = vpop.f32.mrf.mxu0
    %v2287 = vadd.f32 %v2212, %v2286
    %v2288 = vpop.f32.mrf.mxu0
    %2289 = vmatprep.mubr.f32.mxu0 0.0
    %2290 = vmatmul.mubr.f32.gmra.mxu0 %v2218
    %v2291 = vpop.f32.mrf.mxu0
    %v2292 = vadd.f32 %v2212, %v2291
    %v2293 = vpop.f32.mrf.mxu0
    %2294 = vdwg.mxu0
    %vm2295 = vcmp.ge.f32.partialorder %v2287, 0.0
    %vm2296 = vcmp.ge.f32.partialorder %v2292, 0.0
    %v2297 = vmul.f32 %v2287, 0.01
    %v2298 = vmul.f32 %v2292, 0.01
    %v2299 = vsel %vm2295, %v2287, %v2297
    %v2300 = vsel %vm2296, %v2292, %v2298
    %v2302 = vsel %vm370, %v2202, 0
    %2304 = vmatprep.subr.mxu0 0.0
    %2305 = vmatpush1.msra.mxu0 0.0
    %2306 = vmatprep.subr.mxu0 0.0
    %2307 = vmatpush1.msra.mxu0 0.0
    %2308 = vmatprep.subr.mxu0 0.0
    %2309 = vmatpush1.msra.mxu0 0.0
    %2310 = vmatprep.subr.mxu0 0.0
    %2311 = vmatpush1.msra.mxu0 0.0
    %2312 = vmatprep.subr.mxu0 0.0
    %2313 = vmatpush1.msra.mxu0 0.0
    %2314 = vmatprep.subr.mxu0 0.0
    %2315 = vmatpush1.msra.mxu0 0.0
    %2316 = vmatprep.subr.mxu0 0.0
    %2317 = vmatpush1.msra.mxu0 0.0
    %2318 = vmatprep.subr.mxu0 0.0
    %2319 = vmatpush1.msra.mxu0 0.0
    %2320 = vmatprep.subr.mxu0 0.0
    %2321 = vmatpush1.msra.mxu0 0.0
    %2322 = vmatprep.subr.mxu0 0.0
    %2323 = vmatpush1.msra.mxu0 0.0
    %2324 = vmatprep.subr.mxu0 0.0
    %2325 = vmatpush1.msra.mxu0 0.0
    %2326 = vmatprep.subr.mxu0 0.0
    %2327 = vmatpush1.msra.mxu0 0.0
    %2328 = vmatprep.subr.mxu0 0.0
    %2329 = vmatpush1.msra.mxu0 0.0
    %2330 = vmatprep.subr.mxu0 0.0
    %2331 = vmatpush1.msra.mxu0 0.0
    %2332 = vmatprep.subr.mxu0 0.0
    %2333 = vmatpush1.msra.mxu0 %v2205
    %2334 = vmatprep.subr.mxu0 0.0
    %2335 = vmatpush1.msra.mxu0 %v2204
    %2336 = vmatprep.subr.mxu0 0.0
    %2337 = vmatpush2.msra.mxu0 0.0
    %2338 = vmatprep.subr.mxu0 0.0
    %2339 = vmatpush2.msra.mxu0 0.0
    %2340 = vmatprep.subr.mxu0 0.0
    %2341 = vmatpush2.msra.mxu0 0.0
    %2342 = vmatprep.subr.mxu0 0.0
    %2343 = vmatpush2.msra.mxu0 0.0
    %2344 = vmatprep.subr.mxu0 0.0
    %2345 = vmatpush2.msra.mxu0 0.0
    %2346 = vmatprep.subr.mxu0 0.0
    %2347 = vmatpush2.msra.mxu0 0.0
    %2348 = vmatprep.subr.mxu0 0.0
    %2349 = vmatpush2.msra.mxu0 0.0
    %2350 = vmatprep.subr.mxu0 0.0
    %2351 = vmatpush2.msra.mxu0 0.0
    %2352 = vmatprep.subr.mxu0 0.0
    %2353 = vmatpush2.msra.mxu0 0.0
    %2354 = vmatprep.subr.mxu0 0.0
    %2355 = vmatpush2.msra.mxu0 0.0
    %2356 = vmatprep.subr.mxu0 0.0
    %2357 = vmatpush2.msra.mxu0 0.0
    %2358 = vmatprep.subr.mxu0 0.0
    %2359 = vmatpush2.msra.mxu0 0.0
    %2360 = vmatprep.subr.mxu0 0.0
    %2361 = vmatpush2.msra.mxu0 0.0
    %2362 = vmatprep.subr.mxu0 0.0
    %2363 = vmatpush2.msra.mxu0 0.0
    %2364 = vmatprep.subr.mxu0 0.0
    %2365 = vmatpush2.msra.mxu0 0.0
    %2366 = vmatprep.subr.mxu0 0.0
    %2367 = vmatpush2.msra.mxu0 0.0
    %2368 = vmatprep.mubr.f32.mxu0 0.0
    %2369 = vmatmul.mubr.f32.gmra.mxu0 %v2302
    %v2370 = vpop.f32.mrf.mxu0
    %v2371 = vadd.f32 %v2212, %v2370
    %v2372 = vpop.f32.mrf.mxu0
    %2373 = vdwg.mxu0
    %s2374 = scalar_lea.vmem [#allocation17], 1
    %v2375 = vld [vmem:[%s2374] sm:$0x1]
    %s2376 = scalar_lea.vmem [#allocation19], 1
    %v2377 = vld [vmem:[%s2376] sm:$0x1]
    %v2378 = vsel %vm886, %v2371, 0.0
    %2379 = vadd.xlane.f32.xlu0 %v2378
    %v2380 = vpop.xlane.xlu0 %2379
    %v2381 = vmul.f32 %v2380, %v890
    %v2382 = vsub.f32 %v2371, %v2381
    %v2383 = vmul.f32 %v2382, %v2382
    %v2384 = vsel %vm886, %v2383, 0.0
    %2385 = vadd.xlane.f32.xlu0 %v2384
    %v2386 = vpop.xlane.xlu0 %2385
    %v2387 = vmul.f32 %v2386, %v890
    %v2388 = vadd.f32 %v2387, 1e-05
    %v2389 = vrsqrt.pop %v2388
    %v2390 = vmul.f32 %v2382, %v2389
    %v2392 = vlaneseq
    %v2393 = vshrl.u32 %v2392, 7
    %v2394 = vsub.s32 0, %v2393
    %v2395 = vrot.slane %v2375, %v2394
    %v2397 = vmul.f32 %v2390, %v2395
    %v2399 = vlaneseq
    %v2400 = vshrl.u32 %v2399, 7
    %v2401 = vsub.s32 0, %v2400
    %v2402 = vrot.slane %v2377, %v2401
    %v2404 = vadd.f32 %v2397, %v2402
    %vm2405 = vcmp.ge.f32.partialorder %v2404, 0.0
    %v2406 = vmul.f32 %v2404, 0.01
    %v2407 = vsel %vm2405, %v2404, %v2406
    %s2408 = scalar_lea.vmem %s31, 32
    %v2409 = vld [vmem:[%s2408] sm:$0xff]
    %v2410 = vld [vmem:[%s2408 + $0x8] sm:$0xff]
    %v2411 = vld [vmem:[%s2408 + $0x10] sm:$0xff]
    %v2412 = vld [vmem:[%s2408 + $0x18] sm:$0xff]
    %s2413 = scalar_lea.vmem [#allocation20], 1
    %v2414 = vld [vmem:[%s2413] sm:$0x1]
    %v2416 = vlaneseq
    %v2417 = vshrl.u32 %v2416, 7
    %v2418 = vsub.s32 0, %v2417
    %v2419 = vrot.slane %v2414, %v2418
    %v2422 = vsel %vm929, %v2407, 0
    %2424 = vmatprep.subr.mxu0 0.0
    %2425 = vmatpush1.msra.mxu0 0.0
    %2426 = vmatprep.subr.mxu0 0.0
    %2427 = vmatpush1.msra.mxu0 0.0
    %2428 = vmatprep.subr.mxu0 0.0
    %2429 = vmatpush1.msra.mxu0 0.0
    %2430 = vmatprep.subr.mxu0 0.0
    %2431 = vmatpush1.msra.mxu0 0.0
    %2432 = vmatprep.subr.mxu0 0.0
    %2433 = vmatpush1.msra.mxu0 0.0
    %2434 = vmatprep.subr.mxu0 0.0
    %2435 = vmatpush1.msra.mxu0 0.0
    %2436 = vmatprep.subr.mxu0 0.0
    %2437 = vmatpush1.msra.mxu0 0.0
    %2438 = vmatprep.subr.mxu0 0.0
    %2439 = vmatpush1.msra.mxu0 0.0
    %2440 = vmatprep.subr.mxu0 0.0
    %2441 = vmatpush1.msra.mxu0 0.0
    %2442 = vmatprep.subr.mxu0 0.0
    %2443 = vmatpush1.msra.mxu0 0.0
    %2444 = vmatprep.subr.mxu0 0.0
    %2445 = vmatpush1.msra.mxu0 0.0
    %2446 = vmatprep.subr.mxu0 0.0
    %2447 = vmatpush1.msra.mxu0 0.0
    %2448 = vmatprep.subr.mxu0 0.0
    %2449 = vmatpush1.msra.mxu0 %v2412
    %2450 = vmatprep.subr.mxu0 0.0
    %2451 = vmatpush1.msra.mxu0 %v2411
    %2452 = vmatprep.subr.mxu0 0.0
    %2453 = vmatpush1.msra.mxu0 %v2410
    %2454 = vmatprep.subr.mxu0 0.0
    %2455 = vmatpush1.msra.mxu0 %v2409
    %2456 = vmatprep.subr.mxu0 0.0
    %2457 = vmatpush2.msra.mxu0 0.0
    %2458 = vmatprep.subr.mxu0 0.0
    %2459 = vmatpush2.msra.mxu0 0.0
    %2460 = vmatprep.subr.mxu0 0.0
    %2461 = vmatpush2.msra.mxu0 0.0
    %2462 = vmatprep.subr.mxu0 0.0
    %2463 = vmatpush2.msra.mxu0 0.0
    %2464 = vmatprep.subr.mxu0 0.0
    %2465 = vmatpush2.msra.mxu0 0.0
    %2466 = vmatprep.subr.mxu0 0.0
    %2467 = vmatpush2.msra.mxu0 0.0
    %2468 = vmatprep.subr.mxu0 0.0
    %2469 = vmatpush2.msra.mxu0 0.0
    %2470 = vmatprep.subr.mxu0 0.0
    %2471 = vmatpush2.msra.mxu0 0.0
    %2472 = vmatprep.subr.mxu0 0.0
    %2473 = vmatpush2.msra.mxu0 0.0
    %2474 = vmatprep.subr.mxu0 0.0
    %2475 = vmatpush2.msra.mxu0 0.0
    %2476 = vmatprep.subr.mxu0 0.0
    %2477 = vmatpush2.msra.mxu0 0.0
    %2478 = vmatprep.subr.mxu0 0.0
    %2479 = vmatpush2.msra.mxu0 0.0
    %2480 = vmatprep.subr.mxu0 0.0
    %2481 = vmatpush2.msra.mxu0 0.0
    %2482 = vmatprep.subr.mxu0 0.0
    %2483 = vmatpush2.msra.mxu0 0.0
    %2484 = vmatprep.subr.mxu0 0.0
    %2485 = vmatpush2.msra.mxu0 0.0
    %2486 = vmatprep.subr.mxu0 0.0
    %2487 = vmatpush2.msra.mxu0 0.0
    %2488 = vmatprep.mubr.f32.mxu0 0.0
    %2489 = vmatmul.mubr.f32.gmra.mxu0 %v2422
    %v2490 = vpop.f32.mrf.mxu0
    %v2491 = vadd.f32 %v2419, %v2490
    %v2492 = vpop.f32.mrf.mxu0
    %2493 = vdwg.mxu0
    %s2494 = scalar_lea.vmem %s35, 32
    %v2495 = vld [vmem:[%s2494] sm:$0xff]
    %v2496 = vld [vmem:[%s2494 + $0x8] sm:$0xff]
    %v2497 = vld [vmem:[%s2494 + $0x10] sm:$0xff]
    %v2498 = vld [vmem:[%s2494 + $0x18] sm:$0xff]
    %s2499 = scalar_lea.vmem [#allocation22], 1
    %v2500 = vld [vmem:[%s2499] sm:$0x1]
    %v2502 = vlaneseq
    %v2503 = vshrl.u32 %v2502, 7
    %v2504 = vsub.s32 0, %v2503
    %v2505 = vrot.slane %v2500, %v2504
    %v2508 = vsel %vm929, %v2299, 0
    %v2511 = vsel %vm929, %v2300, 0
    %2513 = vmatprep.subr.mxu0 0.0
    %2514 = vmatpush1.msra.mxu0 0.0
    %2515 = vmatprep.subr.mxu0 0.0
    %2516 = vmatpush1.msra.mxu0 0.0
    %2517 = vmatprep.subr.mxu0 0.0
    %2518 = vmatpush1.msra.mxu0 0.0
    %2519 = vmatprep.subr.mxu0 0.0
    %2520 = vmatpush1.msra.mxu0 0.0
    %2521 = vmatprep.subr.mxu0 0.0
    %2522 = vmatpush1.msra.mxu0 0.0
    %2523 = vmatprep.subr.mxu0 0.0
    %2524 = vmatpush1.msra.mxu0 0.0
    %2525 = vmatprep.subr.mxu0 0.0
    %2526 = vmatpush1.msra.mxu0 0.0
    %2527 = vmatprep.subr.mxu0 0.0
    %2528 = vmatpush1.msra.mxu0 0.0
    %2529 = vmatprep.subr.mxu0 0.0
    %2530 = vmatpush1.msra.mxu0 0.0
    %2531 = vmatprep.subr.mxu0 0.0
    %2532 = vmatpush1.msra.mxu0 0.0
    %2533 = vmatprep.subr.mxu0 0.0
    %2534 = vmatpush1.msra.mxu0 0.0
    %2535 = vmatprep.subr.mxu0 0.0
    %2536 = vmatpush1.msra.mxu0 0.0
    %2537 = vmatprep.subr.mxu0 0.0
    %2538 = vmatpush1.msra.mxu0 %v2498
    %2539 = vmatprep.subr.mxu0 0.0
    %2540 = vmatpush1.msra.mxu0 %v2497
    %2541 = vmatprep.subr.mxu0 0.0
    %2542 = vmatpush1.msra.mxu0 %v2496
    %2543 = vmatprep.subr.mxu0 0.0
    %2544 = vmatpush1.msra.mxu0 %v2495
    %2545 = vmatprep.subr.mxu0 0.0
    %2546 = vmatpush2.msra.mxu0 0.0
    %2547 = vmatprep.subr.mxu0 0.0
    %2548 = vmatpush2.msra.mxu0 0.0
    %2549 = vmatprep.subr.mxu0 0.0
    %2550 = vmatpush2.msra.mxu0 0.0
    %2551 = vmatprep.subr.mxu0 0.0
    %2552 = vmatpush2.msra.mxu0 0.0
    %2553 = vmatprep.subr.mxu0 0.0
    %2554 = vmatpush2.msra.mxu0 0.0
    %2555 = vmatprep.subr.mxu0 0.0
    %2556 = vmatpush2.msra.mxu0 0.0
    %2557 = vmatprep.subr.mxu0 0.0
    %2558 = vmatpush2.msra.mxu0 0.0
    %2559 = vmatprep.subr.mxu0 0.0
    %2560 = vmatpush2.msra.mxu0 0.0
    %2561 = vmatprep.subr.mxu0 0.0
    %2562 = vmatpush2.msra.mxu0 0.0
    %2563 = vmatprep.subr.mxu0 0.0
    %2564 = vmatpush2.msra.mxu0 0.0
    %2565 = vmatprep.subr.mxu0 0.0
    %2566 = vmatpush2.msra.mxu0 0.0
    %2567 = vmatprep.subr.mxu0 0.0
    %2568 = vmatpush2.msra.mxu0 0.0
    %2569 = vmatprep.subr.mxu0 0.0
    %2570 = vmatpush2.msra.mxu0 0.0
    %2571 = vmatprep.subr.mxu0 0.0
    %2572 = vmatpush2.msra.mxu0 0.0
    %2573 = vmatprep.subr.mxu0 0.0
    %2574 = vmatpush2.msra.mxu0 0.0
    %2575 = vmatprep.subr.mxu0 0.0
    %2576 = vmatpush2.msra.mxu0 0.0
    %2577 = vmatprep.mubr.f32.mxu0 0.0
    %2578 = vmatmul.mubr.f32.gmra.mxu0 %v2508
    %v2579 = vpop.f32.mrf.mxu0
    %v2580 = vadd.f32 %v2505, %v2579
    %v2581 = vpop.f32.mrf.mxu0
    %2582 = vmatprep.mubr.f32.mxu0 0.0
    %2583 = vmatmul.mubr.f32.gmra.mxu0 %v2511
    %v2584 = vpop.f32.mrf.mxu0
    %v2585 = vadd.f32 %v2505, %v2584
    %v2586 = vpop.f32.mrf.mxu0
    %2587 = vdwg.mxu0
    %s2588 = scalar_lea.vmem %s39, 32
    %v2589 = vld [vmem:[%s2588] sm:$0xff]
    %v2590 = vld [vmem:[%s2588 + $0x8] sm:$0xff]
    %v2591 = vld [vmem:[%s2588 + $0x10] sm:$0xff]
    %v2592 = vld [vmem:[%s2588 + $0x18] sm:$0xff]
    %s2593 = scalar_lea.vmem [#allocation23], 1
    %v2594 = vld [vmem:[%s2593] sm:$0x1]
    %v2596 = vlaneseq
    %v2597 = vshrl.u32 %v2596, 7
    %v2598 = vsub.s32 0, %v2597
    %v2599 = vrot.slane %v2594, %v2598
    %2601 = vmatprep.subr.mxu0 0.0
    %2602 = vmatpush1.msra.mxu0 0.0
    %2603 = vmatprep.subr.mxu0 0.0
    %2604 = vmatpush1.msra.mxu0 0.0
    %2605 = vmatprep.subr.mxu0 0.0
    %2606 = vmatpush1.msra.mxu0 0.0
    %2607 = vmatprep.subr.mxu0 0.0
    %2608 = vmatpush1.msra.mxu0 0.0
    %2609 = vmatprep.subr.mxu0 0.0
    %2610 = vmatpush1.msra.mxu0 0.0
    %2611 = vmatprep.subr.mxu0 0.0
    %2612 = vmatpush1.msra.mxu0 0.0
    %2613 = vmatprep.subr.mxu0 0.0
    %2614 = vmatpush1.msra.mxu0 0.0
    %2615 = vmatprep.subr.mxu0 0.0
    %2616 = vmatpush1.msra.mxu0 0.0
    %2617 = vmatprep.subr.mxu0 0.0
    %2618 = vmatpush1.msra.mxu0 0.0
    %2619 = vmatprep.subr.mxu0 0.0
    %2620 = vmatpush1.msra.mxu0 0.0
    %2621 = vmatprep.subr.mxu0 0.0
    %2622 = vmatpush1.msra.mxu0 0.0
    %2623 = vmatprep.subr.mxu0 0.0
    %2624 = vmatpush1.msra.mxu0 0.0
    %2625 = vmatprep.subr.mxu0 0.0
    %2626 = vmatpush1.msra.mxu0 %v2592
    %2627 = vmatprep.subr.mxu0 0.0
    %2628 = vmatpush1.msra.mxu0 %v2591
    %2629 = vmatprep.subr.mxu0 0.0
    %2630 = vmatpush1.msra.mxu0 %v2590
    %2631 = vmatprep.subr.mxu0 0.0
    %2632 = vmatpush1.msra.mxu0 %v2589
    %2633 = vmatprep.subr.mxu0 0.0
    %2634 = vmatpush2.msra.mxu0 0.0
    %2635 = vmatprep.subr.mxu0 0.0
    %2636 = vmatpush2.msra.mxu0 0.0
    %2637 = vmatprep.subr.mxu0 0.0
    %2638 = vmatpush2.msra.mxu0 0.0
    %2639 = vmatprep.subr.mxu0 0.0
    %2640 = vmatpush2.msra.mxu0 0.0
    %2641 = vmatprep.subr.mxu0 0.0
    %2642 = vmatpush2.msra.mxu0 0.0
    %2643 = vmatprep.subr.mxu0 0.0
    %2644 = vmatpush2.msra.mxu0 0.0
    %2645 = vmatprep.subr.mxu0 0.0
    %2646 = vmatpush2.msra.mxu0 0.0
    %2647 = vmatprep.subr.mxu0 0.0
    %2648 = vmatpush2.msra.mxu0 0.0
    %2649 = vmatprep.subr.mxu0 0.0
    %2650 = vmatpush2.msra.mxu0 0.0
    %2651 = vmatprep.subr.mxu0 0.0
    %2652 = vmatpush2.msra.mxu0 0.0
    %2653 = vmatprep.subr.mxu0 0.0
    %2654 = vmatpush2.msra.mxu0 0.0
    %2655 = vmatprep.subr.mxu0 0.0
    %2656 = vmatpush2.msra.mxu0 0.0
    %2657 = vmatprep.subr.mxu0 0.0
    %2658 = vmatpush2.msra.mxu0 0.0
    %2659 = vmatprep.subr.mxu0 0.0
    %2660 = vmatpush2.msra.mxu0 0.0
    %2661 = vmatprep.subr.mxu0 0.0
    %2662 = vmatpush2.msra.mxu0 0.0
    %2663 = vmatprep.subr.mxu0 0.0
    %2664 = vmatpush2.msra.mxu0 0.0
    %2665 = vmatprep.mubr.f32.mxu0 0.0
    %2666 = vmatmul.mubr.f32.gmra.mxu0 %v2508
    %v2667 = vpop.f32.mrf.mxu0
    %v2668 = vadd.f32 %v2599, %v2667
    %v2669 = vpop.f32.mrf.mxu0
    %2670 = vmatprep.mubr.f32.mxu0 0.0
    %2671 = vmatmul.mubr.f32.gmra.mxu0 %v2511
    %v2672 = vpop.f32.mrf.mxu0
    %v2673 = vadd.f32 %v2599, %v2672
    %v2674 = vpop.f32.mrf.mxu0
    %2675 = vdwg.mxu0
    %v2677 = vsel %vm1188, %v2491, 0
    %2679 = vmatprep.subr.mxu0 0.0
    %2680 = vmatpush1.msra.mxu0 0.0
    %2681 = vmatprep.subr.mxu0 0.0
    %2682 = vmatpush1.msra.mxu0 0.0
    %2683 = vmatprep.subr.mxu0 0.0
    %2684 = vmatpush1.msra.mxu0 0.0
    %2685 = vmatprep.subr.mxu0 0.0
    %2686 = vmatpush1.msra.mxu0 0.0
    %2687 = vmatprep.subr.mxu0 0.0
    %2688 = vmatpush1.msra.mxu0 0.0
    %2689 = vmatprep.subr.mxu0 0.0
    %2690 = vmatpush1.msra.mxu0 0.0
    %2691 = vmatprep.subr.mxu0 0.0
    %2692 = vmatpush1.msra.mxu0 0.0
    %2693 = vmatprep.subr.mxu0 0.0
    %2694 = vmatpush1.msra.mxu0 0.0
    %2695 = vmatprep.subr.mxu0 0.0
    %2696 = vmatpush1.msra.mxu0 0.0
    %2697 = vmatprep.subr.mxu0 0.0
    %2698 = vmatpush1.msra.mxu0 0.0
    %2699 = vmatprep.subr.mxu0 0.0
    %2700 = vmatpush1.msra.mxu0 0.0
    %2701 = vmatprep.subr.mxu0 0.0
    %2702 = vmatpush1.msra.mxu0 0.0
    %2703 = vmatprep.subr.mxu0 0.0
    %2704 = vmatpush1.msra.mxu0 0.0
    %2705 = vmatprep.subr.mxu0 0.0
    %2706 = vmatpush1.msra.mxu0 0.0
    %2707 = vmatprep.subr.mxu0 0.0
    %2708 = vmatpush1.msra.mxu0 0.0
    %2709 = vmatprep.subr.mxu0 0.0
    %2710 = vmatpush1.msra.mxu0 %v2677
    %2711 = vmatprep.subr.mxu0 0.0
    %2712 = vmatpush2.msra.mxu0 0.0
    %2713 = vmatprep.subr.mxu0 0.0
    %2714 = vmatpush2.msra.mxu0 0.0
    %2715 = vmatprep.subr.mxu0 0.0
    %2716 = vmatpush2.msra.mxu0 0.0
    %2717 = vmatprep.subr.mxu0 0.0
    %2718 = vmatpush2.msra.mxu0 0.0
    %2719 = vmatprep.subr.mxu0 0.0
    %2720 = vmatpush2.msra.mxu0 0.0
    %2721 = vmatprep.subr.mxu0 0.0
    %2722 = vmatpush2.msra.mxu0 0.0
    %2723 = vmatprep.subr.mxu0 0.0
    %2724 = vmatpush2.msra.mxu0 0.0
    %2725 = vmatprep.subr.mxu0 0.0
    %2726 = vmatpush2.msra.mxu0 0.0
    %2727 = vmatprep.subr.mxu0 0.0
    %2728 = vmatpush2.msra.mxu0 0.0
    %2729 = vmatprep.subr.mxu0 0.0
    %2730 = vmatpush2.msra.mxu0 0.0
    %2731 = vmatprep.subr.mxu0 0.0
    %2732 = vmatpush2.msra.mxu0 0.0
    %2733 = vmatprep.subr.mxu0 0.0
    %2734 = vmatpush2.msra.mxu0 0.0
    %2735 = vmatprep.subr.mxu0 0.0
    %2736 = vmatpush2.msra.mxu0 0.0
    %2737 = vmatprep.subr.mxu0 0.0
    %2738 = vmatpush2.msra.mxu0 0.0
    %2739 = vmatprep.subr.mxu0 0.0
    %2740 = vmatpush2.msra.mxu0 0.0
    %2741 = vmatprep.subr.mxu0 0.0
    %2742 = vmatpush2.msra.mxu0 0.0
    %2743 = vmatprep.mubr.f32.mxu0 0.0
    %2744 = vmatmul.mubr.f32.gmra.mxu0 %v1183
    %v2745 = vpop.f32.mrf.mxu0
    %v2746 = vadd.f32 0.0, %v2745
    %v2747 = vpop.f32.mrf.mxu0
    %2748 = vmatprep.mubr.f32.mxu0 0.0
    %2749 = vmatmul.mubr.f32.gmra.mxu0 %v1186
    %v2750 = vpop.f32.mrf.mxu0
    %v2751 = vadd.f32 0.0, %v2750
    %v2752 = vpop.f32.mrf.mxu0
    %2753 = vdwg.mxu0
    %v2754 = vmul.f32 %v2746, %v2580
    %v2755 = vmul.f32 %v2751, %v2585
    %v2757 = vsel %vm929, %v2754, 0
    %v2760 = vsel %vm929, %v2755, 0
    %2762 = vmatprep.subr.mxu0 0.0
    %2763 = vmatpush1.msra.mxu0 0.0
    %2764 = vmatprep.subr.mxu0 0.0
    %2765 = vmatpush1.msra.mxu0 0.0
    %2766 = vmatprep.subr.mxu0 0.0
    %2767 = vmatpush1.msra.mxu0 0.0
    %2768 = vmatprep.subr.mxu0 0.0
    %2769 = vmatpush1.msra.mxu0 0.0
    %2770 = vmatprep.subr.mxu0 0.0
    %2771 = vmatpush1.msra.mxu0 0.0
    %2772 = vmatprep.subr.mxu0 0.0
    %2773 = vmatpush1.msra.mxu0 0.0
    %2774 = vmatprep.subr.mxu0 0.0
    %2775 = vmatpush1.msra.mxu0 0.0
    %2776 = vmatprep.subr.mxu0 0.0
    %2777 = vmatpush1.msra.mxu0 0.0
    %2778 = vmatprep.subr.mxu0 0.0
    %2779 = vmatpush1.msra.mxu0 0.0
    %2780 = vmatprep.subr.mxu0 0.0
    %2781 = vmatpush1.msra.mxu0 0.0
    %2782 = vmatprep.subr.mxu0 0.0
    %2783 = vmatpush1.msra.mxu0 0.0
    %2784 = vmatprep.subr.mxu0 0.0
    %2785 = vmatpush1.msra.mxu0 0.0
    %2786 = vmatprep.subr.mxu0 0.0
    %2787 = vmatpush1.msra.mxu0 %v366
    %2788 = vmatprep.subr.mxu0 0.0
    %2789 = vmatpush1.msra.mxu0 %v365
    %2790 = vmatprep.subr.mxu0 0.0
    %2791 = vmatpush1.msra.mxu0 %v364
    %2792 = vmatprep.subr.mxu0 0.0
    %2793 = vmatpush1.msra.mxu0 %v363
    %2794 = vmatprep.subr.mxu0 0.0
    %2795 = vmatpush2.msra.mxu0 0.0
    %2796 = vmatprep.subr.mxu0 0.0
    %2797 = vmatpush2.msra.mxu0 0.0
    %2798 = vmatprep.subr.mxu0 0.0
    %2799 = vmatpush2.msra.mxu0 0.0
    %2800 = vmatprep.subr.mxu0 0.0
    %2801 = vmatpush2.msra.mxu0 0.0
    %2802 = vmatprep.subr.mxu0 0.0
    %2803 = vmatpush2.msra.mxu0 0.0
    %2804 = vmatprep.subr.mxu0 0.0
    %2805 = vmatpush2.msra.mxu0 0.0
    %2806 = vmatprep.subr.mxu0 0.0
    %2807 = vmatpush2.msra.mxu0 0.0
    %2808 = vmatprep.subr.mxu0 0.0
    %2809 = vmatpush2.msra.mxu0 0.0
    %2810 = vmatprep.subr.mxu0 0.0
    %2811 = vmatpush2.msra.mxu0 0.0
    %2812 = vmatprep.subr.mxu0 0.0
    %2813 = vmatpush2.msra.mxu0 0.0
    %2814 = vmatprep.subr.mxu0 0.0
    %2815 = vmatpush2.msra.mxu0 0.0
    %2816 = vmatprep.subr.mxu0 0.0
    %2817 = vmatpush2.msra.mxu0 0.0
    %2818 = vmatprep.subr.mxu0 0.0
    %2819 = vmatpush2.msra.mxu0 0.0
    %2820 = vmatprep.subr.mxu0 0.0
    %2821 = vmatpush2.msra.mxu0 0.0
    %2822 = vmatprep.subr.mxu0 0.0
    %2823 = vmatpush2.msra.mxu0 0.0
    %2824 = vmatprep.subr.mxu0 0.0
    %2825 = vmatpush2.msra.mxu0 0.0
    %2826 = vmatprep.mubr.f32.mxu0 0.0
    %2827 = vmatmul.mubr.f32.gmra.mxu0 %v2757
    %v2828 = vpop.f32.mrf.mxu0
    %v2829 = vadd.f32 0.0, %v2828
    %v2830 = vpop.f32.mrf.mxu0
    %2831 = vmatprep.mubr.f32.mxu0 0.0
    %2832 = vmatmul.mubr.f32.gmra.mxu0 %v2760
    %v2833 = vpop.f32.mrf.mxu0
    %v2834 = vadd.f32 0.0, %v2833
    %v2835 = vpop.f32.mrf.mxu0
    %2836 = vdwg.mxu0
    %v2837 = vmul.f32 %v2829, 0.25
    %v2838 = vmul.f32 %v2834, 0.25
    %v2839 = vadd.f32 %v2837, %v1355
    %v2840 = vadd.f32 %v2838, %v1360
    %v2841 = vsel %vm1181, %v2839, -inf
    %v2842 = vrot.slane %v2841, 4
    %v2843 = vmax.f32 %v2841, %v2842
    %v2844 = vrot.slane %v2843, 2
    %v2845 = vmax.f32 %v2843, %v2844
    %v2846 = vrot.slane %v2845, 1
    %v2847 = vmax.f32 %v2845, %v2846
    %v2848 = vsel %vm1181, %v2840, -inf
    %v2849 = vrot.slane %v2848, 4
    %v2850 = vmax.f32 %v2848, %v2849
    %v2851 = vrot.slane %v2850, 2
    %v2852 = vmax.f32 %v2850, %v2851
    %v2853 = vrot.slane %v2852, 1
    %v2854 = vmax.f32 %v2852, %v2853
    %v2857 = vsel %vm1380, %v2854, %v2847
    %v2858 = vsel %vm1188, %v2857, 0
    %2860 = vmatprep.subr.mxu0 0.0
    %2861 = vmatpush1.msra.mxu0 0.0
    %2862 = vmatprep.subr.mxu0 0.0
    %2863 = vmatpush1.msra.mxu0 0.0
    %2864 = vmatprep.subr.mxu0 0.0
    %2865 = vmatpush1.msra.mxu0 0.0
    %2866 = vmatprep.subr.mxu0 0.0
    %2867 = vmatpush1.msra.mxu0 0.0
    %2868 = vmatprep.subr.mxu0 0.0
    %2869 = vmatpush1.msra.mxu0 0.0
    %2870 = vmatprep.subr.mxu0 0.0
    %2871 = vmatpush1.msra.mxu0 0.0
    %2872 = vmatprep.subr.mxu0 0.0
    %2873 = vmatpush1.msra.mxu0 0.0
    %2874 = vmatprep.subr.mxu0 0.0
    %2875 = vmatpush1.msra.mxu0 0.0
    %2876 = vmatprep.subr.mxu0 0.0
    %2877 = vmatpush1.msra.mxu0 0.0
    %2878 = vmatprep.subr.mxu0 0.0
    %2879 = vmatpush1.msra.mxu0 0.0
    %2880 = vmatprep.subr.mxu0 0.0
    %2881 = vmatpush1.msra.mxu0 0.0
    %2882 = vmatprep.subr.mxu0 0.0
    %2883 = vmatpush1.msra.mxu0 0.0
    %2884 = vmatprep.subr.mxu0 0.0
    %2885 = vmatpush1.msra.mxu0 0.0
    %2886 = vmatprep.subr.mxu0 0.0
    %2887 = vmatpush1.msra.mxu0 0.0
    %2888 = vmatprep.subr.mxu0 0.0
    %2889 = vmatpush1.msra.mxu0 0.0
    %2890 = vmatprep.subr.mxu0 0.0
    %2891 = vmatpush1.msra.mxu0 %v2858
    %2892 = vmatprep.subr.mxu0 0.0
    %2893 = vmatpush2.msra.mxu0 0.0
    %2894 = vmatprep.subr.mxu0 0.0
    %2895 = vmatpush2.msra.mxu0 0.0
    %2896 = vmatprep.subr.mxu0 0.0
    %2897 = vmatpush2.msra.mxu0 0.0
    %2898 = vmatprep.subr.mxu0 0.0
    %2899 = vmatpush2.msra.mxu0 0.0
    %2900 = vmatprep.subr.mxu0 0.0
    %2901 = vmatpush2.msra.mxu0 0.0
    %2902 = vmatprep.subr.mxu0 0.0
    %2903 = vmatpush2.msra.mxu0 0.0
    %2904 = vmatprep.subr.mxu0 0.0
    %2905 = vmatpush2.msra.mxu0 0.0
    %2906 = vmatprep.subr.mxu0 0.0
    %2907 = vmatpush2.msra.mxu0 0.0
    %2908 = vmatprep.subr.mxu0 0.0
    %2909 = vmatpush2.msra.mxu0 0.0
    %2910 = vmatprep.subr.mxu0 0.0
    %2911 = vmatpush2.msra.mxu0 0.0
    %2912 = vmatprep.subr.mxu0 0.0
    %2913 = vmatpush2.msra.mxu0 0.0
    %2914 = vmatprep.subr.mxu0 0.0
    %2915 = vmatpush2.msra.mxu0 0.0
    %2916 = vmatprep.subr.mxu0 0.0
    %2917 = vmatpush2.msra.mxu0 0.0
    %2918 = vmatprep.subr.mxu0 0.0
    %2919 = vmatpush2.msra.mxu0 0.0
    %2920 = vmatprep.subr.mxu0 0.0
    %2921 = vmatpush2.msra.mxu0 0.0
    %2922 = vmatprep.subr.mxu0 0.0
    %2923 = vmatpush2.msra.mxu0 0.0
    %2924 = vmatprep.mubr.f32.mxu0 0.0
    %2925 = vmatmul.mubr.f32.gmra.mxu0 %v1183
    %v2926 = vpop.f32.mrf.mxu0
    %v2927 = vadd.f32 0.0, %v2926
    %v2928 = vpop.f32.mrf.mxu0
    %2929 = vmatprep.mubr.f32.mxu0 0.0
    %2930 = vmatmul.mubr.f32.gmra.mxu0 %v1186
    %v2931 = vpop.f32.mrf.mxu0
    %v2932 = vadd.f32 0.0, %v2931
    %v2933 = vpop.f32.mrf.mxu0
    %2934 = vdwg.mxu0
    %v2935 = vsub.f32 %v2839, %v2927
    %v2936 = vsub.f32 %v2840, %v2932
    %v2937 = vmul.f32 %v2935, 1.442695
    %v2938 = vpow.pop %v2937
    %v2939 = vmul.f32 %v2936, 1.442695
    %v2940 = vpow.pop %v2939
    %2941 = vmatprep.subr.mxu0 0.0
    %2942 = vmatpush1.msra.mxu0 0.0
    %2943 = vmatprep.subr.mxu0 0.0
    %2944 = vmatpush1.msra.mxu0 0.0
    %2945 = vmatprep.subr.mxu0 0.0
    %2946 = vmatpush1.msra.mxu0 0.0
    %2947 = vmatprep.subr.mxu0 0.0
    %2948 = vmatpush1.msra.mxu0 0.0
    %2949 = vmatprep.subr.mxu0 0.0
    %2950 = vmatpush1.msra.mxu0 0.0
    %2951 = vmatprep.subr.mxu0 0.0
    %2952 = vmatpush1.msra.mxu0 0.0
    %2953 = vmatprep.subr.mxu0 0.0
    %2954 = vmatpush1.msra.mxu0 0.0
    %2955 = vmatprep.subr.mxu0 0.0
    %2956 = vmatpush1.msra.mxu0 0.0
    %2957 = vmatprep.subr.mxu0 0.0
    %2958 = vmatpush1.msra.mxu0 0.0
    %2959 = vmatprep.subr.mxu0 0.0
    %2960 = vmatpush1.msra.mxu0 0.0
    %2961 = vmatprep.subr.mxu0 0.0
    %2962 = vmatpush1.msra.mxu0 0.0
    %2963 = vmatprep.subr.mxu0 0.0
    %2964 = vmatpush1.msra.mxu0 0.0
    %2965 = vmatprep.subr.mxu0 0.0
    %2966 = vmatpush1.msra.mxu0 0.0
    %2967 = vmatprep.subr.mxu0 0.0
    %2968 = vmatpush1.msra.mxu0 0.0
    %2969 = vmatprep.subr.mxu0 0.0
    %2970 = vmatpush1.msra.mxu0 %v2940
    %2971 = vmatprep.subr.mxu0 0.0
    %2972 = vmatpush1.msra.mxu0 %v2938
    %2973 = vmatprep.subr.mxu0 0.0
    %2974 = vmatpush2.msra.mxu0 0.0
    %2975 = vmatprep.subr.mxu0 0.0
    %2976 = vmatpush2.msra.mxu0 0.0
    %2977 = vmatprep.subr.mxu0 0.0
    %2978 = vmatpush2.msra.mxu0 0.0
    %2979 = vmatprep.subr.mxu0 0.0
    %2980 = vmatpush2.msra.mxu0 0.0
    %2981 = vmatprep.subr.mxu0 0.0
    %2982 = vmatpush2.msra.mxu0 0.0
    %2983 = vmatprep.subr.mxu0 0.0
    %2984 = vmatpush2.msra.mxu0 0.0
    %2985 = vmatprep.subr.mxu0 0.0
    %2986 = vmatpush2.msra.mxu0 0.0
    %2987 = vmatprep.subr.mxu0 0.0
    %2988 = vmatpush2.msra.mxu0 0.0
    %2989 = vmatprep.subr.mxu0 0.0
    %2990 = vmatpush2.msra.mxu0 0.0
    %2991 = vmatprep.subr.mxu0 0.0
    %2992 = vmatpush2.msra.mxu0 0.0
    %2993 = vmatprep.subr.mxu0 0.0
    %2994 = vmatpush2.msra.mxu0 0.0
    %2995 = vmatprep.subr.mxu0 0.0
    %2996 = vmatpush2.msra.mxu0 0.0
    %2997 = vmatprep.subr.mxu0 0.0
    %2998 = vmatpush2.msra.mxu0 0.0
    %2999 = vmatprep.subr.mxu0 0.0
    %3000 = vmatpush2.msra.mxu0 0.0
    %3001 = vmatprep.subr.mxu0 0.0
    %3002 = vmatpush2.msra.mxu0 0.0
    %3003 = vmatprep.subr.mxu0 0.0
    %3004 = vmatpush2.msra.mxu0 0.0
    %3005 = vmatprep.mubr.f32.mxu0 0.0
    %3006 = vmatmul.mubr.f32.gmra.mxu0 %v372
    %v3007 = vpop.f32.mrf.mxu0
    %v3008 = vadd.f32 0.0, %v3007
    %v3009 = vpop.f32.mrf.mxu0
    %3010 = vdwg.mxu0
    %v3011 = vrcp.pop %v3008
    %v3013 = vsel %vm1188, %v3011, 0
    %3015 = vmatprep.subr.mxu0 0.0
    %3016 = vmatpush1.msra.mxu0 0.0
    %3017 = vmatprep.subr.mxu0 0.0
    %3018 = vmatpush1.msra.mxu0 0.0
    %3019 = vmatprep.subr.mxu0 0.0
    %3020 = vmatpush1.msra.mxu0 0.0
    %3021 = vmatprep.subr.mxu0 0.0
    %3022 = vmatpush1.msra.mxu0 0.0
    %3023 = vmatprep.subr.mxu0 0.0
    %3024 = vmatpush1.msra.mxu0 0.0
    %3025 = vmatprep.subr.mxu0 0.0
    %3026 = vmatpush1.msra.mxu0 0.0
    %3027 = vmatprep.subr.mxu0 0.0
    %3028 = vmatpush1.msra.mxu0 0.0
    %3029 = vmatprep.subr.mxu0 0.0
    %3030 = vmatpush1.msra.mxu0 0.0
    %3031 = vmatprep.subr.mxu0 0.0
    %3032 = vmatpush1.msra.mxu0 0.0
    %3033 = vmatprep.subr.mxu0 0.0
    %3034 = vmatpush1.msra.mxu0 0.0
    %3035 = vmatprep.subr.mxu0 0.0
    %3036 = vmatpush1.msra.mxu0 0.0
    %3037 = vmatprep.subr.mxu0 0.0
    %3038 = vmatpush1.msra.mxu0 0.0
    %3039 = vmatprep.subr.mxu0 0.0
    %3040 = vmatpush1.msra.mxu0 0.0
    %3041 = vmatprep.subr.mxu0 0.0
    %3042 = vmatpush1.msra.mxu0 0.0
    %3043 = vmatprep.subr.mxu0 0.0
    %3044 = vmatpush1.msra.mxu0 0.0
    %3045 = vmatprep.subr.mxu0 0.0
    %3046 = vmatpush1.msra.mxu0 %v3013
    %3047 = vmatprep.subr.mxu0 0.0
    %3048 = vmatpush2.msra.mxu0 0.0
    %3049 = vmatprep.subr.mxu0 0.0
    %3050 = vmatpush2.msra.mxu0 0.0
    %3051 = vmatprep.subr.mxu0 0.0
    %3052 = vmatpush2.msra.mxu0 0.0
    %3053 = vmatprep.subr.mxu0 0.0
    %3054 = vmatpush2.msra.mxu0 0.0
    %3055 = vmatprep.subr.mxu0 0.0
    %3056 = vmatpush2.msra.mxu0 0.0
    %3057 = vmatprep.subr.mxu0 0.0
    %3058 = vmatpush2.msra.mxu0 0.0
    %3059 = vmatprep.subr.mxu0 0.0
    %3060 = vmatpush2.msra.mxu0 0.0
    %3061 = vmatprep.subr.mxu0 0.0
    %3062 = vmatpush2.msra.mxu0 0.0
    %3063 = vmatprep.subr.mxu0 0.0
    %3064 = vmatpush2.msra.mxu0 0.0
    %3065 = vmatprep.subr.mxu0 0.0
    %3066 = vmatpush2.msra.mxu0 0.0
    %3067 = vmatprep.subr.mxu0 0.0
    %3068 = vmatpush2.msra.mxu0 0.0
    %3069 = vmatprep.subr.mxu0 0.0
    %3070 = vmatpush2.msra.mxu0 0.0
    %3071 = vmatprep.subr.mxu0 0.0
    %3072 = vmatpush2.msra.mxu0 0.0
    %3073 = vmatprep.subr.mxu0 0.0
    %3074 = vmatpush2.msra.mxu0 0.0
    %3075 = vmatprep.subr.mxu0 0.0
    %3076 = vmatpush2.msra.mxu0 0.0
    %3077 = vmatprep.subr.mxu0 0.0
    %3078 = vmatpush2.msra.mxu0 0.0
    %3079 = vmatprep.mubr.f32.mxu0 0.0
    %3080 = vmatmul.mubr.f32.gmra.mxu0 %v1183
    %v3081 = vpop.f32.mrf.mxu0
    %v3082 = vadd.f32 0.0, %v3081
    %v3083 = vpop.f32.mrf.mxu0
    %3084 = vmatprep.mubr.f32.mxu0 0.0
    %3085 = vmatmul.mubr.f32.gmra.mxu0 %v1186
    %v3086 = vpop.f32.mrf.mxu0
    %v3087 = vadd.f32 0.0, %v3086
    %v3088 = vpop.f32.mrf.mxu0
    %3089 = vdwg.mxu0
    %v3090 = vmul.f32 %v2938, %v3082
    %v3091 = vmul.f32 %v2940, %v3087
    %v3093 = vsel %vm1181, %v3090, 0
    %v3096 = vsel %vm1181, %v3091, 0
    %3098 = vmatprep.subr.mxu0 0.0
    %3099 = vmatpush1.msra.mxu0 0.0
    %3100 = vmatprep.subr.mxu0 0.0
    %3101 = vmatpush1.msra.mxu0 0.0
    %3102 = vmatprep.subr.mxu0 0.0
    %3103 = vmatpush1.msra.mxu0 0.0
    %3104 = vmatprep.subr.mxu0 0.0
    %3105 = vmatpush1.msra.mxu0 0.0
    %3106 = vmatprep.subr.mxu0 0.0
    %3107 = vmatpush1.msra.mxu0 0.0
    %3108 = vmatprep.subr.mxu0 0.0
    %3109 = vmatpush1.msra.mxu0 0.0
    %3110 = vmatprep.subr.mxu0 0.0
    %3111 = vmatpush1.msra.mxu0 0.0
    %3112 = vmatprep.subr.mxu0 0.0
    %3113 = vmatpush1.msra.mxu0 0.0
    %3114 = vmatprep.subr.mxu0 0.0
    %3115 = vmatpush1.msra.mxu0 0.0
    %3116 = vmatprep.subr.mxu0 0.0
    %3117 = vmatpush1.msra.mxu0 0.0
    %3118 = vmatprep.subr.mxu0 0.0
    %3119 = vmatpush1.msra.mxu0 0.0
    %3120 = vmatprep.subr.mxu0 0.0
    %3121 = vmatpush1.msra.mxu0 0.0
    %3122 = vmatprep.subr.mxu0 0.0
    %3123 = vmatpush1.msra.mxu0 0.0
    %3124 = vmatprep.subr.mxu0 0.0
    %3125 = vmatpush1.msra.mxu0 0.0
    %3126 = vmatprep.subr.mxu0 0.0
    %3127 = vmatpush1.msra.mxu0 0.0
    %3128 = vmatprep.subr.mxu0 0.0
    %3129 = vmatpush1.msra.mxu0 %v1623
    %3130 = vmatprep.subr.mxu0 0.0
    %3131 = vmatpush2.msra.mxu0 0.0
    %3132 = vmatprep.subr.mxu0 0.0
    %3133 = vmatpush2.msra.mxu0 0.0
    %3134 = vmatprep.subr.mxu0 0.0
    %3135 = vmatpush2.msra.mxu0 0.0
    %3136 = vmatprep.subr.mxu0 0.0
    %3137 = vmatpush2.msra.mxu0 0.0
    %3138 = vmatprep.subr.mxu0 0.0
    %3139 = vmatpush2.msra.mxu0 0.0
    %3140 = vmatprep.subr.mxu0 0.0
    %3141 = vmatpush2.msra.mxu0 0.0
    %3142 = vmatprep.subr.mxu0 0.0
    %3143 = vmatpush2.msra.mxu0 0.0
    %3144 = vmatprep.subr.mxu0 0.0
    %3145 = vmatpush2.msra.mxu0 0.0
    %3146 = vmatprep.subr.mxu0 0.0
    %3147 = vmatpush2.msra.mxu0 0.0
    %3148 = vmatprep.subr.mxu0 0.0
    %3149 = vmatpush2.msra.mxu0 0.0
    %3150 = vmatprep.subr.mxu0 0.0
    %3151 = vmatpush2.msra.mxu0 0.0
    %3152 = vmatprep.subr.mxu0 0.0
    %3153 = vmatpush2.msra.mxu0 0.0
    %3154 = vmatprep.subr.mxu0 0.0
    %3155 = vmatpush2.msra.mxu0 0.0
    %3156 = vmatprep.subr.mxu0 0.0
    %3157 = vmatpush2.msra.mxu0 0.0
    %3158 = vmatprep.subr.mxu0 0.0
    %3159 = vmatpush2.msra.mxu0 0.0
    %3160 = vmatprep.subr.mxu0 0.0
    %3161 = vmatpush2.msra.mxu0 0.0
    %3162 = vmatprep.mubr.f32.mxu0 0.0
    %3163 = vmatmul.mubr.f32.gmra.mxu0 %v3093
    %v3164 = vpop.f32.mrf.mxu0
    %v3165 = vadd.f32 0.0, %v3164
    %v3166 = vpop.f32.mrf.mxu0
    %3167 = vmatprep.mubr.f32.mxu0 0.0
    %3168 = vmatmul.mubr.f32.gmra.mxu0 %v3096
    %v3169 = vpop.f32.mrf.mxu0
    %v3170 = vadd.f32 0.0, %v3169
    %v3171 = vpop.f32.mrf.mxu0
    %3172 = vdwg.mxu0
    %v3173 = vmul.f32 %v3165, %v2668
    %v3174 = vmul.f32 %v3170, %v2673
    %3175 = vmatprep.subr.mxu0 0.0
    %3176 = vmatpush1.msra.mxu0 0.0
    %3177 = vmatprep.subr.mxu0 0.0
    %3178 = vmatpush1.msra.mxu0 0.0
    %3179 = vmatprep.subr.mxu0 0.0
    %3180 = vmatpush1.msra.mxu0 0.0
    %3181 = vmatprep.subr.mxu0 0.0
    %3182 = vmatpush1.msra.mxu0 0.0
    %3183 = vmatprep.subr.mxu0 0.0
    %3184 = vmatpush1.msra.mxu0 0.0
    %3185 = vmatprep.subr.mxu0 0.0
    %3186 = vmatpush1.msra.mxu0 0.0
    %3187 = vmatprep.subr.mxu0 0.0
    %3188 = vmatpush1.msra.mxu0 0.0
    %3189 = vmatprep.subr.mxu0 0.0
    %3190 = vmatpush1.msra.mxu0 0.0
    %3191 = vmatprep.subr.mxu0 0.0
    %3192 = vmatpush1.msra.mxu0 0.0
    %3193 = vmatprep.subr.mxu0 0.0
    %3194 = vmatpush1.msra.mxu0 0.0
    %3195 = vmatprep.subr.mxu0 0.0
    %3196 = vmatpush1.msra.mxu0 0.0
    %3197 = vmatprep.subr.mxu0 0.0
    %3198 = vmatpush1.msra.mxu0 0.0
    %3199 = vmatprep.subr.mxu0 0.0
    %3200 = vmatpush1.msra.mxu0 0.0
    %3201 = vmatprep.subr.mxu0 0.0
    %3202 = vmatpush1.msra.mxu0 0.0
    %3203 = vmatprep.subr.mxu0 0.0
    %3204 = vmatpush1.msra.mxu0 %v3174
    %3205 = vmatprep.subr.mxu0 0.0
    %3206 = vmatpush1.msra.mxu0 %v3173
    %3207 = vmatprep.subr.mxu0 0.0
    %3208 = vmatpush2.msra.mxu0 0.0
    %3209 = vmatprep.subr.mxu0 0.0
    %3210 = vmatpush2.msra.mxu0 0.0
    %3211 = vmatprep.subr.mxu0 0.0
    %3212 = vmatpush2.msra.mxu0 0.0
    %3213 = vmatprep.subr.mxu0 0.0
    %3214 = vmatpush2.msra.mxu0 0.0
    %3215 = vmatprep.subr.mxu0 0.0
    %3216 = vmatpush2.msra.mxu0 0.0
    %3217 = vmatprep.subr.mxu0 0.0
    %3218 = vmatpush2.msra.mxu0 0.0
    %3219 = vmatprep.subr.mxu0 0.0
    %3220 = vmatpush2.msra.mxu0 0.0
    %3221 = vmatprep.subr.mxu0 0.0
    %3222 = vmatpush2.msra.mxu0 0.0
    %3223 = vmatprep.subr.mxu0 0.0
    %3224 = vmatpush2.msra.mxu0 0.0
    %3225 = vmatprep.subr.mxu0 0.0
    %3226 = vmatpush2.msra.mxu0 0.0
    %3227 = vmatprep.subr.mxu0 0.0
    %3228 = vmatpush2.msra.mxu0 0.0
    %3229 = vmatprep.subr.mxu0 0.0
    %3230 = vmatpush2.msra.mxu0 0.0
    %3231 = vmatprep.subr.mxu0 0.0
    %3232 = vmatpush2.msra.mxu0 0.0
    %3233 = vmatprep.subr.mxu0 0.0
    %3234 = vmatpush2.msra.mxu0 0.0
    %3235 = vmatprep.subr.mxu0 0.0
    %3236 = vmatpush2.msra.mxu0 0.0
    %3237 = vmatprep.subr.mxu0 0.0
    %3238 = vmatpush2.msra.mxu0 0.0
    %3239 = vmatprep.mubr.f32.mxu0 0.0
    %3240 = vmatmul.mubr.f32.gmra.mxu0 %v372
    %v3241 = vpop.f32.mrf.mxu0
    %v3242 = vadd.f32 0.0, %v3241
    %v3243 = vpop.f32.mrf.mxu0
    %3244 = vdwg.mxu0
    %s3245 = scalar_lea.vmem %s43, 32
    %v3246 = vld [vmem:[%s3245] sm:$0xff]
    %v3247 = vld [vmem:[%s3245 + $0x8] sm:$0xff]
    %v3248 = vld [vmem:[%s3245 + $0x10] sm:$0xff]
    %v3249 = vld [vmem:[%s3245 + $0x18] sm:$0xff]
    %s3250 = scalar_lea.vmem [#allocation25], 1
    %v3251 = vld [vmem:[%s3250] sm:$0x1]
    %v3253 = vlaneseq
    %v3254 = vshrl.u32 %v3253, 7
    %v3255 = vsub.s32 0, %v3254
    %v3256 = vrot.slane %v3251, %v3255
    %v3259 = vsel %vm929, %v3242, 0
    %3261 = vmatprep.subr.mxu0 0.0
    %3262 = vmatpush1.msra.mxu0 0.0
    %3263 = vmatprep.subr.mxu0 0.0
    %3264 = vmatpush1.msra.mxu0 0.0
    %3265 = vmatprep.subr.mxu0 0.0
    %3266 = vmatpush1.msra.mxu0 0.0
    %3267 = vmatprep.subr.mxu0 0.0
    %3268 = vmatpush1.msra.mxu0 0.0
    %3269 = vmatprep.subr.mxu0 0.0
    %3270 = vmatpush1.msra.mxu0 0.0
    %3271 = vmatprep.subr.mxu0 0.0
    %3272 = vmatpush1.msra.mxu0 0.0
    %3273 = vmatprep.subr.mxu0 0.0
    %3274 = vmatpush1.msra.mxu0 0.0
    %3275 = vmatprep.subr.mxu0 0.0
    %3276 = vmatpush1.msra.mxu0 0.0
    %3277 = vmatprep.subr.mxu0 0.0
    %3278 = vmatpush1.msra.mxu0 0.0
    %3279 = vmatprep.subr.mxu0 0.0
    %3280 = vmatpush1.msra.mxu0 0.0
    %3281 = vmatprep.subr.mxu0 0.0
    %3282 = vmatpush1.msra.mxu0 0.0
    %3283 = vmatprep.subr.mxu0 0.0
    %3284 = vmatpush1.msra.mxu0 0.0
    %3285 = vmatprep.subr.mxu0 0.0
    %3286 = vmatpush1.msra.mxu0 %v3249
    %3287 = vmatprep.subr.mxu0 0.0
    %3288 = vmatpush1.msra.mxu0 %v3248
    %3289 = vmatprep.subr.mxu0 0.0
    %3290 = vmatpush1.msra.mxu0 %v3247
    %3291 = vmatprep.subr.mxu0 0.0
    %3292 = vmatpush1.msra.mxu0 %v3246
    %3293 = vmatprep.subr.mxu0 0.0
    %3294 = vmatpush2.msra.mxu0 0.0
    %3295 = vmatprep.subr.mxu0 0.0
    %3296 = vmatpush2.msra.mxu0 0.0
    %3297 = vmatprep.subr.mxu0 0.0
    %3298 = vmatpush2.msra.mxu0 0.0
    %3299 = vmatprep.subr.mxu0 0.0
    %3300 = vmatpush2.msra.mxu0 0.0
    %3301 = vmatprep.subr.mxu0 0.0
    %3302 = vmatpush2.msra.mxu0 0.0
    %3303 = vmatprep.subr.mxu0 0.0
    %3304 = vmatpush2.msra.mxu0 0.0
    %3305 = vmatprep.subr.mxu0 0.0
    %3306 = vmatpush2.msra.mxu0 0.0
    %3307 = vmatprep.subr.mxu0 0.0
    %3308 = vmatpush2.msra.mxu0 0.0
    %3309 = vmatprep.subr.mxu0 0.0
    %3310 = vmatpush2.msra.mxu0 0.0
    %3311 = vmatprep.subr.mxu0 0.0
    %3312 = vmatpush2.msra.mxu0 0.0
    %3313 = vmatprep.subr.mxu0 0.0
    %3314 = vmatpush2.msra.mxu0 0.0
    %3315 = vmatprep.subr.mxu0 0.0
    %3316 = vmatpush2.msra.mxu0 0.0
    %3317 = vmatprep.subr.mxu0 0.0
    %3318 = vmatpush2.msra.mxu0 0.0
    %3319 = vmatprep.subr.mxu0 0.0
    %3320 = vmatpush2.msra.mxu0 0.0
    %3321 = vmatprep.subr.mxu0 0.0
    %3322 = vmatpush2.msra.mxu0 0.0
    %3323 = vmatprep.subr.mxu0 0.0
    %3324 = vmatpush2.msra.mxu0 0.0
    %3325 = vmatprep.mubr.f32.mxu0 0.0
    %3326 = vmatmul.mubr.f32.gmra.mxu0 %v3259
    %v3327 = vpop.f32.mrf.mxu0
    %v3328 = vadd.f32 %v3256, %v3327
    %v3329 = vpop.f32.mrf.mxu0
    %3330 = vdwg.mxu0
    %s3331 = scalar_lea.vmem %s47, 32
    %v3332 = vld [vmem:[%s3331] sm:$0xff]
    %v3333 = vld [vmem:[%s3331 + $0x8] sm:$0xff]
    %v3334 = vld [vmem:[%s3331 + $0x10] sm:$0xff]
    %v3335 = vld [vmem:[%s3331 + $0x18] sm:$0xff]
    %s3336 = scalar_lea.vmem %s49, 1
    %v3337 = vld [vmem:[%s3336] sm:$0x1]
    %v3339 = vlaneseq
    %v3340 = vshrl.u32 %v3339, 7
    %v3341 = vsub.s32 0, %v3340
    %v3342 = vrot.slane %v3337, %v3341
    %v3344 = vmul.f32 %v622, %v3342
    %v3346 = vsel %vm929, %v3328, 0
    %3348 = vmatprep.subr.mxu0 0.0
    %3349 = vmatpush1.msra.mxu0 0.0
    %3350 = vmatprep.subr.mxu0 0.0
    %3351 = vmatpush1.msra.mxu0 0.0
    %3352 = vmatprep.subr.mxu0 0.0
    %3353 = vmatpush1.msra.mxu0 0.0
    %3354 = vmatprep.subr.mxu0 0.0
    %3355 = vmatpush1.msra.mxu0 0.0
    %3356 = vmatprep.subr.mxu0 0.0
    %3357 = vmatpush1.msra.mxu0 0.0
    %3358 = vmatprep.subr.mxu0 0.0
    %3359 = vmatpush1.msra.mxu0 0.0
    %3360 = vmatprep.subr.mxu0 0.0
    %3361 = vmatpush1.msra.mxu0 0.0
    %3362 = vmatprep.subr.mxu0 0.0
    %3363 = vmatpush1.msra.mxu0 0.0
    %3364 = vmatprep.subr.mxu0 0.0
    %3365 = vmatpush1.msra.mxu0 0.0
    %3366 = vmatprep.subr.mxu0 0.0
    %3367 = vmatpush1.msra.mxu0 0.0
    %3368 = vmatprep.subr.mxu0 0.0
    %3369 = vmatpush1.msra.mxu0 0.0
    %3370 = vmatprep.subr.mxu0 0.0
    %3371 = vmatpush1.msra.mxu0 0.0
    %3372 = vmatprep.subr.mxu0 0.0
    %3373 = vmatpush1.msra.mxu0 %v3335
    %3374 = vmatprep.subr.mxu0 0.0
    %3375 = vmatpush1.msra.mxu0 %v3334
    %3376 = vmatprep.subr.mxu0 0.0
    %3377 = vmatpush1.msra.mxu0 %v3333
    %3378 = vmatprep.subr.mxu0 0.0
    %3379 = vmatpush1.msra.mxu0 %v3332
    %3380 = vmatprep.subr.mxu0 0.0
    %3381 = vmatpush2.msra.mxu0 0.0
    %3382 = vmatprep.subr.mxu0 0.0
    %3383 = vmatpush2.msra.mxu0 0.0
    %3384 = vmatprep.subr.mxu0 0.0
    %3385 = vmatpush2.msra.mxu0 0.0
    %3386 = vmatprep.subr.mxu0 0.0
    %3387 = vmatpush2.msra.mxu0 0.0
    %3388 = vmatprep.subr.mxu0 0.0
    %3389 = vmatpush2.msra.mxu0 0.0
    %3390 = vmatprep.subr.mxu0 0.0
    %3391 = vmatpush2.msra.mxu0 0.0
    %3392 = vmatprep.subr.mxu0 0.0
    %3393 = vmatpush2.msra.mxu0 0.0
    %3394 = vmatprep.subr.mxu0 0.0
    %3395 = vmatpush2.msra.mxu0 0.0
    %3396 = vmatprep.subr.mxu0 0.0
    %3397 = vmatpush2.msra.mxu0 0.0
    %3398 = vmatprep.subr.mxu0 0.0
    %3399 = vmatpush2.msra.mxu0 0.0
    %3400 = vmatprep.subr.mxu0 0.0
    %3401 = vmatpush2.msra.mxu0 0.0
    %3402 = vmatprep.subr.mxu0 0.0
    %3403 = vmatpush2.msra.mxu0 0.0
    %3404 = vmatprep.subr.mxu0 0.0
    %3405 = vmatpush2.msra.mxu0 0.0
    %3406 = vmatprep.subr.mxu0 0.0
    %3407 = vmatpush2.msra.mxu0 0.0
    %3408 = vmatprep.subr.mxu0 0.0
    %3409 = vmatpush2.msra.mxu0 0.0
    %3410 = vmatprep.subr.mxu0 0.0
    %3411 = vmatpush2.msra.mxu0 0.0
    %3412 = vmatprep.mubr.f32.mxu0 0.0
    %3413 = vmatmul.mubr.f32.gmra.mxu0 %v3346
    %v3414 = vpop.f32.mrf.mxu0
    %v3415 = vadd.f32 %v3344, %v3414
    %v3416 = vpop.f32.mrf.mxu0
    %3417 = vdwg.mxu0
    %s3418 = scalar_lea.vmem %s51, 1
    %v3419 = vld [vmem:[%s3418] sm:$0x1]
    %v3421 = vlaneseq
    %v3422 = vshrl.u32 %v3421, 7
    %v3423 = vsub.s32 0, %v3422
    %v3424 = vrot.slane %v3419, %v3423
    %v3426 = vadd.f32 %v3415, %v3424
    %vm3427 = vcmp.ge.f32.partialorder %v3426, 0.0
    %v3428 = vmul.f32 %v3426, 0.01
    %v3429 = vsel %vm3427, %v3426, %v3428
    %v3430 = vadd.f32 %v3429, %v2202
    %vm3431 = vcmask 123904
    %3432 = vst.msk [vmem:[#allocation28] sm:$0x3] %vm3431, %v3430
    %vm3433 = vcmp.ge.f32.partialorder %v3430, 0.0
    %v3434 = vmul.f32 %v3430, 0.01
    %v3435 = vsel %vm3433, %v3430, %v3434
    %v3436 = vld [vmem:[#allocation26] sm:$0xff]
    %v3437 = vld [vmem:[#allocation26 + $0x8] sm:$0xff]
    %v3438 = vld [vmem:[%s61] sm:$0x1]
    %v3440 = vlaneseq
    %v3441 = vshrl.u32 %v3440, 7
    %v3442 = vsub.s32 0, %v3441
    %v3443 = vrot.slane %v3438, %v3442
    %v3446 = vsel %vm370, %v3435, 0
    %3448 = vmatprep.subr.mxu0 0.0
    %3449 = vmatpush1.msra.mxu0 0.0
    %3450 = vmatprep.subr.mxu0 0.0
    %3451 = vmatpush1.msra.mxu0 0.0
    %3452 = vmatprep.subr.mxu0 0.0
    %3453 = vmatpush1.msra.mxu0 0.0
    %3454 = vmatprep.subr.mxu0 0.0
    %3455 = vmatpush1.msra.mxu0 0.0
    %3456 = vmatprep.subr.mxu0 0.0
    %3457 = vmatpush1.msra.mxu0 0.0
    %3458 = vmatprep.subr.mxu0 0.0
    %3459 = vmatpush1.msra.mxu0 0.0
    %3460 = vmatprep.subr.mxu0 0.0
    %3461 = vmatpush1.msra.mxu0 0.0
    %3462 = vmatprep.subr.mxu0 0.0
    %3463 = vmatpush1.msra.mxu0 0.0
    %3464 = vmatprep.subr.mxu0 0.0
    %3465 = vmatpush1.msra.mxu0 0.0
    %3466 = vmatprep.subr.mxu0 0.0
    %3467 = vmatpush1.msra.mxu0 0.0
    %3468 = vmatprep.subr.mxu0 0.0
    %3469 = vmatpush1.msra.mxu0 0.0
    %3470 = vmatprep.subr.mxu0 0.0
    %3471 = vmatpush1.msra.mxu0 0.0
    %3472 = vmatprep.subr.mxu0 0.0
    %3473 = vmatpush1.msra.mxu0 0.0
    %3474 = vmatprep.subr.mxu0 0.0
    %3475 = vmatpush1.msra.mxu0 0.0
    %3476 = vmatprep.subr.mxu0 0.0
    %3477 = vmatpush1.msra.mxu0 %v3437
    %3478 = vmatprep.subr.mxu0 0.0
    %3479 = vmatpush1.msra.mxu0 %v3436
    %3480 = vmatprep.subr.mxu0 0.0
    %3481 = vmatpush2.msra.mxu0 0.0
    %3482 = vmatprep.subr.mxu0 0.0
    %3483 = vmatpush2.msra.mxu0 0.0
    %3484 = vmatprep.subr.mxu0 0.0
    %3485 = vmatpush2.msra.mxu0 0.0
    %3486 = vmatprep.subr.mxu0 0.0
    %3487 = vmatpush2.msra.mxu0 0.0
    %3488 = vmatprep.subr.mxu0 0.0
    %3489 = vmatpush2.msra.mxu0 0.0
    %3490 = vmatprep.subr.mxu0 0.0
    %3491 = vmatpush2.msra.mxu0 0.0
    %3492 = vmatprep.subr.mxu0 0.0
    %3493 = vmatpush2.msra.mxu0 0.0
    %3494 = vmatprep.subr.mxu0 0.0
    %3495 = vmatpush2.msra.mxu0 0.0
    %3496 = vmatprep.subr.mxu0 0.0
    %3497 = vmatpush2.msra.mxu0 0.0
    %3498 = vmatprep.subr.mxu0 0.0
    %3499 = vmatpush2.msra.mxu0 0.0
    %3500 = vmatprep.subr.mxu0 0.0
    %3501 = vmatpush2.msra.mxu0 0.0
    %3502 = vmatprep.subr.mxu0 0.0
    %3503 = vmatpush2.msra.mxu0 0.0
    %3504 = vmatprep.subr.mxu0 0.0
    %3505 = vmatpush2.msra.mxu0 0.0
    %3506 = vmatprep.subr.mxu0 0.0
    %3507 = vmatpush2.msra.mxu0 0.0
    %3508 = vmatprep.subr.mxu0 0.0
    %3509 = vmatpush2.msra.mxu0 0.0
    %3510 = vmatprep.subr.mxu0 0.0
    %3511 = vmatpush2.msra.mxu0 0.0
    %3512 = vmatprep.mubr.f32.mxu0 0.0
    %3513 = vmatmul.mubr.f32.gmra.mxu0 %v3446
    %v3514 = vpop.f32.mrf.mxu0
    %v3515 = vadd.f32 %v3443, %v3514
    %v3516 = vpop.f32.mrf.mxu0
    %3517 = vdwg.mxu0
    %vm3518 = vcmp.ge.f32.partialorder %v3515, 0.0
    %v3519 = vmul.f32 %v3515, 0.01
    %v3520 = vsel %vm3518, %v3515, %v3519
    %v3521 = vld [vmem:[%s63] sm:$0xff]
    %v3522 = vld [vmem:[%s63 + $0x8] sm:$0xff]
    %v3523 = vld [vmem:[%s63 + $0x10] sm:$0xff]
    %v3524 = vld [vmem:[%s63 + $0x18] sm:$0xff]
    %v3525 = vld [vmem:[%s65] sm:$0x1]
    %v3527 = vlaneseq
    %v3528 = vshrl.u32 %v3527, 7
    %v3529 = vsub.s32 0, %v3528
    %v3530 = vrot.slane %v3525, %v3529
    %v3533 = vsel %vm929, %v3520, 0
    %3535 = vmatprep.subr.mxu0 0.0
    %3536 = vmatpush1.msra.mxu0 0.0
    %3537 = vmatprep.subr.mxu0 0.0
    %3538 = vmatpush1.msra.mxu0 0.0
    %3539 = vmatprep.subr.mxu0 0.0
    %3540 = vmatpush1.msra.mxu0 0.0
    %3541 = vmatprep.subr.mxu0 0.0
    %3542 = vmatpush1.msra.mxu0 0.0
    %3543 = vmatprep.subr.mxu0 0.0
    %3544 = vmatpush1.msra.mxu0 0.0
    %3545 = vmatprep.subr.mxu0 0.0
    %3546 = vmatpush1.msra.mxu0 0.0
    %3547 = vmatprep.subr.mxu0 0.0
    %3548 = vmatpush1.msra.mxu0 0.0
    %3549 = vmatprep.subr.mxu0 0.0
    %3550 = vmatpush1.msra.mxu0 0.0
    %3551 = vmatprep.subr.mxu0 0.0
    %3552 = vmatpush1.msra.mxu0 0.0
    %3553 = vmatprep.subr.mxu0 0.0
    %3554 = vmatpush1.msra.mxu0 0.0
    %3555 = vmatprep.subr.mxu0 0.0
    %3556 = vmatpush1.msra.mxu0 0.0
    %3557 = vmatprep.subr.mxu0 0.0
    %3558 = vmatpush1.msra.mxu0 0.0
    %3559 = vmatprep.subr.mxu0 0.0
    %3560 = vmatpush1.msra.mxu0 %v3524
    %3561 = vmatprep.subr.mxu0 0.0
    %3562 = vmatpush1.msra.mxu0 %v3523
    %3563 = vmatprep.subr.mxu0 0.0
    %3564 = vmatpush1.msra.mxu0 %v3522
    %3565 = vmatprep.subr.mxu0 0.0
    %3566 = vmatpush1.msra.mxu0 %v3521
    %3567 = vmatprep.subr.mxu0 0.0
    %3568 = vmatpush2.msra.mxu0 0.0
    %3569 = vmatprep.subr.mxu0 0.0
    %3570 = vmatpush2.msra.mxu0 0.0
    %3571 = vmatprep.subr.mxu0 0.0
    %3572 = vmatpush2.msra.mxu0 0.0
    %3573 = vmatprep.subr.mxu0 0.0
    %3574 = vmatpush2.msra.mxu0 0.0
    %3575 = vmatprep.subr.mxu0 0.0
    %3576 = vmatpush2.msra.mxu0 0.0
    %3577 = vmatprep.subr.mxu0 0.0
    %3578 = vmatpush2.msra.mxu0 0.0
    %3579 = vmatprep.subr.mxu0 0.0
    %3580 = vmatpush2.msra.mxu0 0.0
    %3581 = vmatprep.subr.mxu0 0.0
    %3582 = vmatpush2.msra.mxu0 0.0
    %3583 = vmatprep.subr.mxu0 0.0
    %3584 = vmatpush2.msra.mxu0 0.0
    %3585 = vmatprep.subr.mxu0 0.0
    %3586 = vmatpush2.msra.mxu0 0.0
    %3587 = vmatprep.subr.mxu0 0.0
    %3588 = vmatpush2.msra.mxu0 0.0
    %3589 = vmatprep.subr.mxu0 0.0
    %3590 = vmatpush2.msra.mxu0 0.0
    %3591 = vmatprep.subr.mxu0 0.0
    %3592 = vmatpush2.msra.mxu0 0.0
    %3593 = vmatprep.subr.mxu0 0.0
    %3594 = vmatpush2.msra.mxu0 0.0
    %3595 = vmatprep.subr.mxu0 0.0
    %3596 = vmatpush2.msra.mxu0 0.0
    %3597 = vmatprep.subr.mxu0 0.0
    %3598 = vmatpush2.msra.mxu0 0.0
    %3599 = vmatprep.mubr.f32.mxu0 0.0
    %3600 = vmatmul.mubr.f32.gmra.mxu0 %v3533
    %v3601 = vpop.f32.mrf.mxu0
    %v3602 = vadd.f32 %v3530, %v3601
    %v3603 = vpop.f32.mrf.mxu0
    %3604 = vdwg.mxu0
    %v3605 = vld [vmem:[%s67] sm:$0x1]
    %v3606 = vld [vmem:[%s69] sm:$0x1]
    %v3607 = vsel %vm3431, %v3602, 0.0
    %3608 = vadd.xlane.f32.xlu0 %v3607
    %v3609 = vpop.xlane.xlu0 %3608
    %v3610 = vrcp.pop 16.0
    %v3611 = vmul.f32 %v3609, %v3610
    %v3612 = vsub.f32 %v3602, %v3611
    %v3613 = vmul.f32 %v3612, %v3612
    %v3614 = vsel %vm3431, %v3613, 0.0
    %3615 = vadd.xlane.f32.xlu0 %v3614
    %v3616 = vpop.xlane.xlu0 %3615
    %v3617 = vmul.f32 %v3616, %v3610
    %v3618 = vadd.f32 %v3617, 1e-05
    %v3619 = vrsqrt.pop %v3618
    %v3620 = vmul.f32 %v3612, %v3619
    %v3622 = vlaneseq
    %v3623 = vshrl.u32 %v3622, 7
    %v3624 = vsub.s32 0, %v3623
    %v3625 = vrot.slane %v3605, %v3624
    %v3627 = vmul.f32 %v3620, %v3625
    %v3629 = vlaneseq
    %v3630 = vshrl.u32 %v3629, 7
    %v3631 = vsub.s32 0, %v3630
    %v3632 = vrot.slane %v3606, %v3631
    %v3634 = vadd.f32 %v3627, %v3632
    %vm3635 = vcmp.ge.f32.partialorder %v3634, 0.0
    %v3636 = vmul.f32 %v3634, 0.01
    %v3637 = vsel %vm3635, %v3634, %v3636
    %3638 = vst.msk [vmem:[#allocation29] sm:$0x3] %vm3431, %v3637
    // Predicated region
    $region206: #{tpu_custom_call.1} parent=1 // pred_check
      _
    $region207: #{tpu_custom_call.1} parent=1 // pred_check_branch
      %3640 = sbr.rel (0) target = $region209
    $region208: #{tpu_custom_call.1} parent=1 // pred_region
      %s3642 = ssub.s32 32, 32
      %3643 = vsyncadd [#allocation4], %s3642
      %s3645 = sshll.u32 [#allocation28], 4
      %s3646 = int_to_ptr.vmem [resolvable:$true] %s3645
      %3648 = dma.vmem_to_hbm [thread:$0]  %s3646, 32, %s71, [#allocation4]
    $region209: #{tpu_custom_call.1} parent=1 // pred_fallthru
      _
    // Predicated region
    $region210: #{tpu_custom_call.1} parent=1 // pred_check
      _
    $region211: #{tpu_custom_call.1} parent=1 // pred_check_branch
      %3650 = sbr.rel (0) target = $region213
    $region212: #{tpu_custom_call.1} parent=1 // pred_region
      %s3652 = ssub.s32 32, 32
      %3653 = vsyncadd [#allocation30], %s3652
      %s3655 = sshll.u32 [#allocation29], 4
      %s3656 = int_to_ptr.vmem [resolvable:$true] %s3655
      %3658 = dma.vmem_to_hbm [thread:$0]  %s3656, 32, %s73, [#allocation30]
    $region213: #{tpu_custom_call.1} parent=1 // pred_fallthru
      _
    // Predicated region
    $region214: #{tpu_custom_call.1} parent=1 // pred_check
      _
    $region215: #{tpu_custom_call.1} parent=1 // pred_check_branch
      %3660 = sbr.rel (0) target = $region217
    $region216: #{tpu_custom_call.1} parent=1 // pred_region
      %3661 = dma.done [#allocation4], 32
    $region217: #{tpu_custom_call.1} parent=1 // pred_fallthru
      _
    // Predicated region
    $region218: #{tpu_custom_call.1} parent=1 // pred_check
      _
    $region219: #{tpu_custom_call.1} parent=1 // pred_check_branch
      %3663 = sbr.rel (0) target = $region221
    $region220: #{tpu_custom_call.1} parent=1 // pred_region
      %3664 = dma.done [#allocation30], 32
    $region221: #{tpu_custom_call.1} parent=1 // pred_fallthru
      _
    %3665 = vsyncpa [#allocation3], 1
    %3666 = vsyncpa [#allocation6], 1
    %3667 = vsyncpa [#allocation9], 1
    %3668 = vsyncpa [#allocation12], 1
    %3669 = vsyncpa [#allocation15], 1
    %3670 = vsyncpa [#allocation18], 1
    %3671 = vsyncpa [#allocation21], 1
    %3672 = vsyncpa [#allocation24], 1
    %3673 = vsyncpa [#allocation27], 1
    %3674 = vsyncpa [#allocation4], 1
    %3675 = vsyncpa [#allocation30], 1

</llo_original>
